<compile_context>
chip_gen: v7x
topology: tpu7x:2x2x1
jax: 0.10.0
libtpu: 0.0.40
codegen_flags: <defaults>
</compile_context>

<pallas_src>
import jax
import jax.numpy as jnp
from jax import lax
from jax.experimental import pallas as pl
from jax.experimental.pallas import tpu as pltpu

# ---------------- problem sizes (small, consistent with the torch module) ----------------
B, H, W = 2, 8, 8
DIM = 16                       # `dim`
EXP = 2
MED = EXP * DIM                # med_channels = 32
KSIZE, PAD = 7, 3

ROFF = 8                       # real rows start at sublane 8  -> aligned interior store
COFF = 4                       # real cols start at lane 4*MED = 128 -> aligned
HP = 24                        # padded rows (rows 5..18 are touched; 24 = 3 sublane tiles)
WP = 16                        # padded cols (lanes 0..511)


# ---------------- Pallas kernel (one grid step == one batch element) ----------------
def sepconv_kernel(x_ref, w1b_ref, kp_ref, w2b_ref, sb_ref, o_ref, pad_ref):
    # x_ref  : (H, W*DIM)   = (8, 128)   lane-dense input block for this batch
    # w1b_ref: (W*DIM, W*MED)            block-diagonal pwconv1 weight (resident)
    # kp_ref : (KSIZE*8, W*MED)          taps, row dw*8+dh = tile(k[dh, dw, :], W)
    # w2b_ref: (W*MED, W*DIM)            block-diagonal pwconv2 weight (resident)
    # sb_ref : (2,) in SMEM              StarReLU (scale, bias)
    # o_ref  : (H, W*DIM)                lane-dense output block
    # pad_ref: (HP, WP*MED) = (24, 512)  zero-halo'd conv buffer (VMEM scratch)

    # ---- pwconv1 (block-diagonal): (8,128) @ (128,256) on the MXU ----
    y = jnp.dot(x_ref[...], w1b_ref[...], preferred_element_type=jnp.float32)

    # ---- StarReLU: s * relu(y)^2 + b (scalars from SMEM, all f32) ----
    r = jnp.maximum(y, 0.0)
    y = sb_ref[0] * (r * r) + sb_ref[1]                       # (8, 256)

    # ---- halo-only zeroing (only rows/lanes the 7x7 taps actually read) ----
    zrow = jnp.zeros((PAD, WP * MED), jnp.float32)            # (3, 512)
    pad_ref[ROFF - PAD:ROFF, :] = zrow                        # rows 5..7
    pad_ref[ROFF + H:ROFF + H + PAD, :] = zrow                # rows 16..18
    zcol = jnp.zeros((H, COFF * MED), jnp.float32)            # (8, 128)
    pad_ref[ROFF:ROFF + H, 0:COFF * MED] = zcol               # left lane strip
    pad_ref[ROFF:ROFF + H, (COFF + W) * MED:WP * MED] = zcol  # right lane strip

    # ---- interior scatter: sublane offset 8, lane offset 128 -> unmasked vst ----
    pad_ref[ROFF:ROFF + H, COFF * MED:(COFF + W) * MED] = y

    # ---- 7x7 depthwise conv: per-tap shifted Ref loads (vld slots), tap row
    #      broadcast in the multiply, 4 independent partial accumulators. ----
    accs = [jnp.zeros((H, W * MED), jnp.float32) for _ in range(4)]
    t = 0
    for dw in range(KSIZE):
        lane0 = (COFF - PAD + dw) * MED                       # (1+dw)*MED, static
        for dh in range(KSIZE):
            row0 = ROFF - PAD + dh                            # 5 + dh, static
            win = pad_ref[row0:row0 + H, lane0:lane0 + W * MED]   # (8, 256) shifted load
            tap = kp_ref[dw * 8 + dh:dw * 8 + dh + 1, :]          # (1, 256)
            accs[t % 4] = accs[t % 4] + win * tap
            t += 1
    acc = (accs[0] + accs[1]) + (accs[2] + accs[3])           # (8, 256), f32

    # ---- act2 = Identity ; pwconv2 (block-diagonal): (8,256) @ (256,128) ----
    out = jnp.dot(acc, w2b_ref[...], preferred_element_type=jnp.float32)
    o_ref[...] = out.astype(o_ref.dtype)


# ---------------- one-time weight packing (model init; NOT on the per-call path) ----------------
def sepconv_prepare(w1, dwk, w2, scale, bias):
    # w1: (DIM, MED)  pwconv1 weight (already transposed vs torch's (MED, DIM))
    # dwk: (7, 7, MED) depthwise kernel channels-last
    # w2: (MED, DIM)  pwconv2 weight (transposed vs torch's (DIM, MED))
    # Block-diagonal point-wise weights keep the toy DIM=16/MED=32 activations
    # lane-dense; at production channel counts use the natural (DIM, MED) weights.
    eye = jnp.eye(W, dtype=jnp.float32)
    w1b = jnp.einsum("uv,cm->ucvm", eye, w1).reshape(W * DIM, W * MED)
    w2b = jnp.einsum("vu,mc->vmuc", eye, w2).reshape(W * MED, W * DIM)

    # taps: row dw*8+dh holds k[dh, dw, :] tiled across W
    kp = jnp.transpose(dwk, (1, 0, 2))                        # (dw, dh, MED)
    kp = jnp.pad(kp, ((0, 0), (0, 8 - KSIZE), (0, 0)))        # (7, 8, MED)
    kp = jnp.tile(kp, (1, 1, W)).reshape(KSIZE * 8, W * MED)  # (56, 256)

    sb = jnp.concatenate([scale.reshape(1), bias.reshape(1)]).astype(jnp.float32)
    return w1b, kp, w2b, sb


# ---------------- per-call wrapper ----------------
@jax.jit
def sepconv_pallas(x, w1b, kp, w2b, sb):
    # x: (B, H, W, DIM) -> lane-dense (B*H, W*DIM); grid over batch.
    x2 = x.reshape(B * H, W * DIM)

    out2 = pl.pallas_call(
        sepconv_kernel,
        out_shape=jax.ShapeDtypeStruct((B * H, W * DIM), x.dtype),
        grid_spec=pltpu.PrefetchScalarGridSpec(
            num_scalar_prefetch=0,
            grid=(B,),
            in_specs=[
                pl.BlockSpec((H, W * DIM), lambda b: (b, 0)),          # x tile (pipelined)
                pl.BlockSpec((W * DIM, W * MED), lambda b: (0, 0)),    # w1b (resident)
                pl.BlockSpec((KSIZE * 8, W * MED), lambda b: (0, 0)),  # taps (resident)
                pl.BlockSpec((W * MED, W * DIM), lambda b: (0, 0)),    # w2b (resident)
                pl.BlockSpec(memory_space=pltpu.MemorySpace.SMEM),     # StarReLU scale/bias
            ],
            out_specs=pl.BlockSpec((H, W * DIM), lambda b: (b, 0)),
            scratch_shapes=[pltpu.VMEM((HP, WP * MED), jnp.float32)],
        ),
        compiler_params=pltpu.CompilerParams(
            dimension_semantics=("parallel",)),   # both v7x TCs can take a batch step
    )(x2, w1b, kp, w2b, sb)

    return out2.reshape(B, H, W, DIM)


# ---------------- pure-JAX reference (for correctness check) ----------------
def sepconv_ref(x, w1, dwk, w2, scale, bias):
    y = x @ w1                                                  # pwconv1
    y = scale[0] * jnp.maximum(y, 0.0) ** 2 + bias[0]           # StarReLU
    y_nchw = jnp.transpose(y, (0, 3, 1, 2))
    k = jnp.transpose(dwk, (2, 0, 1))[:, None, :, :]            # (MED,1,7,7)
    z = lax.conv_general_dilated(
        y_nchw, k, window_strides=(1, 1), padding=[(PAD, PAD), (PAD, PAD)],
        feature_group_count=MED,
        dimension_numbers=("NCHW", "OIHW", "NCHW"))
    z = jnp.transpose(z, (0, 2, 3, 1))
    return z @ w2                                               # pwconv2


if __name__ == "__main__":
    key = jax.random.PRNGKey(0)
    kx, k1, kd, k2 = jax.random.split(key, 4)

    x = jax.random.normal(kx, (B, H, W, DIM), jnp.float32)
    # Parameters (shapes follow the torch module):
    #   pwconv1.weight (MED,DIM) -> stored transposed (DIM,MED)
    #   dwconv.weight  (MED,1,7,7) -> stored channels-last (7,7,MED)
    #   pwconv2.weight (DIM,MED) -> stored transposed (MED,DIM)
    w1 = jax.random.normal(k1, (DIM, MED), jnp.float32) * 0.1
    dwk = jax.random.normal(kd, (KSIZE, KSIZE, MED), jnp.float32) * 0.1
    w2 = jax.random.normal(k2, (MED, DIM), jnp.float32) * 0.1
    scale = jnp.ones((1,), jnp.float32)    # StarReLU scale_value = 1.0
    bias = jnp.zeros((1,), jnp.float32)    # StarReLU bias_value  = 0.0

    # One-time packing (model init path), then the per-call kernel.
    w1b, kp, w2b, sb = jax.block_until_ready(sepconv_prepare(w1, dwk, w2, scale, bias))

    out = jax.block_until_ready(sepconv_pallas(x, w1b, kp, w2b, sb))
    ref = sepconv_ref(x, w1, dwk, w2, scale, bias)

    assert out.shape == (B, H, W, DIM)
    assert jnp.allclose(out, ref, atol=1e-4, rtol=1e-4), "mismatch vs JAX reference"

    print("KERNEL_OK")
</pallas_src>

<mosaic_0001>
module attributes {stable_mosaic.version = 11 : i64} {
  func.func @sepconv_kernel(%arg0: i32, %arg1: memref<8x128xf32, #tpu.memory_space<vmem>>, %arg2: memref<128x256xf32, #tpu.memory_space<vmem>>, %arg3: memref<56x256xf32, #tpu.memory_space<vmem>>, %arg4: memref<256x128xf32, #tpu.memory_space<vmem>>, %arg5: memref<2xf32, #tpu.memory_space<smem>>, %arg6: memref<8x128xf32, #tpu.memory_space<vmem>>, %arg7: memref<24x512xf32, #tpu.memory_space<vmem>>) attributes {dimension_semantics = [#tpu.dimension_semantics<parallel>], iteration_bounds = array<i64: 2>, scalar_prefetch = 0 : i64, scratch_operands = 1 : i64, tpu.core_type = #tpu.core_type<tc>, window_params = [{transform_indices = @transform_0, window_bounds = array<i64: 8, 128>}, {pipeline_mode = #tpu.pipeline_mode<synchronous>, transform_indices = @transform_1, window_bounds = array<i64: 128, 256>}, {pipeline_mode = #tpu.pipeline_mode<synchronous>, transform_indices = @transform_2, window_bounds = array<i64: 56, 256>}, {pipeline_mode = #tpu.pipeline_mode<synchronous>, transform_indices = @transform_3, window_bounds = array<i64: 256, 128>}, {transform_indices = @transform_4, window_bounds = array<i64: 2>}, {transform_indices = @transform_5, window_bounds = array<i64: 8, 128>}]} {
    %c0 = arith.constant 0 : index
    %c0_0 = arith.constant 0 : index
    %0 = vector.load %arg1[%c0, %c0_0] : memref<8x128xf32, #tpu.memory_space<vmem>>, vector<8x128xf32>
    %c0_1 = arith.constant 0 : index
    %c0_2 = arith.constant 0 : index
    %1 = vector.load %arg2[%c0_1, %c0_2] : memref<128x256xf32, #tpu.memory_space<vmem>>, vector<128x256xf32>
    %cst = arith.constant dense<0.000000e+00> : vector<8x256xf32>
    %2 = tpu.matmul %0, %1, %cst {dimension_numbers = #tpu.dot_dimension_numbers<[1], [0], [0], [1], [0, 0, 1, 1], [], []>} : vector<8x128xf32>, vector<128x256xf32>, vector<8x256xf32> -> vector<8x256xf32>
    %cst_3 = arith.constant 0.000000e+00 : f32
    %3 = vector.broadcast %cst_3 : f32 to vector<8x256xf32>
    %4 = arith.maximumf %2, %3 : vector<8x256xf32>
    %c0_4 = arith.constant 0 : index
    %5 = memref.load %arg5[%c0_4] : memref<2xf32, #tpu.memory_space<smem>>
    %6 = arith.mulf %4, %4 : vector<8x256xf32>
    %7 = vector.broadcast %5 : f32 to vector<8x256xf32>
    %8 = arith.mulf %7, %6 : vector<8x256xf32>
    %c1 = arith.constant 1 : index
    %9 = memref.load %arg5[%c1] : memref<2xf32, #tpu.memory_space<smem>>
    %10 = vector.broadcast %9 : f32 to vector<8x256xf32>
    %11 = arith.addf %8, %10 : vector<8x256xf32>
    %cst_5 = arith.constant 0.000000e+00 : f32
    %12 = vector.broadcast %cst_5 : f32 to vector<3x512xf32>
    %c5 = arith.constant 5 : index
    %c0_6 = arith.constant 0 : index
    %13 = vector.load %arg7[%c5, %c0_6] : memref<24x512xf32, #tpu.memory_space<vmem>>, vector<3x512xf32>
    tpu.vector_store %arg7[%c5, %c0_6], %12 {strides = array<i32>} : memref<24x512xf32, #tpu.memory_space<vmem>>, vector<3x512xf32>,
    %c16 = arith.constant 16 : index
    %c0_7 = arith.constant 0 : index
    %14 = vector.load %arg7[%c16, %c0_7] : memref<24x512xf32, #tpu.memory_space<vmem>>, vector<3x512xf32>
    tpu.vector_store %arg7[%c16, %c0_7], %12 {strides = array<i32>} : memref<24x512xf32, #tpu.memory_space<vmem>>, vector<3x512xf32>,
    %cst_8 = arith.constant 0.000000e+00 : f32
    %15 = vector.broadcast %cst_8 : f32 to vector<8x128xf32>
    %c8 = arith.constant 8 : index
    %c0_9 = arith.constant 0 : index
    %16 = vector.load %arg7[%c8, %c0_9] : memref<24x512xf32, #tpu.memory_space<vmem>>, vector<8x128xf32>
    tpu.vector_store %arg7[%c8, %c0_9], %15 {strides = array<i32>} : memref<24x512xf32, #tpu.memory_space<vmem>>, vector<8x128xf32>,
    %c8_10 = arith.constant 8 : index
    %c384 = arith.constant 384 : index
    %17 = vector.load %arg7[%c8_10, %c384] : memref<24x512xf32, #tpu.memory_space<vmem>>, vector<8x128xf32>
    tpu.vector_store %arg7[%c8_10, %c384], %15 {strides = array<i32>} : memref<24x512xf32, #tpu.memory_space<vmem>>, vector<8x128xf32>,
    %c8_11 = arith.constant 8 : index
    %c128 = arith.constant 128 : index
    %18 = vector.load %arg7[%c8_11, %c128] : memref<24x512xf32, #tpu.memory_space<vmem>>, vector<8x256xf32>
    tpu.vector_store %arg7[%c8_11, %c128], %11 {strides = array<i32>} : memref<24x512xf32, #tpu.memory_space<vmem>>, vector<8x256xf32>,
    %cst_12 = arith.constant 0.000000e+00 : f32
    %19 = vector.broadcast %cst_12 : f32 to vector<8x256xf32>
    %cst_13 = arith.constant 0.000000e+00 : f32
    %20 = vector.broadcast %cst_13 : f32 to vector<8x256xf32>
    %cst_14 = arith.constant 0.000000e+00 : f32
    %21 = vector.broadcast %cst_14 : f32 to vector<8x256xf32>
    %cst_15 = arith.constant 0.000000e+00 : f32
    %22 = vector.broadcast %cst_15 : f32 to vector<8x256xf32>
    %c5_16 = arith.constant 5 : index
    %c32 = arith.constant 32 : index
    %23 = vector.load %arg7[%c5_16, %c32] : memref<24x512xf32, #tpu.memory_space<vmem>>, vector<8x256xf32>
    %c0_17 = arith.constant 0 : index
    %c0_18 = arith.constant 0 : index
    %24 = vector.load %arg3[%c0_17, %c0_18] : memref<56x256xf32, #tpu.memory_space<vmem>>, vector<1x256xf32>
    %25 = vector.broadcast %24 : vector<1x256xf32> to vector<8x256xf32>
    %26 = arith.mulf %23, %25 : vector<8x256xf32>
    %27 = arith.addf %19, %26 : vector<8x256xf32>
    %c6 = arith.constant 6 : index
    %c32_19 = arith.constant 32 : index
    %28 = vector.load %arg7[%c6, %c32_19] : memref<24x512xf32, #tpu.memory_space<vmem>>, vector<8x256xf32>
    %c1_20 = arith.constant 1 : index
    %c0_21 = arith.constant 0 : index
    %29 = vector.load %arg3[%c1_20, %c0_21] : memref<56x256xf32, #tpu.memory_space<vmem>>, vector<1x256xf32>
    %30 = vector.broadcast %29 : vector<1x256xf32> to vector<8x256xf32>
    %31 = arith.mulf %28, %30 : vector<8x256xf32>
    %32 = arith.addf %20, %31 : vector<8x256xf32>
    %c7 = arith.constant 7 : index
    %c32_22 = arith.constant 32 : index
    %33 = vector.load %arg7[%c7, %c32_22] : memref<24x512xf32, #tpu.memory_space<vmem>>, vector<8x256xf32>
    %c2 = arith.constant 2 : index
    %c0_23 = arith.constant 0 : index
    %34 = vector.load %arg3[%c2, %c0_23] : memref<56x256xf32, #tpu.memory_space<vmem>>, vector<1x256xf32>
    %35 = vector.broadcast %34 : vector<1x256xf32> to vector<8x256xf32>
    %36 = arith.mulf %33, %35 : vector<8x256xf32>
    %37 = arith.addf %21, %36 : vector<8x256xf32>
    %c8_24 = arith.constant 8 : index
    %c32_25 = arith.constant 32 : index
    %38 = vector.load %arg7[%c8_24, %c32_25] : memref<24x512xf32, #tpu.memory_space<vmem>>, vector<8x256xf32>
    %c3 = arith.constant 3 : index
    %c0_26 = arith.constant 0 : index
    %39 = vector.load %arg3[%c3, %c0_26] : memref<56x256xf32, #tpu.memory_space<vmem>>, vector<1x256xf32>
    %40 = vector.broadcast %39 : vector<1x256xf32> to vector<8x256xf32>
    %41 = arith.mulf %38, %40 : vector<8x256xf32>
    %42 = arith.addf %22, %41 : vector<8x256xf32>
    %c9 = arith.constant 9 : index
    %c32_27 = arith.constant 32 : index
    %43 = vector.load %arg7[%c9, %c32_27] : memref<24x512xf32, #tpu.memory_space<vmem>>, vector<8x256xf32>
    %c4 = arith.constant 4 : index
    %c0_28 = arith.constant 0 : index
    %44 = vector.load %arg3[%c4, %c0_28] : memref<56x256xf32, #tpu.memory_space<vmem>>, vector<1x256xf32>
    %45 = vector.broadcast %44 : vector<1x256xf32> to vector<8x256xf32>
    %46 = arith.mulf %43, %45 : vector<8x256xf32>
    %47 = arith.addf %27, %46 : vector<8x256xf32>
    %c10 = arith.constant 10 : index
    %c32_29 = arith.constant 32 : index
    %48 = vector.load %arg7[%c10, %c32_29] : memref<24x512xf32, #tpu.memory_space<vmem>>, vector<8x256xf32>
    %c5_30 = arith.constant 5 : index
    %c0_31 = arith.constant 0 : index
    %49 = vector.load %arg3[%c5_30, %c0_31] : memref<56x256xf32, #tpu.memory_space<vmem>>, vector<1x256xf32>
    %50 = vector.broadcast %49 : vector<1x256xf32> to vector<8x256xf32>
    %51 = arith.mulf %48, %50 : vector<8x256xf32>
    %52 = arith.addf %32, %51 : vector<8x256xf32>
    %c11 = arith.constant 11 : index
    %c32_32 = arith.constant 32 : index
    %53 = vector.load %arg7[%c11, %c32_32] : memref<24x512xf32, #tpu.memory_space<vmem>>, vector<8x256xf32>
    %c6_33 = arith.constant 6 : index
    %c0_34 = arith.constant 0 : index
    %54 = vector.load %arg3[%c6_33, %c0_34] : memref<56x256xf32, #tpu.memory_space<vmem>>, vector<1x256xf32>
    %55 = vector.broadcast %54 : vector<1x256xf32> to vector<8x256xf32>
    %56 = arith.mulf %53, %55 : vector<8x256xf32>
    %57 = arith.addf %37, %56 : vector<8x256xf32>
    %c5_35 = arith.constant 5 : index
    %c64 = arith.constant 64 : index
    %58 = vector.load %arg7[%c5_35, %c64] : memref<24x512xf32, #tpu.memory_space<vmem>>, vector<8x256xf32>
    %c8_36 = arith.constant 8 : index
    %c0_37 = arith.constant 0 : index
    %59 = vector.load %arg3[%c8_36, %c0_37] : memref<56x256xf32, #tpu.memory_space<vmem>>, vector<1x256xf32>
    %60 = vector.broadcast %59 : vector<1x256xf32> to vector<8x256xf32>
    %61 = arith.mulf %58, %60 : vector<8x256xf32>
    %62 = arith.addf %42, %61 : vector<8x256xf32>
    %c6_38 = arith.constant 6 : index
    %c64_39 = arith.constant 64 : index
    %63 = vector.load %arg7[%c6_38, %c64_39] : memref<24x512xf32, #tpu.memory_space<vmem>>, vector<8x256xf32>
    %c9_40 = arith.constant 9 : index
    %c0_41 = arith.constant 0 : index
    %64 = vector.load %arg3[%c9_40, %c0_41] : memref<56x256xf32, #tpu.memory_space<vmem>>, vector<1x256xf32>
    %65 = vector.broadcast %64 : vector<1x256xf32> to vector<8x256xf32>
    %66 = arith.mulf %63, %65 : vector<8x256xf32>
    %67 = arith.addf %47, %66 : vector<8x256xf32>
    %c7_42 = arith.constant 7 : index
    %c64_43 = arith.constant 64 : index
    %68 = vector.load %arg7[%c7_42, %c64_43] : memref<24x512xf32, #tpu.memory_space<vmem>>, vector<8x256xf32>
    %c10_44 = arith.constant 10 : index
    %c0_45 = arith.constant 0 : index
    %69 = vector.load %arg3[%c10_44, %c0_45] : memref<56x256xf32, #tpu.memory_space<vmem>>, vector<1x256xf32>
    %70 = vector.broadcast %69 : vector<1x256xf32> to vector<8x256xf32>
    %71 = arith.mulf %68, %70 : vector<8x256xf32>
    %72 = arith.addf %52, %71 : vector<8x256xf32>
    %c8_46 = arith.constant 8 : index
    %c64_47 = arith.constant 64 : index
    %73 = vector.load %arg7[%c8_46, %c64_47] : memref<24x512xf32, #tpu.memory_space<vmem>>, vector<8x256xf32>
    %c11_48 = arith.constant 11 : index
    %c0_49 = arith.constant 0 : index
    %74 = vector.load %arg3[%c11_48, %c0_49] : memref<56x256xf32, #tpu.memory_space<vmem>>, vector<1x256xf32>
    %75 = vector.broadcast %74 : vector<1x256xf32> to vector<8x256xf32>
    %76 = arith.mulf %73, %75 : vector<8x256xf32>
    %77 = arith.addf %57, %76 : vector<8x256xf32>
    %c9_50 = arith.constant 9 : index
    %c64_51 = arith.constant 64 : index
    %78 = vector.load %arg7[%c9_50, %c64_51] : memref<24x512xf32, #tpu.memory_space<vmem>>, vector<8x256xf32>
    %c12 = arith.constant 12 : index
    %c0_52 = arith.constant 0 : index
    %79 = vector.load %arg3[%c12, %c0_52] : memref<56x256xf32, #tpu.memory_space<vmem>>, vector<1x256xf32>
    %80 = vector.broadcast %79 : vector<1x256xf32> to vector<8x256xf32>
    %81 = arith.mulf %78, %80 : vector<8x256xf32>
    %82 = arith.addf %62, %81 : vector<8x256xf32>
    %c10_53 = arith.constant 10 : index
    %c64_54 = arith.constant 64 : index
    %83 = vector.load %arg7[%c10_53, %c64_54] : memref<24x512xf32, #tpu.memory_space<vmem>>, vector<8x256xf32>
    %c13 = arith.constant 13 : index
    %c0_55 = arith.constant 0 : index
    %84 = vector.load %arg3[%c13, %c0_55] : memref<56x256xf32, #tpu.memory_space<vmem>>, vector<1x256xf32>
    %85 = vector.broadcast %84 : vector<1x256xf32> to vector<8x256xf32>
    %86 = arith.mulf %83, %85 : vector<8x256xf32>
    %87 = arith.addf %67, %86 : vector<8x256xf32>
    %c11_56 = arith.constant 11 : index
    %c64_57 = arith.constant 64 : index
    %88 = vector.load %arg7[%c11_56, %c64_57] : memref<24x512xf32, #tpu.memory_space<vmem>>, vector<8x256xf32>
    %c14 = arith.constant 14 : index
    %c0_58 = arith.constant 0 : index
    %89 = vector.load %arg3[%c14, %c0_58] : memref<56x256xf32, #tpu.memory_space<vmem>>, vector<1x256xf32>
    %90 = vector.broadcast %89 : vector<1x256xf32> to vector<8x256xf32>
    %91 = arith.mulf %88, %90 : vector<8x256xf32>
    %92 = arith.addf %72, %91 : vector<8x256xf32>
    %c5_59 = arith.constant 5 : index
    %c96 = arith.constant 96 : index
    %93 = vector.load %arg7[%c5_59, %c96] : memref<24x512xf32, #tpu.memory_space<vmem>>, vector<8x256xf32>
    %c16_60 = arith.constant 16 : index
    %c0_61 = arith.constant 0 : index
    %94 = vector.load %arg3[%c16_60, %c0_61] : memref<56x256xf32, #tpu.memory_space<vmem>>, vector<1x256xf32>
    %95 = vector.broadcast %94 : vector<1x256xf32> to vector<8x256xf32>
    %96 = arith.mulf %93, %95 : vector<8x256xf32>
    %97 = arith.addf %77, %96 : vector<8x256xf32>
    %c6_62 = arith.constant 6 : index
    %c96_63 = arith.constant 96 : index
    %98 = vector.load %arg7[%c6_62, %c96_63] : memref<24x512xf32, #tpu.memory_space<vmem>>, vector<8x256xf32>
    %c17 = arith.constant 17 : index
    %c0_64 = arith.constant 0 : index
    %99 = vector.load %arg3[%c17, %c0_64] : memref<56x256xf32, #tpu.memory_space<vmem>>, vector<1x256xf32>
    %100 = vector.broadcast %99 : vector<1x256xf32> to vector<8x256xf32>
    %101 = arith.mulf %98, %100 : vector<8x256xf32>
    %102 = arith.addf %82, %101 : vector<8x256xf32>
    %c7_65 = arith.constant 7 : index
    %c96_66 = arith.constant 96 : index
    %103 = vector.load %arg7[%c7_65, %c96_66] : memref<24x512xf32, #tpu.memory_space<vmem>>, vector<8x256xf32>
    %c18 = arith.constant 18 : index
    %c0_67 = arith.constant 0 : index
    %104 = vector.load %arg3[%c18, %c0_67] : memref<56x256xf32, #tpu.memory_space<vmem>>, vector<1x256xf32>
    %105 = vector.broadcast %104 : vector<1x256xf32> to vector<8x256xf32>
    %106 = arith.mulf %103, %105 : vector<8x256xf32>
    %107 = arith.addf %87, %106 : vector<8x256xf32>
    %c8_68 = arith.constant 8 : index
    %c96_69 = arith.constant 96 : index
    %108 = vector.load %arg7[%c8_68, %c96_69] : memref<24x512xf32, #tpu.memory_space<vmem>>, vector<8x256xf32>
    %c19 = arith.constant 19 : index
    %c0_70 = arith.constant 0 : index
    %109 = vector.load %arg3[%c19, %c0_70] : memref<56x256xf32, #tpu.memory_space<vmem>>, vector<1x256xf32>
    %110 = vector.broadcast %109 : vector<1x256xf32> to vector<8x256xf32>
    %111 = arith.mulf %108, %110 : vector<8x256xf32>
    %112 = arith.addf %92, %111 : vector<8x256xf32>
    %c9_71 = arith.constant 9 : index
    %c96_72 = arith.constant 96 : index
    %113 = vector.load %arg7[%c9_71, %c96_72] : memref<24x512xf32, #tpu.memory_space<vmem>>, vector<8x256xf32>
    %c20 = arith.constant 20 : index
    %c0_73 = arith.constant 0 : index
    %114 = vector.load %arg3[%c20, %c0_73] : memref<56x256xf32, #tpu.memory_space<vmem>>, vector<1x256xf32>
    %115 = vector.broadcast %114 : vector<1x256xf32> to vector<8x256xf32>
    %116 = arith.mulf %113, %115 : vector<8x256xf32>
    %117 = arith.addf %97, %116 : vector<8x256xf32>
    %c10_74 = arith.constant 10 : index
    %c96_75 = arith.constant 96 : index
    %118 = vector.load %arg7[%c10_74, %c96_75] : memref<24x512xf32, #tpu.memory_space<vmem>>, vector<8x256xf32>
    %c21 = arith.constant 21 : index
    %c0_76 = arith.constant 0 : index
    %119 = vector.load %arg3[%c21, %c0_76] : memref<56x256xf32, #tpu.memory_space<vmem>>, vector<1x256xf32>
    %120 = vector.broadcast %119 : vector<1x256xf32> to vector<8x256xf32>
    %121 = arith.mulf %118, %120 : vector<8x256xf32>
    %122 = arith.addf %102, %121 : vector<8x256xf32>
    %c11_77 = arith.constant 11 : index
    %c96_78 = arith.constant 96 : index
    %123 = vector.load %arg7[%c11_77, %c96_78] : memref<24x512xf32, #tpu.memory_space<vmem>>, vector<8x256xf32>
    %c22 = arith.constant 22 : index
    %c0_79 = arith.constant 0 : index
    %124 = vector.load %arg3[%c22, %c0_79] : memref<56x256xf32, #tpu.memory_space<vmem>>, vector<1x256xf32>
    %125 = vector.broadcast %124 : vector<1x256xf32> to vector<8x256xf32>
    %126 = arith.mulf %123, %125 : vector<8x256xf32>
    %127 = arith.addf %107, %126 : vector<8x256xf32>
    %c5_80 = arith.constant 5 : index
    %c128_81 = arith.constant 128 : index
    %128 = vector.load %arg7[%c5_80, %c128_81] : memref<24x512xf32, #tpu.memory_space<vmem>>, vector<8x256xf32>
    %c24 = arith.constant 24 : index
    %c0_82 = arith.constant 0 : index
    %129 = vector.load %arg3[%c24, %c0_82] : memref<56x256xf32, #tpu.memory_space<vmem>>, vector<1x256xf32>
    %130 = vector.broadcast %129 : vector<1x256xf32> to vector<8x256xf32>
    %131 = arith.mulf %128, %130 : vector<8x256xf32>
    %132 = arith.addf %112, %131 : vector<8x256xf32>
    %c6_83 = arith.constant 6 : index
    %c128_84 = arith.constant 128 : index
    %133 = vector.load %arg7[%c6_83, %c128_84] : memref<24x512xf32, #tpu.memory_space<vmem>>, vector<8x256xf32>
    %c25 = arith.constant 25 : index
    %c0_85 = arith.constant 0 : index
    %134 = vector.load %arg3[%c25, %c0_85] : memref<56x256xf32, #tpu.memory_space<vmem>>, vector<1x256xf32>
    %135 = vector.broadcast %134 : vector<1x256xf32> to vector<8x256xf32>
    %136 = arith.mulf %133, %135 : vector<8x256xf32>
    %137 = arith.addf %117, %136 : vector<8x256xf32>
    %c7_86 = arith.constant 7 : index
    %c128_87 = arith.constant 128 : index
    %138 = vector.load %arg7[%c7_86, %c128_87] : memref<24x512xf32, #tpu.memory_space<vmem>>, vector<8x256xf32>
    %c26 = arith.constant 26 : index
    %c0_88 = arith.constant 0 : index
    %139 = vector.load %arg3[%c26, %c0_88] : memref<56x256xf32, #tpu.memory_space<vmem>>, vector<1x256xf32>
    %140 = vector.broadcast %139 : vector<1x256xf32> to vector<8x256xf32>
    %141 = arith.mulf %138, %140 : vector<8x256xf32>
    %142 = arith.addf %122, %141 : vector<8x256xf32>
    %c8_89 = arith.constant 8 : index
    %c128_90 = arith.constant 128 : index
    %143 = vector.load %arg7[%c8_89, %c128_90] : memref<24x512xf32, #tpu.memory_space<vmem>>, vector<8x256xf32>
    %c27 = arith.constant 27 : index
    %c0_91 = arith.constant 0 : index
    %144 = vector.load %arg3[%c27, %c0_91] : memref<56x256xf32, #tpu.memory_space<vmem>>, vector<1x256xf32>
    %145 = vector.broadcast %144 : vector<1x256xf32> to vector<8x256xf32>
    %146 = arith.mulf %143, %145 : vector<8x256xf32>
    %147 = arith.addf %127, %146 : vector<8x256xf32>
    %c9_92 = arith.constant 9 : index
    %c128_93 = arith.constant 128 : index
    %148 = vector.load %arg7[%c9_92, %c128_93] : memref<24x512xf32, #tpu.memory_space<vmem>>, vector<8x256xf32>
    %c28 = arith.constant 28 : index
    %c0_94 = arith.constant 0 : index
    %149 = vector.load %arg3[%c28, %c0_94] : memref<56x256xf32, #tpu.memory_space<vmem>>, vector<1x256xf32>
    %150 = vector.broadcast %149 : vector<1x256xf32> to vector<8x256xf32>
    %151 = arith.mulf %148, %150 : vector<8x256xf32>
    %152 = arith.addf %132, %151 : vector<8x256xf32>
    %c10_95 = arith.constant 10 : index
    %c128_96 = arith.constant 128 : index
    %153 = vector.load %arg7[%c10_95, %c128_96] : memref<24x512xf32, #tpu.memory_space<vmem>>, vector<8x256xf32>
    %c29 = arith.constant 29 : index
    %c0_97 = arith.constant 0 : index
    %154 = vector.load %arg3[%c29, %c0_97] : memref<56x256xf32, #tpu.memory_space<vmem>>, vector<1x256xf32>
    %155 = vector.broadcast %154 : vector<1x256xf32> to vector<8x256xf32>
    %156 = arith.mulf %153, %155 : vector<8x256xf32>
    %157 = arith.addf %137, %156 : vector<8x256xf32>
    %c11_98 = arith.constant 11 : index
    %c128_99 = arith.constant 128 : index
    %158 = vector.load %arg7[%c11_98, %c128_99] : memref<24x512xf32, #tpu.memory_space<vmem>>, vector<8x256xf32>
    %c30 = arith.constant 30 : index
    %c0_100 = arith.constant 0 : index
    %159 = vector.load %arg3[%c30, %c0_100] : memref<56x256xf32, #tpu.memory_space<vmem>>, vector<1x256xf32>
    %160 = vector.broadcast %159 : vector<1x256xf32> to vector<8x256xf32>
    %161 = arith.mulf %158, %160 : vector<8x256xf32>
    %162 = arith.addf %142, %161 : vector<8x256xf32>
    %c5_101 = arith.constant 5 : index
    %c160 = arith.constant 160 : index
    %163 = vector.load %arg7[%c5_101, %c160] : memref<24x512xf32, #tpu.memory_space<vmem>>, vector<8x256xf32>
    %c32_102 = arith.constant 32 : index
    %c0_103 = arith.constant 0 : index
    %164 = vector.load %arg3[%c32_102, %c0_103] : memref<56x256xf32, #tpu.memory_space<vmem>>, vector<1x256xf32>
    %165 = vector.broadcast %164 : vector<1x256xf32> to vector<8x256xf32>
    %166 = arith.mulf %163, %165 : vector<8x256xf32>
    %167 = arith.addf %147, %166 : vector<8x256xf32>
    %c6_104 = arith.constant 6 : index
    %c160_105 = arith.constant 160 : index
    %168 = vector.load %arg7[%c6_104, %c160_105] : memref<24x512xf32, #tpu.memory_space<vmem>>, vector<8x256xf32>
    %c33 = arith.constant 33 : index
    %c0_106 = arith.constant 0 : index
    %169 = vector.load %arg3[%c33, %c0_106] : memref<56x256xf32, #tpu.memory_space<vmem>>, vector<1x256xf32>
    %170 = vector.broadcast %169 : vector<1x256xf32> to vector<8x256xf32>
    %171 = arith.mulf %168, %170 : vector<8x256xf32>
    %172 = arith.addf %152, %171 : vector<8x256xf32>
    %c7_107 = arith.constant 7 : index
    %c160_108 = arith.constant 160 : index
    %173 = vector.load %arg7[%c7_107, %c160_108] : memref<24x512xf32, #tpu.memory_space<vmem>>, vector<8x256xf32>
    %c34 = arith.constant 34 : index
    %c0_109 = arith.constant 0 : index
    %174 = vector.load %arg3[%c34, %c0_109] : memref<56x256xf32, #tpu.memory_space<vmem>>, vector<1x256xf32>
    %175 = vector.broadcast %174 : vector<1x256xf32> to vector<8x256xf32>
    %176 = arith.mulf %173, %175 : vector<8x256xf32>
    %177 = arith.addf %157, %176 : vector<8x256xf32>
    %c8_110 = arith.constant 8 : index
    %c160_111 = arith.constant 160 : index
    %178 = vector.load %arg7[%c8_110, %c160_111] : memref<24x512xf32, #tpu.memory_space<vmem>>, vector<8x256xf32>
    %c35 = arith.constant 35 : index
    %c0_112 = arith.constant 0 : index
    %179 = vector.load %arg3[%c35, %c0_112] : memref<56x256xf32, #tpu.memory_space<vmem>>, vector<1x256xf32>
    %180 = vector.broadcast %179 : vector<1x256xf32> to vector<8x256xf32>
    %181 = arith.mulf %178, %180 : vector<8x256xf32>
    %182 = arith.addf %162, %181 : vector<8x256xf32>
    %c9_113 = arith.constant 9 : index
    %c160_114 = arith.constant 160 : index
    %183 = vector.load %arg7[%c9_113, %c160_114] : memref<24x512xf32, #tpu.memory_space<vmem>>, vector<8x256xf32>
    %c36 = arith.constant 36 : index
    %c0_115 = arith.constant 0 : index
    %184 = vector.load %arg3[%c36, %c0_115] : memref<56x256xf32, #tpu.memory_space<vmem>>, vector<1x256xf32>
    %185 = vector.broadcast %184 : vector<1x256xf32> to vector<8x256xf32>
    %186 = arith.mulf %183, %185 : vector<8x256xf32>
    %187 = arith.addf %167, %186 : vector<8x256xf32>
    %c10_116 = arith.constant 10 : index
    %c160_117 = arith.constant 160 : index
    %188 = vector.load %arg7[%c10_116, %c160_117] : memref<24x512xf32, #tpu.memory_space<vmem>>, vector<8x256xf32>
    %c37 = arith.constant 37 : index
    %c0_118 = arith.constant 0 : index
    %189 = vector.load %arg3[%c37, %c0_118] : memref<56x256xf32, #tpu.memory_space<vmem>>, vector<1x256xf32>
    %190 = vector.broadcast %189 : vector<1x256xf32> to vector<8x256xf32>
    %191 = arith.mulf %188, %190 : vector<8x256xf32>
    %192 = arith.addf %172, %191 : vector<8x256xf32>
    %c11_119 = arith.constant 11 : index
    %c160_120 = arith.constant 160 : index
    %193 = vector.load %arg7[%c11_119, %c160_120] : memref<24x512xf32, #tpu.memory_space<vmem>>, vector<8x256xf32>
    %c38 = arith.constant 38 : index
    %c0_121 = arith.constant 0 : index
    %194 = vector.load %arg3[%c38, %c0_121] : memref<56x256xf32, #tpu.memory_space<vmem>>, vector<1x256xf32>
    %195 = vector.broadcast %194 : vector<1x256xf32> to vector<8x256xf32>
    %196 = arith.mulf %193, %195 : vector<8x256xf32>
    %197 = arith.addf %177, %196 : vector<8x256xf32>
    %c5_122 = arith.constant 5 : index
    %c192 = arith.constant 192 : index
    %198 = vector.load %arg7[%c5_122, %c192] : memref<24x512xf32, #tpu.memory_space<vmem>>, vector<8x256xf32>
    %c40 = arith.constant 40 : index
    %c0_123 = arith.constant 0 : index
    %199 = vector.load %arg3[%c40, %c0_123] : memref<56x256xf32, #tpu.memory_space<vmem>>, vector<1x256xf32>
    %200 = vector.broadcast %199 : vector<1x256xf32> to vector<8x256xf32>
    %201 = arith.mulf %198, %200 : vector<8x256xf32>
    %202 = arith.addf %182, %201 : vector<8x256xf32>
    %c6_124 = arith.constant 6 : index
    %c192_125 = arith.constant 192 : index
    %203 = vector.load %arg7[%c6_124, %c192_125] : memref<24x512xf32, #tpu.memory_space<vmem>>, vector<8x256xf32>
    %c41 = arith.constant 41 : index
    %c0_126 = arith.constant 0 : index
    %204 = vector.load %arg3[%c41, %c0_126] : memref<56x256xf32, #tpu.memory_space<vmem>>, vector<1x256xf32>
    %205 = vector.broadcast %204 : vector<1x256xf32> to vector<8x256xf32>
    %206 = arith.mulf %203, %205 : vector<8x256xf32>
    %207 = arith.addf %187, %206 : vector<8x256xf32>
    %c7_127 = arith.constant 7 : index
    %c192_128 = arith.constant 192 : index
    %208 = vector.load %arg7[%c7_127, %c192_128] : memref<24x512xf32, #tpu.memory_space<vmem>>, vector<8x256xf32>
    %c42 = arith.constant 42 : index
    %c0_129 = arith.constant 0 : index
    %209 = vector.load %arg3[%c42, %c0_129] : memref<56x256xf32, #tpu.memory_space<vmem>>, vector<1x256xf32>
    %210 = vector.broadcast %209 : vector<1x256xf32> to vector<8x256xf32>
    %211 = arith.mulf %208, %210 : vector<8x256xf32>
    %212 = arith.addf %192, %211 : vector<8x256xf32>
    %c8_130 = arith.constant 8 : index
    %c192_131 = arith.constant 192 : index
    %213 = vector.load %arg7[%c8_130, %c192_131] : memref<24x512xf32, #tpu.memory_space<vmem>>, vector<8x256xf32>
    %c43 = arith.constant 43 : index
    %c0_132 = arith.constant 0 : index
    %214 = vector.load %arg3[%c43, %c0_132] : memref<56x256xf32, #tpu.memory_space<vmem>>, vector<1x256xf32>
    %215 = vector.broadcast %214 : vector<1x256xf32> to vector<8x256xf32>
    %216 = arith.mulf %213, %215 : vector<8x256xf32>
    %217 = arith.addf %197, %216 : vector<8x256xf32>
    %c9_133 = arith.constant 9 : index
    %c192_134 = arith.constant 192 : index
    %218 = vector.load %arg7[%c9_133, %c192_134] : memref<24x512xf32, #tpu.memory_space<vmem>>, vector<8x256xf32>
    %c44 = arith.constant 44 : index
    %c0_135 = arith.constant 0 : index
    %219 = vector.load %arg3[%c44, %c0_135] : memref<56x256xf32, #tpu.memory_space<vmem>>, vector<1x256xf32>
    %220 = vector.broadcast %219 : vector<1x256xf32> to vector<8x256xf32>
    %221 = arith.mulf %218, %220 : vector<8x256xf32>
    %222 = arith.addf %202, %221 : vector<8x256xf32>
    %c10_136 = arith.constant 10 : index
    %c192_137 = arith.constant 192 : index
    %223 = vector.load %arg7[%c10_136, %c192_137] : memref<24x512xf32, #tpu.memory_space<vmem>>, vector<8x256xf32>
    %c45 = arith.constant 45 : index
    %c0_138 = arith.constant 0 : index
    %224 = vector.load %arg3[%c45, %c0_138] : memref<56x256xf32, #tpu.memory_space<vmem>>, vector<1x256xf32>
    %225 = vector.broadcast %224 : vector<1x256xf32> to vector<8x256xf32>
    %226 = arith.mulf %223, %225 : vector<8x256xf32>
    %227 = arith.addf %207, %226 : vector<8x256xf32>
    %c11_139 = arith.constant 11 : index
    %c192_140 = arith.constant 192 : index
    %228 = vector.load %arg7[%c11_139, %c192_140] : memref<24x512xf32, #tpu.memory_space<vmem>>, vector<8x256xf32>
    %c46 = arith.constant 46 : index
    %c0_141 = arith.constant 0 : index
    %229 = vector.load %arg3[%c46, %c0_141] : memref<56x256xf32, #tpu.memory_space<vmem>>, vector<1x256xf32>
    %230 = vector.broadcast %229 : vector<1x256xf32> to vector<8x256xf32>
    %231 = arith.mulf %228, %230 : vector<8x256xf32>
    %232 = arith.addf %212, %231 : vector<8x256xf32>
    %c5_142 = arith.constant 5 : index
    %c224 = arith.constant 224 : index
    %233 = vector.load %arg7[%c5_142, %c224] : memref<24x512xf32, #tpu.memory_space<vmem>>, vector<8x256xf32>
    %c48 = arith.constant 48 : index
    %c0_143 = arith.constant 0 : index
    %234 = vector.load %arg3[%c48, %c0_143] : memref<56x256xf32, #tpu.memory_space<vmem>>, vector<1x256xf32>
    %235 = vector.broadcast %234 : vector<1x256xf32> to vector<8x256xf32>
    %236 = arith.mulf %233, %235 : vector<8x256xf32>
    %237 = arith.addf %217, %236 : vector<8x256xf32>
    %c6_144 = arith.constant 6 : index
    %c224_145 = arith.constant 224 : index
    %238 = vector.load %arg7[%c6_144, %c224_145] : memref<24x512xf32, #tpu.memory_space<vmem>>, vector<8x256xf32>
    %c49 = arith.constant 49 : index
    %c0_146 = arith.constant 0 : index
    %239 = vector.load %arg3[%c49, %c0_146] : memref<56x256xf32, #tpu.memory_space<vmem>>, vector<1x256xf32>
    %240 = vector.broadcast %239 : vector<1x256xf32> to vector<8x256xf32>
    %241 = arith.mulf %238, %240 : vector<8x256xf32>
    %242 = arith.addf %222, %241 : vector<8x256xf32>
    %c7_147 = arith.constant 7 : index
    %c224_148 = arith.constant 224 : index
    %243 = vector.load %arg7[%c7_147, %c224_148] : memref<24x512xf32, #tpu.memory_space<vmem>>, vector<8x256xf32>
    %c50 = arith.constant 50 : index
    %c0_149 = arith.constant 0 : index
    %244 = vector.load %arg3[%c50, %c0_149] : memref<56x256xf32, #tpu.memory_space<vmem>>, vector<1x256xf32>
    %245 = vector.broadcast %244 : vector<1x256xf32> to vector<8x256xf32>
    %246 = arith.mulf %243, %245 : vector<8x256xf32>
    %247 = arith.addf %227, %246 : vector<8x256xf32>
    %c8_150 = arith.constant 8 : index
    %c224_151 = arith.constant 224 : index
    %248 = vector.load %arg7[%c8_150, %c224_151] : memref<24x512xf32, #tpu.memory_space<vmem>>, vector<8x256xf32>
    %c51 = arith.constant 51 : index
    %c0_152 = arith.constant 0 : index
    %249 = vector.load %arg3[%c51, %c0_152] : memref<56x256xf32, #tpu.memory_space<vmem>>, vector<1x256xf32>
    %250 = vector.broadcast %249 : vector<1x256xf32> to vector<8x256xf32>
    %251 = arith.mulf %248, %250 : vector<8x256xf32>
    %252 = arith.addf %232, %251 : vector<8x256xf32>
    %c9_153 = arith.constant 9 : index
    %c224_154 = arith.constant 224 : index
    %253 = vector.load %arg7[%c9_153, %c224_154] : memref<24x512xf32, #tpu.memory_space<vmem>>, vector<8x256xf32>
    %c52 = arith.constant 52 : index
    %c0_155 = arith.constant 0 : index
    %254 = vector.load %arg3[%c52, %c0_155] : memref<56x256xf32, #tpu.memory_space<vmem>>, vector<1x256xf32>
    %255 = vector.broadcast %254 : vector<1x256xf32> to vector<8x256xf32>
    %256 = arith.mulf %253, %255 : vector<8x256xf32>
    %257 = arith.addf %237, %256 : vector<8x256xf32>
    %c10_156 = arith.constant 10 : index
    %c224_157 = arith.constant 224 : index
    %258 = vector.load %arg7[%c10_156, %c224_157] : memref<24x512xf32, #tpu.memory_space<vmem>>, vector<8x256xf32>
    %c53 = arith.constant 53 : index
    %c0_158 = arith.constant 0 : index
    %259 = vector.load %arg3[%c53, %c0_158] : memref<56x256xf32, #tpu.memory_space<vmem>>, vector<1x256xf32>
    %260 = vector.broadcast %259 : vector<1x256xf32> to vector<8x256xf32>
    %261 = arith.mulf %258, %260 : vector<8x256xf32>
    %262 = arith.addf %242, %261 : vector<8x256xf32>
    %c11_159 = arith.constant 11 : index
    %c224_160 = arith.constant 224 : index
    %263 = vector.load %arg7[%c11_159, %c224_160] : memref<24x512xf32, #tpu.memory_space<vmem>>, vector<8x256xf32>
    %c54 = arith.constant 54 : index
    %c0_161 = arith.constant 0 : index
    %264 = vector.load %arg3[%c54, %c0_161] : memref<56x256xf32, #tpu.memory_space<vmem>>, vector<1x256xf32>
    %265 = vector.broadcast %264 : vector<1x256xf32> to vector<8x256xf32>
    %266 = arith.mulf %263, %265 : vector<8x256xf32>
    %267 = arith.addf %247, %266 : vector<8x256xf32>
    %268 = arith.addf %267, %252 : vector<8x256xf32>
    %269 = arith.addf %257, %262 : vector<8x256xf32>
    %270 = arith.addf %268, %269 : vector<8x256xf32>
    %c0_162 = arith.constant 0 : index
    %c0_163 = arith.constant 0 : index
    %271 = vector.load %arg4[%c0_162, %c0_163] : memref<256x128xf32, #tpu.memory_space<vmem>>, vector<256x128xf32>
    %cst_164 = arith.constant dense<0.000000e+00> : vector<8x128xf32>
    %272 = tpu.matmul %270, %271, %cst_164 {dimension_numbers = #tpu.dot_dimension_numbers<[1], [0], [0], [1], [0, 0, 1, 1], [], []>} : vector<8x256xf32>, vector<256x128xf32>, vector<8x128xf32> -> vector<8x128xf32>
    %c0_165 = arith.constant 0 : index
    %c0_166 = arith.constant 0 : index
    %273 = vector.load %arg6[%c0_165, %c0_166] : memref<8x128xf32, #tpu.memory_space<vmem>>, vector<8x128xf32>
    tpu.vector_store %arg6[%c0_165, %c0_166], %272 {strides = array<i32>} : memref<8x128xf32, #tpu.memory_space<vmem>>, vector<8x128xf32>,
    return
  }
  func.func @transform_0(%arg0: i32) -> (i32, i32) {
    %c0_i32 = arith.constant 0 : i32
    %c0_i32_0 = arith.constant 0 : i32
    return %arg0, %c0_i32 : i32, i32
  }
  func.func @transform_1(%arg0: i32) -> (i32, i32) {
    %c0_i32 = arith.constant 0 : i32
    %c0_i32_0 = arith.constant 0 : i32
    %c0_i32_1 = arith.constant 0 : i32
    return %c0_i32, %c0_i32_0 : i32, i32
  }
  func.func @transform_2(%arg0: i32) -> (i32, i32) {
    %c0_i32 = arith.constant 0 : i32
    %c0_i32_0 = arith.constant 0 : i32
    %c0_i32_1 = arith.constant 0 : i32
    return %c0_i32, %c0_i32_0 : i32, i32
  }
  func.func @transform_3(%arg0: i32) -> (i32, i32) {
    %c0_i32 = arith.constant 0 : i32
    %c0_i32_0 = arith.constant 0 : i32
    %c0_i32_1 = arith.constant 0 : i32
    return %c0_i32, %c0_i32_0 : i32, i32
  }
  func.func @transform_4(%arg0: i32) -> i32 {
    %c0_i32 = arith.constant 0 : i32
    %c0_i32_0 = arith.constant 0 : i32
    return %c0_i32 : i32
  }
  func.func @transform_5(%arg0: i32) -> (i32, i32) {
    %c0_i32 = arith.constant 0 : i32
    %c0_i32_0 = arith.constant 0 : i32
    return %arg0, %c0_i32 : i32, i32
  }
}

</mosaic_0001>

<llo_original>
// kernel: sepconv_pallas.1
$region0: #{sepconv_pallas.1}
  #allocation0 [shape = 'u32[]', space=smem, size = 0x4, offset = 0x4, fixed_abs, tag = 'smem constant byte address 0x4 - core index']
  #allocation1 [shape = 'u32[144,128]{1,0:T(1,128)}', space=vmem, size = 0x12000, scoped, tag = 'internal scratch']
  #allocation2 [shape = 'f32[24,512]{1,0:T(8,128)}', space=vmem, size = 0xc000, scoped, tag = 'scratch operand']
  %s0 = inlined_call_operand.vmem [shape: f32[16,128], index: 0, kind: input, shape index: {}]
  %s1 = inlined_call_operand.hbm [shape: f32[128,256], index: 1, kind: input, shape index: {}]
  %s2 = inlined_call_operand.vmem [shape: f32[56,256], index: 2, kind: input, shape index: {}]
  %s3 = inlined_call_operand.hbm [shape: f32[256,128], index: 3, kind: input, shape index: {}]
  %s4 = inlined_call_operand.vmem [shape: f32[2], index: 4, kind: input, shape index: {}]
  %s5 = inlined_call_operand.vmem [shape: f32[16,128], index: 5, kind: output, shape index: {}]
  %s6 = sld [smem:[#allocation0]]
  $region65: #{sepconv_pallas.1} parent=0
    _
  %s8 = ssub.s32 1, %s6
  %s9 = scalar_select 0, %s8, %s6
  $region1: #{sepconv_pallas.1} parent=0
    #allocation3 [shape = 'u8[131072]{0}', space=vmem, size = 0x20000, scoped, tag = 'input window, operand 1, single buffered']
    #allocation4 [shape = 's32[2]{0}', space=sflag, size = 0x8, scoped, tag = 'scoped memory for sepconv_pallas.1']
    #allocation5 [shape = 's32[2]{0}', space=sflag, size = 0x8, scoped, tag = 'scoped memory for sepconv_pallas.1']
    #allocation6 [shape = 'u8[131072]{0}', space=vmem, size = 0x20000, scoped, tag = 'input window, operand 3, single buffered']
    #allocation7 [shape = 's32[1]{0}', space=sflag, size = 0x4, scoped, tag = 'scoped memory for sepconv_pallas.1']
    #allocation8 [shape = 'u8[512]{0}', space=smem, size = 0x200, scoped, tag = 'input window, operand 4, single buffered']
    %10 = vsyncpa [#allocation4], 0
    %11 = vsyncpa [#allocation7], 0
    %12 = vsyncpa [#allocation5], 0
    loop: start=0, step=1, limit=4
    $region2: #{sepconv_pallas.1} parent=1 // loop_pre_header
      _
    $region3: #{sepconv_pallas.1} parent=1 // loop_header
      %s14 = sphi 0, %s18
      %p15 = scmp.ge.s32.totalorder %s14, 4
      %s24 = sphi 0, %s26
      %s27 = sphi 0, %s24
      %s28 = sphi 0, %s27
      %s44 = sphi 0, %s28
      %s48 = sphi 0, %s48
      %s50 = sphi 0, %s48
      %s51 = sphi 0, %s50
      %s65 = sphi 0, %s51
      %s69 = sphi 0, %s69
      %s71 = sphi 0, %s69
      %s72 = sphi 0, %s71
      %s86 = sphi 0, %s72
      %s90 = sphi 0, %s90
      %s92 = sphi 0, %s90
      %s93 = sphi 0, %s92
      %s107 = sphi 0, %s93
      %s111 = sphi 0, %s111
      %s113 = sphi 0, %s111
      %s114 = sphi 0, %s113
      %s128 = sphi 0, %s114
      %s134 = sphi 0, %s136
      %s137 = sphi 0, %s134
      %s138 = sphi 0, %s137
      %s154 = sphi 0, %s138
    $region4: #{sepconv_pallas.1} parent=1 // loop_header_branch
      %17 = sbr.rel (%p15) target = $region8
    $region5: #{sepconv_pallas.1} parent=1 // loop_body
      %s19 = ssub.s32 %s14, 1
      %s20 = ssub.s32 %s14, 2
      %s21 = sadd.s32 %s14, 1
      %s22 = ssub.s32 %s14, %s21
      %p23 = scmp.eq.s32.totalorder %s22, 0
      %s25 = sadd.s32 %s24, 1
      %s26 = scalar_select %p23, %s24, %s25
      %p29 = pneg %p23
      %p30 = scmp.eq.s32.totalorder %s14, 1
      %p31 = por %p29, %p30
      %p32 = scmp.ne.s32.totalorder %s24, %s27
      %p33 = scmp.eq.s32.totalorder %s14, 0
      %p34 = por %p32, %p33
      %p35 = scmp.ne.s32.totalorder %s24, %s27
      %p36 = scmp.eq.s32.totalorder %s19, 1
      %p37 = por %p35, %p36
      %p38 = scmp.ne.s32.totalorder %s27, %s28
      %p39 = scmp.eq.s32.totalorder %s19, 0
      %p40 = por %p38, %p39
      %p41 = scmp.ne.s32.totalorder %s27, %s28
      %p42 = scmp.eq.s32.totalorder %s20, 1
      %p43 = por %p41, %p42
      %p45 = scmp.ne.s32.totalorder %s28, %s44
      %p46 = scmp.eq.s32.totalorder %s20, 0
      %p47 = por %p45, %p46
      %s49 = sadd.s32 %s48, 1
      %p52 = scmp.eq.s32.totalorder %s14, 1
      %p53 = scmp.ne.s32.totalorder %s48, %s50
      %p54 = scmp.eq.s32.totalorder %s14, 0
      %p55 = por %p53, %p54
      %p56 = scmp.ne.s32.totalorder %s48, %s50
      %p57 = scmp.eq.s32.totalorder %s19, 1
      %p58 = por %p56, %p57
      %p59 = scmp.ne.s32.totalorder %s50, %s51
      %p60 = scmp.eq.s32.totalorder %s19, 0
      %p61 = por %p59, %p60
      %p62 = scmp.ne.s32.totalorder %s50, %s51
      %p63 = scmp.eq.s32.totalorder %s20, 1
      %p64 = por %p62, %p63
      %p66 = scmp.ne.s32.totalorder %s51, %s65
      %p67 = scmp.eq.s32.totalorder %s20, 0
      %p68 = por %p66, %p67
      %s70 = sadd.s32 %s69, 1
      %p73 = scmp.eq.s32.totalorder %s14, 1
      %p74 = scmp.ne.s32.totalorder %s69, %s71
      %p75 = scmp.eq.s32.totalorder %s14, 0
      %p76 = por %p74, %p75
      %p77 = scmp.ne.s32.totalorder %s69, %s71
      %p78 = scmp.eq.s32.totalorder %s19, 1
      %p79 = por %p77, %p78
      %p80 = scmp.ne.s32.totalorder %s71, %s72
      %p81 = scmp.eq.s32.totalorder %s19, 0
      %p82 = por %p80, %p81
      %p83 = scmp.ne.s32.totalorder %s71, %s72
      %p84 = scmp.eq.s32.totalorder %s20, 1
      %p85 = por %p83, %p84
      %p87 = scmp.ne.s32.totalorder %s72, %s86
      %p88 = scmp.eq.s32.totalorder %s20, 0
      %p89 = por %p87, %p88
      %s91 = sadd.s32 %s90, 1
      %p94 = scmp.eq.s32.totalorder %s14, 1
      %p95 = scmp.ne.s32.totalorder %s90, %s92
      %p96 = scmp.eq.s32.totalorder %s14, 0
      %p97 = por %p95, %p96
      %p98 = scmp.ne.s32.totalorder %s90, %s92
      %p99 = scmp.eq.s32.totalorder %s19, 1
      %p100 = por %p98, %p99
      %p101 = scmp.ne.s32.totalorder %s92, %s93
      %p102 = scmp.eq.s32.totalorder %s19, 0
      %p103 = por %p101, %p102
      %p104 = scmp.ne.s32.totalorder %s92, %s93
      %p105 = scmp.eq.s32.totalorder %s20, 1
      %p106 = por %p104, %p105
      %p108 = scmp.ne.s32.totalorder %s93, %s107
      %p109 = scmp.eq.s32.totalorder %s20, 0
      %p110 = por %p108, %p109
      %s112 = sadd.s32 %s111, 1
      %p115 = scmp.eq.s32.totalorder %s14, 1
      %p116 = scmp.ne.s32.totalorder %s111, %s113
      %p117 = scmp.eq.s32.totalorder %s14, 0
      %p118 = por %p116, %p117
      %p119 = scmp.ne.s32.totalorder %s111, %s113
      %p120 = scmp.eq.s32.totalorder %s19, 1
      %p121 = por %p119, %p120
      %p122 = scmp.ne.s32.totalorder %s113, %s114
      %p123 = scmp.eq.s32.totalorder %s19, 0
      %p124 = por %p122, %p123
      %p125 = scmp.ne.s32.totalorder %s113, %s114
      %p126 = scmp.eq.s32.totalorder %s20, 1
      %p127 = por %p125, %p126
      %p129 = scmp.ne.s32.totalorder %s114, %s128
      %p130 = scmp.eq.s32.totalorder %s20, 0
      %p131 = por %p129, %p130
      %s132 = ssub.s32 %s14, %s21
      %p133 = scmp.eq.s32.totalorder %s132, 0
      %s135 = sadd.s32 %s134, 1
      %s136 = scalar_select %p133, %s134, %s135
      %p139 = pneg %p133
      %p140 = scmp.eq.s32.totalorder %s14, 1
      %p141 = por %p139, %p140
      %p142 = scmp.ne.s32.totalorder %s134, %s137
      %p143 = scmp.eq.s32.totalorder %s14, 0
      %p144 = por %p142, %p143
      %p145 = scmp.ne.s32.totalorder %s134, %s137
      %p146 = scmp.eq.s32.totalorder %s19, 1
      %p147 = por %p145, %p146
      %p148 = scmp.ne.s32.totalorder %s137, %s138
      %p149 = scmp.eq.s32.totalorder %s19, 0
      %p150 = por %p148, %p149
      %p151 = scmp.ne.s32.totalorder %s137, %s138
      %p152 = scmp.eq.s32.totalorder %s20, 1
      %p153 = por %p151, %p152
      %p155 = scmp.ne.s32.totalorder %s138, %s154
      %p156 = scmp.eq.s32.totalorder %s20, 0
      %p157 = por %p155, %p156
      %p158 = scmp.le.s32.totalorder 1, %s14
      %p159 = scmp.lt.s32.totalorder %s14, 3
      %p160 = pnand %p158, %p159
      %p161 = pneg %p160
      // Predicated region
      $region9: #{sepconv_pallas.1} parent=5 // pred_check
        _
      $region10: #{sepconv_pallas.1} parent=5 // pred_check_branch
        %163 = sbr.rel (%p160) target = $region12
      $region11: #{sepconv_pallas.1} parent=5 // pred_region
        %s164 = ssub.s32 %s14, 1
        // Predicated region
        $region13: #{sepconv_pallas.1} parent=11 // pred_check
          %p165 = pneg %p61
        $region14: #{sepconv_pallas.1} parent=11 // pred_check_branch
          %167 = sbr.rel (%p165) target = $region16
        $region15: #{sepconv_pallas.1} parent=11 // pred_region
          %s169 = ssub.s32 4096, 4096
          %170 = vsyncadd [#allocation4], %s169
          %s171 = sshll.u32 [#allocation3], 4
          %s172 = int_to_ptr.vmem [resolvable:$true] %s171
          %177 = dma.hbm_to_vmem [thread:$0]  %s1, 4096, %s172, [#allocation4], 256, 256, 16
        $region16: #{sepconv_pallas.1} parent=11 // pred_fallthru
          _
        // Predicated region
        $region17: #{sepconv_pallas.1} parent=11 // pred_check
          %p178 = pneg %p82
        $region18: #{sepconv_pallas.1} parent=11 // pred_check_branch
          %180 = sbr.rel (%p178) target = $region20
        $region19: #{sepconv_pallas.1} parent=11 // pred_region
          _
        $region20: #{sepconv_pallas.1} parent=11 // pred_fallthru
          _
        // Predicated region
        $region21: #{sepconv_pallas.1} parent=11 // pred_check
          %p181 = pneg %p103
        $region22: #{sepconv_pallas.1} parent=11 // pred_check_branch
          %183 = sbr.rel (%p181) target = $region24
        $region23: #{sepconv_pallas.1} parent=11 // pred_region
          %s185 = ssub.s32 4096, 4096
          %186 = vsyncadd [#allocation7], %s185
          %s187 = sshll.u32 [#allocation6], 4
          %s188 = int_to_ptr.vmem [resolvable:$true] %s187
          %193 = dma.hbm_to_vmem [thread:$0]  %s3, 4096, %s188, [#allocation7], 128, 128, 8
        $region24: #{sepconv_pallas.1} parent=11 // pred_fallthru
          _
        // Predicated region
        $region25: #{sepconv_pallas.1} parent=11 // pred_check
          %p194 = pneg %p124
        $region26: #{sepconv_pallas.1} parent=11 // pred_check_branch
          %196 = sbr.rel (%p194) target = $region28
        $region27: #{sepconv_pallas.1} parent=11 // pred_region
          %s198 = ssub.s32 16, 16
          %199 = vsyncadd [#allocation5], %s198
          %s201 = sshll.u32 %s4, 4
          %s202 = int_to_ptr.vmem [resolvable:$true] %s201
          %204 = dma.vmem_to_smem %s202, 16, [#allocation8], [#allocation5]
        $region28: #{sepconv_pallas.1} parent=11 // pred_fallthru
          _
      $region12: #{sepconv_pallas.1} parent=5 // pred_fallthru
        _
      %p205 = scmp.lt.s32.totalorder %s14, 2
      // Predicated region
      $region29: #{sepconv_pallas.1} parent=5 // pred_check
        %p206 = pneg %p205
      $region30: #{sepconv_pallas.1} parent=5 // pred_check_branch
        %208 = sbr.rel (%p206) target = $region32
      $region31: #{sepconv_pallas.1} parent=5 // pred_region
        // Predicated region
        $region33: #{sepconv_pallas.1} parent=31 // pred_check
          %p209 = pneg %p34
        $region34: #{sepconv_pallas.1} parent=31 // pred_check_branch
          %211 = sbr.rel (%p209) target = $region36
        $region35: #{sepconv_pallas.1} parent=31 // pred_region
          %p212 = scmp.lt.s32.totalorder %s14, 1
          %s213 = scalar_select %p212, %s14, 1
          %s214 = smul.addr %s213, 8
          %s215 = scalar_lea.vmem %s0, %s214
        $region36: #{sepconv_pallas.1} parent=31 // pred_fallthru
          _
      $region32: #{sepconv_pallas.1} parent=5 // pred_fallthru
        _
      %p216 = scmp.le.s32.totalorder 1, %s14
      %p217 = scmp.lt.s32.totalorder %s14, 3
      %p218 = pnand %p216, %p217
      %p219 = pneg %p218
      // Predicated region
      $region37: #{sepconv_pallas.1} parent=5 // pred_check
        _
      $region38: #{sepconv_pallas.1} parent=5 // pred_check_branch
        %221 = sbr.rel (%p218) target = $region40
      $region39: #{sepconv_pallas.1} parent=5 // pred_region
        %s222 = ssub.s32 %s14, 1
        // Predicated region
        $region41: #{sepconv_pallas.1} parent=39 // pred_check
          %p223 = pneg %p61
        $region42: #{sepconv_pallas.1} parent=39 // pred_check_branch
          %225 = sbr.rel (%p223) target = $region44
        $region43: #{sepconv_pallas.1} parent=39 // pred_region
          %226 = dma.done [#allocation4], 4096
        $region44: #{sepconv_pallas.1} parent=39 // pred_fallthru
          _
        // Predicated region
        $region45: #{sepconv_pallas.1} parent=39 // pred_check
          %p227 = pneg %p103
        $region46: #{sepconv_pallas.1} parent=39 // pred_check_branch
          %229 = sbr.rel (%p227) target = $region48
        $region47: #{sepconv_pallas.1} parent=39 // pred_region
          %230 = dma.done [#allocation7], 4096
        $region48: #{sepconv_pallas.1} parent=39 // pred_fallthru
          _
        // Predicated region
        $region49: #{sepconv_pallas.1} parent=39 // pred_check
          %p231 = pneg %p124
        $region50: #{sepconv_pallas.1} parent=39 // pred_check_branch
          %233 = sbr.rel (%p231) target = $region52
        $region51: #{sepconv_pallas.1} parent=39 // pred_region
          %234 = dma.done [#allocation5], 16
        $region52: #{sepconv_pallas.1} parent=39 // pred_fallthru
          _
        %235 = sfence
        %p236 = scmp.lt.s32.totalorder %s19, 1
        %s237 = scalar_select %p236, %s19, 1
        %s238 = smul.addr %s237, 8
        %s239 = scalar_lea.vmem %s0, %s238
        %p240 = pneg %p40
        %p241 = pneg %p37
        %p242 = pneg %p61
        %p243 = pneg %p58
        %p244 = pneg %p82
        %p245 = pneg %p79
        %p246 = pneg %p103
        %p247 = pneg %p100
        %p248 = pneg %p124
        %p249 = pneg %p121
        %p250 = pneg %p150
        %p251 = pneg %p147
        %p252 = scmp.lt.s32.totalorder %s19, 1
        %s253 = scalar_select %p252, %s19, 1
        %s254 = smul.addr %s253, 8
        %s255 = scalar_lea.vmem %s5, %s254
        %p256 = scmp.lt.s32.totalorder %s19, 1
        %s257 = scalar_select %p256, %s19, 1
        %s258 = smul.addr %s257, 8
        %s259 = scalar_lea.vmem %s0, %s258
        %p260 = scmp.lt.s32.totalorder %s19, 1
        %s261 = scalar_select %p260, %s19, 1
        %s262 = smul.addr %s261, 8
        %s263 = scalar_lea.vmem %s5, %s262
        %v264 = vld [vmem:[%s259] sm:$0xff]
        %v265 = vld [vmem:[#allocation3] sm:$0xff]
        %v266 = vld [vmem:[#allocation3 + $0x8] sm:$0xff]
        %v267 = vld [vmem:[#allocation3 + $0x10] sm:$0xff]
        %v268 = vld [vmem:[#allocation3 + $0x18] sm:$0xff]
        %v269 = vld [vmem:[#allocation3 + $0x20] sm:$0xff]
        %v270 = vld [vmem:[#allocation3 + $0x28] sm:$0xff]
        %v271 = vld [vmem:[#allocation3 + $0x30] sm:$0xff]
        %v272 = vld [vmem:[#allocation3 + $0x38] sm:$0xff]
        %v273 = vld [vmem:[#allocation3 + $0x40] sm:$0xff]
        %v274 = vld [vmem:[#allocation3 + $0x48] sm:$0xff]
        %v275 = vld [vmem:[#allocation3 + $0x50] sm:$0xff]
        %v276 = vld [vmem:[#allocation3 + $0x58] sm:$0xff]
        %v277 = vld [vmem:[#allocation3 + $0x60] sm:$0xff]
        %v278 = vld [vmem:[#allocation3 + $0x68] sm:$0xff]
        %v279 = vld [vmem:[#allocation3 + $0x70] sm:$0xff]
        %v280 = vld [vmem:[#allocation3 + $0x78] sm:$0xff]
        %v281 = vld [vmem:[#allocation3 + $0x80] sm:$0xff]
        %v282 = vld [vmem:[#allocation3 + $0x88] sm:$0xff]
        %v283 = vld [vmem:[#allocation3 + $0x90] sm:$0xff]
        %v284 = vld [vmem:[#allocation3 + $0x98] sm:$0xff]
        %v285 = vld [vmem:[#allocation3 + $0xa0] sm:$0xff]
        %v286 = vld [vmem:[#allocation3 + $0xa8] sm:$0xff]
        %v287 = vld [vmem:[#allocation3 + $0xb0] sm:$0xff]
        %v288 = vld [vmem:[#allocation3 + $0xb8] sm:$0xff]
        %v289 = vld [vmem:[#allocation3 + $0xc0] sm:$0xff]
        %v290 = vld [vmem:[#allocation3 + $0xc8] sm:$0xff]
        %v291 = vld [vmem:[#allocation3 + $0xd0] sm:$0xff]
        %v292 = vld [vmem:[#allocation3 + $0xd8] sm:$0xff]
        %v293 = vld [vmem:[#allocation3 + $0xe0] sm:$0xff]
        %v294 = vld [vmem:[#allocation3 + $0xe8] sm:$0xff]
        %v295 = vld [vmem:[#allocation3 + $0xf0] sm:$0xff]
        %v296 = vld [vmem:[#allocation3 + $0xf8] sm:$0xff]
        %297 = vmatprep.subr.mxu0 %v266
        %298 = vmatpush1.msra.mxu0 %v265
        %299 = vmatprep.subr.mxu0 %v268
        %300 = vmatpush1.msra.mxu0 %v267
        %301 = vmatprep.subr.mxu0 %v270
        %302 = vmatpush1.msra.mxu0 %v269
        %303 = vmatprep.subr.mxu0 %v272
        %304 = vmatpush1.msra.mxu0 %v271
        %305 = vmatprep.subr.mxu0 %v274
        %306 = vmatpush1.msra.mxu0 %v273
        %307 = vmatprep.subr.mxu0 %v276
        %308 = vmatpush1.msra.mxu0 %v275
        %309 = vmatprep.subr.mxu0 %v278
        %310 = vmatpush1.msra.mxu0 %v277
        %311 = vmatprep.subr.mxu0 %v280
        %312 = vmatpush1.msra.mxu0 %v279
        %313 = vmatprep.subr.mxu0 %v282
        %314 = vmatpush1.msra.mxu0 %v281
        %315 = vmatprep.subr.mxu0 %v284
        %316 = vmatpush1.msra.mxu0 %v283
        %317 = vmatprep.subr.mxu0 %v286
        %318 = vmatpush1.msra.mxu0 %v285
        %319 = vmatprep.subr.mxu0 %v288
        %320 = vmatpush1.msra.mxu0 %v287
        %321 = vmatprep.subr.mxu0 %v290
        %322 = vmatpush1.msra.mxu0 %v289
        %323 = vmatprep.subr.mxu0 %v292
        %324 = vmatpush1.msra.mxu0 %v291
        %325 = vmatprep.subr.mxu0 %v294
        %326 = vmatpush1.msra.mxu0 %v293
        %327 = vmatprep.subr.mxu0 %v296
        %328 = vmatpush1.msra.mxu0 %v295
        %329 = vmatprep.subr.mxu0 0.0
        %330 = vmatpush1.msra.mxu0 0.0
        %331 = vmatprep.subr.mxu0 0.0
        %332 = vmatpush1.msra.mxu0 0.0
        %333 = vmatprep.subr.mxu0 0.0
        %334 = vmatpush1.msra.mxu0 0.0
        %335 = vmatprep.subr.mxu0 0.0
        %336 = vmatpush1.msra.mxu0 0.0
        %337 = vmatprep.subr.mxu0 0.0
        %338 = vmatpush1.msra.mxu0 0.0
        %339 = vmatprep.subr.mxu0 0.0
        %340 = vmatpush1.msra.mxu0 0.0
        %341 = vmatprep.subr.mxu0 0.0
        %342 = vmatpush1.msra.mxu0 0.0
        %343 = vmatprep.subr.mxu0 0.0
        %344 = vmatpush1.msra.mxu0 0.0
        %345 = vmatprep.subr.mxu0 0.0
        %346 = vmatpush1.msra.mxu0 0.0
        %347 = vmatprep.subr.mxu0 0.0
        %348 = vmatpush1.msra.mxu0 0.0
        %349 = vmatprep.subr.mxu0 0.0
        %350 = vmatpush1.msra.mxu0 0.0
        %351 = vmatprep.subr.mxu0 0.0
        %352 = vmatpush1.msra.mxu0 0.0
        %353 = vmatprep.subr.mxu0 0.0
        %354 = vmatpush1.msra.mxu0 0.0
        %355 = vmatprep.subr.mxu0 0.0
        %356 = vmatpush1.msra.mxu0 0.0
        %357 = vmatprep.subr.mxu0 0.0
        %358 = vmatpush1.msra.mxu0 0.0
        %359 = vmatprep.subr.mxu0 0.0
        %360 = vmatpush1.msra.mxu0 0.0
        %361 = vmatprep.mubr.f32.mxu0 0.0
        %362 = vmatmul.mubr.f32.gmra.mrb[0].mxu0 %v264
        %v363 = vpop.f32.mrb[0].mxu0
        %v364 = vadd.f32 0.0, %v363
        %v365 = vpop.f32.mrb[0].mxu0
        %v366 = vadd.f32 0.0, %v365
        %367 = vdwg.mxu0
        %v368 = vmax.f32 %v364, 0.0
        %v369 = vmax.f32 %v366, 0.0
        %s370 = sld [smem:[#allocation8]]
        %v371 = vmul.f32 %v368, %v368
        %v372 = vmul.f32 %v369, %v369
        %v373 = vstv %s370
        %v374 = vmul.f32 %v373, %v371
        %v375 = vmul.f32 %v373, %v372
        %s376 = sld [smem:[#allocation8 + $0x1]]
        %v377 = vstv %s376
        %v378 = vadd.f32 %v374, %v377
        %v379 = vadd.f32 %v375, %v377
        %380 = vst [vmem:[#allocation2] sm:$0xe0] 0.0
        %381 = vst [vmem:[#allocation2 + $0x8] sm:$0xe0] 0.0
        %382 = vst [vmem:[#allocation2 + $0x10] sm:$0xe0] 0.0
        %383 = vst [vmem:[#allocation2 + $0x18] sm:$0xe0] 0.0
        %384 = vst [vmem:[#allocation2 + $0x40] sm:$0x7] 0.0
        %385 = vst [vmem:[#allocation2 + $0x48] sm:$0x7] 0.0
        %386 = vst [vmem:[#allocation2 + $0x50] sm:$0x7] 0.0
        %387 = vst [vmem:[#allocation2 + $0x58] sm:$0x7] 0.0
        %388 = vst [vmem:[#allocation2 + $0x20] sm:$0xff] 0.0
        %389 = vst [vmem:[#allocation2 + $0x38] sm:$0xff] 0.0
        %390 = vst [vmem:[#allocation2 + $0x28] sm:$0xff] %v378
        %391 = vst [vmem:[#allocation2 + $0x30] sm:$0xff] %v379
        %v392 = vld [vmem:[#allocation2] sm:$0xe0]
        %v393 = vld [vmem:[#allocation2 + $0x8] sm:$0xe0]
        %v394 = vld [vmem:[#allocation2 + $0x10] sm:$0xe0]
        %v395 = vld [vmem:[#allocation2 + $0x20] sm:$0x1f]
        %v396 = vld [vmem:[#allocation2 + $0x28] sm:$0x1f]
        %v397 = vld [vmem:[#allocation2 + $0x30] sm:$0x1f]
        %v398 = vld [vmem:[%s2] ss:$8 sm:$0x3]
        %v400 = vlaneseq
        %v401 = vshrl.u32 %v400, 7
        %v402 = vsub.s32 0, %v401
        %v403 = vrot.slane %v398, %v402
        %v404 = vlaneseq
        %v405 = vshrl.u32 %v404, 7
        %v406 = vsub.s32 1, %v405
        %v407 = vrot.slane %v398, %v406
        %408 = vrot.lane.b32.xlu0 %v403, 32
        %v409 = vpop.permute.xlu0 %408
        %410 = vrot.lane.b32.xlu0 %v407, 32
        %v411 = vpop.permute.xlu0 %410
        %vm412 = vcmask 261120
        %v413 = vsel %vm412, %v409, %v411
        %v417 = vmul.f32 %v392, %v409
        %v418 = vmul.f32 %v393, %v413
        %v419 = vmul.f32 %v394, %v411
        %v420 = vmul.f32 %v395, %v409
        %v421 = vmul.f32 %v396, %v413
        %v422 = vmul.f32 %v397, %v411
        %v423 = vadd.f32 %v417, 0.0
        %v424 = vadd.f32 %v418, 0.0
        %v425 = vadd.f32 %v419, 0.0
        %v426 = vadd.f32 %v420, 0.0
        %v427 = vadd.f32 %v421, 0.0
        %v428 = vadd.f32 %v422, 0.0
        %v429 = vld [vmem:[#allocation2] sm:$0xc0]
        %v430 = vld [vmem:[#allocation2 + $0x8] sm:$0xc0]
        %v431 = vld [vmem:[#allocation2 + $0x10] sm:$0xc0]
        %v432 = vld [vmem:[#allocation2 + $0x20] sm:$0x3f]
        %v433 = vld [vmem:[#allocation2 + $0x28] sm:$0x3f]
        %v434 = vld [vmem:[#allocation2 + $0x30] sm:$0x3f]
        %s435 = scalar_lea.vmem %s2, 1
        %v436 = vld [vmem:[%s435] ss:$8 sm:$0x3]
        %v438 = vlaneseq
        %v439 = vshrl.u32 %v438, 7
        %v440 = vsub.s32 0, %v439
        %v441 = vrot.slane %v436, %v440
        %v442 = vlaneseq
        %v443 = vshrl.u32 %v442, 7
        %v444 = vsub.s32 1, %v443
        %v445 = vrot.slane %v436, %v444
        %446 = vrot.lane.b32.xlu0 %v441, 32
        %v447 = vpop.permute.xlu0 %446
        %448 = vrot.lane.b32.xlu0 %v445, 32
        %v449 = vpop.permute.xlu0 %448
        %v450 = vsel %vm412, %v447, %v449
        %v454 = vmul.f32 %v429, %v447
        %v455 = vmul.f32 %v430, %v450
        %v456 = vmul.f32 %v431, %v449
        %v457 = vmul.f32 %v432, %v447
        %v458 = vmul.f32 %v433, %v450
        %v459 = vmul.f32 %v434, %v449
        %v460 = vadd.f32 %v454, 0.0
        %v461 = vadd.f32 %v455, 0.0
        %v462 = vadd.f32 %v456, 0.0
        %v463 = vadd.f32 %v457, 0.0
        %v464 = vadd.f32 %v458, 0.0
        %v465 = vadd.f32 %v459, 0.0
        %v466 = vld [vmem:[#allocation2] sm:$0x80]
        %v467 = vld [vmem:[#allocation2 + $0x8] sm:$0x80]
        %v468 = vld [vmem:[#allocation2 + $0x10] sm:$0x80]
        %v469 = vld [vmem:[#allocation2 + $0x20] sm:$0x7f]
        %v470 = vld [vmem:[#allocation2 + $0x28] sm:$0x7f]
        %v471 = vld [vmem:[#allocation2 + $0x30] sm:$0x7f]
        %s472 = scalar_lea.vmem %s2, 2
        %v473 = vld [vmem:[%s472] ss:$8 sm:$0x3]
        %v475 = vlaneseq
        %v476 = vshrl.u32 %v475, 7
        %v477 = vsub.s32 0, %v476
        %v478 = vrot.slane %v473, %v477
        %v479 = vlaneseq
        %v480 = vshrl.u32 %v479, 7
        %v481 = vsub.s32 1, %v480
        %v482 = vrot.slane %v473, %v481
        %483 = vrot.lane.b32.xlu0 %v478, 32
        %v484 = vpop.permute.xlu0 %483
        %485 = vrot.lane.b32.xlu0 %v482, 32
        %v486 = vpop.permute.xlu0 %485
        %v487 = vsel %vm412, %v484, %v486
        %v491 = vmul.f32 %v466, %v484
        %v492 = vmul.f32 %v467, %v487
        %v493 = vmul.f32 %v468, %v486
        %v494 = vmul.f32 %v469, %v484
        %v495 = vmul.f32 %v470, %v487
        %v496 = vmul.f32 %v471, %v486
        %v497 = vadd.f32 %v491, 0.0
        %v498 = vadd.f32 %v492, 0.0
        %v499 = vadd.f32 %v493, 0.0
        %v500 = vadd.f32 %v494, 0.0
        %v501 = vadd.f32 %v495, 0.0
        %v502 = vadd.f32 %v496, 0.0
        %v503 = vld [vmem:[#allocation2 + $0x20] sm:$0xff]
        %v504 = vld [vmem:[#allocation2 + $0x28] sm:$0xff]
        %v505 = vld [vmem:[#allocation2 + $0x30] sm:$0xff]
        %s506 = scalar_lea.vmem %s2, 3
        %v507 = vld [vmem:[%s506] ss:$8 sm:$0x3]
        %v509 = vlaneseq
        %v510 = vshrl.u32 %v509, 7
        %v511 = vsub.s32 0, %v510
        %v512 = vrot.slane %v507, %v511
        %v513 = vlaneseq
        %v514 = vshrl.u32 %v513, 7
        %v515 = vsub.s32 1, %v514
        %v516 = vrot.slane %v507, %v515
        %517 = vrot.lane.b32.xlu0 %v512, 32
        %v518 = vpop.permute.xlu0 %517
        %519 = vrot.lane.b32.xlu0 %v516, 32
        %v520 = vpop.permute.xlu0 %519
        %v521 = vsel %vm412, %v518, %v520
        %v525 = vmul.f32 %v503, %v518
        %v526 = vmul.f32 %v504, %v521
        %v527 = vmul.f32 %v505, %v520
        %v528 = vadd.f32 %v525, 0.0
        %v529 = vadd.f32 %v526, 0.0
        %v530 = vadd.f32 %v527, 0.0
        %v531 = vld [vmem:[#allocation2 + $0x20] sm:$0xfe]
        %v532 = vld [vmem:[#allocation2 + $0x28] sm:$0xfe]
        %v533 = vld [vmem:[#allocation2 + $0x30] sm:$0xfe]
        %v534 = vld [vmem:[#allocation2 + $0x40] sm:$0x1]
        %v535 = vld [vmem:[#allocation2 + $0x48] sm:$0x1]
        %v536 = vld [vmem:[#allocation2 + $0x50] sm:$0x1]
        %s537 = scalar_lea.vmem %s2, 4
        %v538 = vld [vmem:[%s537] ss:$8 sm:$0x3]
        %v540 = vlaneseq
        %v541 = vshrl.u32 %v540, 7
        %v542 = vsub.s32 0, %v541
        %v543 = vrot.slane %v538, %v542
        %v544 = vlaneseq
        %v545 = vshrl.u32 %v544, 7
        %v546 = vsub.s32 1, %v545
        %v547 = vrot.slane %v538, %v546
        %548 = vrot.lane.b32.xlu0 %v543, 32
        %v549 = vpop.permute.xlu0 %548
        %550 = vrot.lane.b32.xlu0 %v547, 32
        %v551 = vpop.permute.xlu0 %550
        %v552 = vsel %vm412, %v549, %v551
        %v556 = vmul.f32 %v531, %v549
        %v557 = vmul.f32 %v532, %v552
        %v558 = vmul.f32 %v533, %v551
        %v559 = vmul.f32 %v534, %v549
        %v560 = vmul.f32 %v535, %v552
        %v561 = vmul.f32 %v536, %v551
        %vm568 = vcmask 1043456
        %v569 = vrot.slane %v556, 4
        %v570 = vrot.slane %v557, 4
        %v571 = vrot.slane %v558, 4
        %v572 = vrot.slane %v559, 4
        %v573 = vsel %vm568, %v569, %v572
        %v574 = vrot.slane %v560, 4
        %v575 = vsel %vm568, %v570, %v574
        %v576 = vrot.slane %v561, 4
        %v577 = vsel %vm568, %v571, %v576
        %v584 = vadd.f32 %v423, %v569
        %v585 = vadd.f32 %v424, %v570
        %v586 = vadd.f32 %v425, %v571
        %v587 = vadd.f32 %v426, %v573
        %v588 = vadd.f32 %v427, %v575
        %v589 = vadd.f32 %v428, %v577
        %v590 = vld [vmem:[#allocation2 + $0x20] sm:$0xfc]
        %v591 = vld [vmem:[#allocation2 + $0x28] sm:$0xfc]
        %v592 = vld [vmem:[#allocation2 + $0x30] sm:$0xfc]
        %v593 = vld [vmem:[#allocation2 + $0x40] sm:$0x3]
        %v594 = vld [vmem:[#allocation2 + $0x48] sm:$0x3]
        %v595 = vld [vmem:[#allocation2 + $0x50] sm:$0x3]
        %s596 = scalar_lea.vmem %s2, 5
        %v597 = vld [vmem:[%s596] ss:$8 sm:$0x3]
        %v599 = vlaneseq
        %v600 = vshrl.u32 %v599, 7
        %v601 = vsub.s32 0, %v600
        %v602 = vrot.slane %v597, %v601
        %v603 = vlaneseq
        %v604 = vshrl.u32 %v603, 7
        %v605 = vsub.s32 1, %v604
        %v606 = vrot.slane %v597, %v605
        %607 = vrot.lane.b32.xlu0 %v602, 32
        %v608 = vpop.permute.xlu0 %607
        %609 = vrot.lane.b32.xlu0 %v606, 32
        %v610 = vpop.permute.xlu0 %609
        %v611 = vsel %vm412, %v608, %v610
        %v615 = vmul.f32 %v590, %v608
        %v616 = vmul.f32 %v591, %v611
        %v617 = vmul.f32 %v592, %v610
        %v618 = vmul.f32 %v593, %v608
        %v619 = vmul.f32 %v594, %v611
        %v620 = vmul.f32 %v595, %v610
        %v627 = vrot.slane %v615, 4
        %v628 = vrot.slane %v616, 4
        %v629 = vrot.slane %v617, 4
        %v630 = vrot.slane %v618, 4
        %v631 = vsel %vm568, %v627, %v630
        %v632 = vrot.slane %v619, 4
        %v633 = vsel %vm568, %v628, %v632
        %v634 = vrot.slane %v620, 4
        %v635 = vsel %vm568, %v629, %v634
        %v642 = vadd.f32 %v460, %v627
        %v643 = vadd.f32 %v461, %v628
        %v644 = vadd.f32 %v462, %v629
        %v645 = vadd.f32 %v463, %v631
        %v646 = vadd.f32 %v464, %v633
        %v647 = vadd.f32 %v465, %v635
        %v648 = vld [vmem:[#allocation2 + $0x20] sm:$0xf8]
        %v649 = vld [vmem:[#allocation2 + $0x28] sm:$0xf8]
        %v650 = vld [vmem:[#allocation2 + $0x30] sm:$0xf8]
        %v651 = vld [vmem:[#allocation2 + $0x40] sm:$0x7]
        %v652 = vld [vmem:[#allocation2 + $0x48] sm:$0x7]
        %v653 = vld [vmem:[#allocation2 + $0x50] sm:$0x7]
        %s654 = scalar_lea.vmem %s2, 6
        %v655 = vld [vmem:[%s654] ss:$8 sm:$0x3]
        %v657 = vlaneseq
        %v658 = vshrl.u32 %v657, 7
        %v659 = vsub.s32 0, %v658
        %v660 = vrot.slane %v655, %v659
        %v661 = vlaneseq
        %v662 = vshrl.u32 %v661, 7
        %v663 = vsub.s32 1, %v662
        %v664 = vrot.slane %v655, %v663
        %665 = vrot.lane.b32.xlu0 %v660, 32
        %v666 = vpop.permute.xlu0 %665
        %667 = vrot.lane.b32.xlu0 %v664, 32
        %v668 = vpop.permute.xlu0 %667
        %v669 = vsel %vm412, %v666, %v668
        %v673 = vmul.f32 %v648, %v666
        %v674 = vmul.f32 %v649, %v669
        %v675 = vmul.f32 %v650, %v668
        %v676 = vmul.f32 %v651, %v666
        %v677 = vmul.f32 %v652, %v669
        %v678 = vmul.f32 %v653, %v668
        %v685 = vrot.slane %v673, 4
        %v686 = vrot.slane %v674, 4
        %v687 = vrot.slane %v675, 4
        %v688 = vrot.slane %v676, 4
        %v689 = vsel %vm568, %v685, %v688
        %v690 = vrot.slane %v677, 4
        %v691 = vsel %vm568, %v686, %v690
        %v692 = vrot.slane %v678, 4
        %v693 = vsel %vm568, %v687, %v692
        %v700 = vadd.f32 %v497, %v685
        %v701 = vadd.f32 %v498, %v686
        %v702 = vadd.f32 %v499, %v687
        %v703 = vadd.f32 %v500, %v689
        %v704 = vadd.f32 %v501, %v691
        %v705 = vadd.f32 %v502, %v693
        %s706 = scalar_lea.vmem %s2, 16
        %v707 = vld [vmem:[%s706] ss:$8 sm:$0x3]
        %v709 = vlaneseq
        %v710 = vshrl.u32 %v709, 7
        %v711 = vsub.s32 0, %v710
        %v712 = vrot.slane %v707, %v711
        %v713 = vlaneseq
        %v714 = vshrl.u32 %v713, 7
        %v715 = vsub.s32 1, %v714
        %v716 = vrot.slane %v707, %v715
        %717 = vrot.lane.b32.xlu0 %v712, 64
        %v718 = vpop.permute.xlu0 %717
        %719 = vrot.lane.b32.xlu0 %v716, 64
        %v720 = vpop.permute.xlu0 %719
        %vm721 = vcmask 523264
        %v722 = vsel %vm721, %v718, %v720
        %v726 = vmul.f32 %v392, %v718
        %v727 = vmul.f32 %v393, %v722
        %v728 = vmul.f32 %v394, %v720
        %v729 = vmul.f32 %v395, %v718
        %v730 = vmul.f32 %v396, %v722
        %v731 = vmul.f32 %v397, %v720
        %vm738 = vcmask 1042432
        %v739 = vrot.slane %v726, 5
        %v740 = vrot.slane %v729, 5
        %v741 = vsel %vm738, %v739, %v740
        %v742 = vrot.slane %v727, 5
        %v743 = vrot.slane %v730, 5
        %v744 = vsel %vm738, %v742, %v743
        %v745 = vrot.slane %v728, 5
        %v746 = vrot.slane %v731, 5
        %v747 = vsel %vm738, %v745, %v746
        %748 = vrot.lane.b32.xlu0 %v741, 96
        %v749 = vpop.permute.xlu0 %748
        %750 = vrot.lane.b32.xlu0 %v744, 96
        %v751 = vpop.permute.xlu0 %750
        %752 = vrot.lane.b32.xlu0 %v747, 96
        %v753 = vpop.permute.xlu0 %752
        %vm754 = vcmask 785408
        %v755 = vsel %vm754, %v749, %v751
        %v756 = vsel %vm754, %v751, %v753
        %v760 = vadd.f32 %v528, %v755
        %v761 = vadd.f32 %v529, %v756
        %v762 = vadd.f32 %v530, %v753
        %s763 = scalar_lea.vmem %s2, 17
        %v764 = vld [vmem:[%s763] ss:$8 sm:$0x3]
        %v766 = vlaneseq
        %v767 = vshrl.u32 %v766, 7
        %v768 = vsub.s32 0, %v767
        %v769 = vrot.slane %v764, %v768
        %v770 = vlaneseq
        %v771 = vshrl.u32 %v770, 7
        %v772 = vsub.s32 1, %v771
        %v773 = vrot.slane %v764, %v772
        %774 = vrot.lane.b32.xlu0 %v769, 64
        %v775 = vpop.permute.xlu0 %774
        %776 = vrot.lane.b32.xlu0 %v773, 64
        %v777 = vpop.permute.xlu0 %776
        %v778 = vsel %vm721, %v775, %v777
        %v782 = vmul.f32 %v429, %v775
        %v783 = vmul.f32 %v430, %v778
        %v784 = vmul.f32 %v431, %v777
        %v785 = vmul.f32 %v432, %v775
        %v786 = vmul.f32 %v433, %v778
        %v787 = vmul.f32 %v434, %v777
        %vm794 = vcmask 1046528
        %v795 = vrot.slane %v782, 1
        %v796 = vrot.slane %v785, 1
        %v797 = vsel %vm794, %v795, %v796
        %v798 = vrot.slane %v783, 1
        %v799 = vrot.slane %v786, 1
        %v800 = vsel %vm794, %v798, %v799
        %v801 = vrot.slane %v784, 1
        %v802 = vrot.slane %v787, 1
        %v803 = vsel %vm794, %v801, %v802
        %804 = vrot.lane.b32.xlu0 %v797, 96
        %v805 = vpop.permute.xlu0 %804
        %806 = vrot.lane.b32.xlu0 %v800, 96
        %v807 = vpop.permute.xlu0 %806
        %808 = vrot.lane.b32.xlu0 %v803, 96
        %v809 = vpop.permute.xlu0 %808
        %810 = vrot.lane.b32.xlu0 %v796, 96
        %v811 = vpop.permute.xlu0 %810
        %812 = vrot.lane.b32.xlu0 %v799, 96
        %v813 = vpop.permute.xlu0 %812
        %814 = vrot.lane.b32.xlu0 %v802, 96
        %v815 = vpop.permute.xlu0 %814
        %v816 = vsel %vm754, %v805, %v807
        %v817 = vsel %vm754, %v807, %v809
        %v818 = vsel %vm754, %v811, %v813
        %v819 = vsel %vm754, %v813, %v815
        %v826 = vadd.f32 %v584, %v816
        %v827 = vadd.f32 %v585, %v817
        %v828 = vadd.f32 %v586, %v809
        %v829 = vadd.f32 %v587, %v818
        %v830 = vadd.f32 %v588, %v819
        %v831 = vadd.f32 %v589, %v815
        %s832 = scalar_lea.vmem %s2, 18
        %v833 = vld [vmem:[%s832] ss:$8 sm:$0x3]
        %v835 = vlaneseq
        %v836 = vshrl.u32 %v835, 7
        %v837 = vsub.s32 0, %v836
        %v838 = vrot.slane %v833, %v837
        %v839 = vlaneseq
        %v840 = vshrl.u32 %v839, 7
        %v841 = vsub.s32 1, %v840
        %v842 = vrot.slane %v833, %v841
        %843 = vrot.lane.b32.xlu0 %v838, 64
        %v844 = vpop.permute.xlu0 %843
        %845 = vrot.lane.b32.xlu0 %v842, 64
        %v846 = vpop.permute.xlu0 %845
        %v847 = vsel %vm721, %v844, %v846
        %v851 = vmul.f32 %v466, %v844
        %v852 = vmul.f32 %v467, %v847
        %v853 = vmul.f32 %v468, %v846
        %v854 = vmul.f32 %v469, %v844
        %v855 = vmul.f32 %v470, %v847
        %v856 = vmul.f32 %v471, %v846
        %v863 = vrot.slane %v851, 1
        %v864 = vrot.slane %v854, 1
        %v865 = vsel %vm794, %v863, %v864
        %v866 = vrot.slane %v852, 1
        %v867 = vrot.slane %v855, 1
        %v868 = vsel %vm794, %v866, %v867
        %v869 = vrot.slane %v853, 1
        %v870 = vrot.slane %v856, 1
        %v871 = vsel %vm794, %v869, %v870
        %872 = vrot.lane.b32.xlu0 %v865, 96
        %v873 = vpop.permute.xlu0 %872
        %874 = vrot.lane.b32.xlu0 %v868, 96
        %v875 = vpop.permute.xlu0 %874
        %876 = vrot.lane.b32.xlu0 %v871, 96
        %v877 = vpop.permute.xlu0 %876
        %878 = vrot.lane.b32.xlu0 %v864, 96
        %v879 = vpop.permute.xlu0 %878
        %880 = vrot.lane.b32.xlu0 %v867, 96
        %v881 = vpop.permute.xlu0 %880
        %882 = vrot.lane.b32.xlu0 %v870, 96
        %v883 = vpop.permute.xlu0 %882
        %v884 = vsel %vm754, %v873, %v875
        %v885 = vsel %vm754, %v875, %v877
        %v886 = vsel %vm754, %v879, %v881
        %v887 = vsel %vm754, %v881, %v883
        %v894 = vadd.f32 %v642, %v884
        %v895 = vadd.f32 %v643, %v885
        %v896 = vadd.f32 %v644, %v877
        %v897 = vadd.f32 %v645, %v886
        %v898 = vadd.f32 %v646, %v887
        %v899 = vadd.f32 %v647, %v883
        %s900 = scalar_lea.vmem %s2, 19
        %v901 = vld [vmem:[%s900] ss:$8 sm:$0x3]
        %v903 = vlaneseq
        %v904 = vshrl.u32 %v903, 7
        %v905 = vsub.s32 0, %v904
        %v906 = vrot.slane %v901, %v905
        %v907 = vlaneseq
        %v908 = vshrl.u32 %v907, 7
        %v909 = vsub.s32 1, %v908
        %v910 = vrot.slane %v901, %v909
        %911 = vrot.lane.b32.xlu0 %v906, 64
        %v912 = vpop.permute.xlu0 %911
        %913 = vrot.lane.b32.xlu0 %v910, 64
        %v914 = vpop.permute.xlu0 %913
        %v915 = vsel %vm721, %v912, %v914
        %v919 = vmul.f32 %v503, %v912
        %v920 = vmul.f32 %v504, %v915
        %v921 = vmul.f32 %v505, %v914
        %v925 = vrot.slane %v919, 1
        %v926 = vrot.slane %v920, 1
        %v927 = vrot.slane %v921, 1
        %928 = vrot.lane.b32.xlu0 %v925, 96
        %v929 = vpop.permute.xlu0 %928
        %930 = vrot.lane.b32.xlu0 %v926, 96
        %v931 = vpop.permute.xlu0 %930
        %932 = vrot.lane.b32.xlu0 %v927, 96
        %v933 = vpop.permute.xlu0 %932
        %v934 = vsel %vm754, %v929, %v931
        %v935 = vsel %vm754, %v931, %v933
        %v939 = vadd.f32 %v700, %v934
        %v940 = vadd.f32 %v701, %v935
        %v941 = vadd.f32 %v702, %v933
        %v942 = vadd.f32 %v703, %v934
        %v943 = vadd.f32 %v704, %v935
        %v944 = vadd.f32 %v705, %v933
        %s945 = scalar_lea.vmem %s2, 20
        %v946 = vld [vmem:[%s945] ss:$8 sm:$0x3]
        %v948 = vlaneseq
        %v949 = vshrl.u32 %v948, 7
        %v950 = vsub.s32 0, %v949
        %v951 = vrot.slane %v946, %v950
        %v952 = vlaneseq
        %v953 = vshrl.u32 %v952, 7
        %v954 = vsub.s32 1, %v953
        %v955 = vrot.slane %v946, %v954
        %956 = vrot.lane.b32.xlu0 %v951, 64
        %v957 = vpop.permute.xlu0 %956
        %958 = vrot.lane.b32.xlu0 %v955, 64
        %v959 = vpop.permute.xlu0 %958
        %v960 = vsel %vm721, %v957, %v959
        %v964 = vmul.f32 %v531, %v957
        %v965 = vmul.f32 %v532, %v960
        %v966 = vmul.f32 %v533, %v959
        %v967 = vmul.f32 %v534, %v957
        %v968 = vmul.f32 %v535, %v960
        %v969 = vmul.f32 %v536, %v959
        %v976 = vrot.slane %v964, 1
        %v977 = vrot.slane %v967, 1
        %v978 = vsel %vm794, %v976, %v977
        %v979 = vrot.slane %v965, 1
        %v980 = vrot.slane %v968, 1
        %v981 = vsel %vm794, %v979, %v980
        %v982 = vrot.slane %v966, 1
        %v983 = vrot.slane %v969, 1
        %v984 = vsel %vm794, %v982, %v983
        %985 = vrot.lane.b32.xlu0 %v978, 96
        %v986 = vpop.permute.xlu0 %985
        %987 = vrot.lane.b32.xlu0 %v981, 96
        %v988 = vpop.permute.xlu0 %987
        %989 = vrot.lane.b32.xlu0 %v984, 96
        %v990 = vpop.permute.xlu0 %989
        %v991 = vsel %vm754, %v986, %v988
        %v992 = vsel %vm754, %v988, %v990
        %v996 = vadd.f32 %v760, %v991
        %v997 = vadd.f32 %v761, %v992
        %v998 = vadd.f32 %v762, %v990
        %s999 = scalar_lea.vmem %s2, 21
        %v1000 = vld [vmem:[%s999] ss:$8 sm:$0x3]
        %v1002 = vlaneseq
        %v1003 = vshrl.u32 %v1002, 7
        %v1004 = vsub.s32 0, %v1003
        %v1005 = vrot.slane %v1000, %v1004
        %v1006 = vlaneseq
        %v1007 = vshrl.u32 %v1006, 7
        %v1008 = vsub.s32 1, %v1007
        %v1009 = vrot.slane %v1000, %v1008
        %1010 = vrot.lane.b32.xlu0 %v1005, 64
        %v1011 = vpop.permute.xlu0 %1010
        %1012 = vrot.lane.b32.xlu0 %v1009, 64
        %v1013 = vpop.permute.xlu0 %1012
        %v1014 = vsel %vm721, %v1011, %v1013
        %v1018 = vmul.f32 %v590, %v1011
        %v1019 = vmul.f32 %v591, %v1014
        %v1020 = vmul.f32 %v592, %v1013
        %v1021 = vmul.f32 %v593, %v1011
        %v1022 = vmul.f32 %v594, %v1014
        %v1023 = vmul.f32 %v595, %v1013
        %v1030 = vrot.slane %v1018, 5
        %v1031 = vrot.slane %v1019, 5
        %v1032 = vrot.slane %v1020, 5
        %v1033 = vrot.slane %v1021, 5
        %v1034 = vsel %vm738, %v1030, %v1033
        %v1035 = vrot.slane %v1022, 5
        %v1036 = vsel %vm738, %v1031, %v1035
        %v1037 = vrot.slane %v1023, 5
        %v1038 = vsel %vm738, %v1032, %v1037
        %1039 = vrot.lane.b32.xlu0 %v1030, 96
        %v1040 = vpop.permute.xlu0 %1039
        %1041 = vrot.lane.b32.xlu0 %v1031, 96
        %v1042 = vpop.permute.xlu0 %1041
        %1043 = vrot.lane.b32.xlu0 %v1032, 96
        %v1044 = vpop.permute.xlu0 %1043
        %1045 = vrot.lane.b32.xlu0 %v1034, 96
        %v1046 = vpop.permute.xlu0 %1045
        %1047 = vrot.lane.b32.xlu0 %v1036, 96
        %v1048 = vpop.permute.xlu0 %1047
        %1049 = vrot.lane.b32.xlu0 %v1038, 96
        %v1050 = vpop.permute.xlu0 %1049
        %v1051 = vsel %vm754, %v1040, %v1042
        %v1052 = vsel %vm754, %v1042, %v1044
        %v1053 = vsel %vm754, %v1046, %v1048
        %v1054 = vsel %vm754, %v1048, %v1050
        %v1061 = vadd.f32 %v826, %v1051
        %v1062 = vadd.f32 %v827, %v1052
        %v1063 = vadd.f32 %v828, %v1044
        %v1064 = vadd.f32 %v829, %v1053
        %v1065 = vadd.f32 %v830, %v1054
        %v1066 = vadd.f32 %v831, %v1050
        %s1067 = scalar_lea.vmem %s2, 22
        %v1068 = vld [vmem:[%s1067] ss:$8 sm:$0x3]
        %v1070 = vlaneseq
        %v1071 = vshrl.u32 %v1070, 7
        %v1072 = vsub.s32 0, %v1071
        %v1073 = vrot.slane %v1068, %v1072
        %v1074 = vlaneseq
        %v1075 = vshrl.u32 %v1074, 7
        %v1076 = vsub.s32 1, %v1075
        %v1077 = vrot.slane %v1068, %v1076
        %1078 = vrot.lane.b32.xlu0 %v1073, 64
        %v1079 = vpop.permute.xlu0 %1078
        %1080 = vrot.lane.b32.xlu0 %v1077, 64
        %v1081 = vpop.permute.xlu0 %1080
        %v1082 = vsel %vm721, %v1079, %v1081
        %v1086 = vmul.f32 %v648, %v1079
        %v1087 = vmul.f32 %v649, %v1082
        %v1088 = vmul.f32 %v650, %v1081
        %v1089 = vmul.f32 %v651, %v1079
        %v1090 = vmul.f32 %v652, %v1082
        %v1091 = vmul.f32 %v653, %v1081
        %v1098 = vrot.slane %v1086, 5
        %v1099 = vrot.slane %v1087, 5
        %v1100 = vrot.slane %v1088, 5
        %v1101 = vrot.slane %v1089, 5
        %v1102 = vsel %vm738, %v1098, %v1101
        %v1103 = vrot.slane %v1090, 5
        %v1104 = vsel %vm738, %v1099, %v1103
        %v1105 = vrot.slane %v1091, 5
        %v1106 = vsel %vm738, %v1100, %v1105
        %1107 = vrot.lane.b32.xlu0 %v1098, 96
        %v1108 = vpop.permute.xlu0 %1107
        %1109 = vrot.lane.b32.xlu0 %v1099, 96
        %v1110 = vpop.permute.xlu0 %1109
        %1111 = vrot.lane.b32.xlu0 %v1100, 96
        %v1112 = vpop.permute.xlu0 %1111
        %1113 = vrot.lane.b32.xlu0 %v1102, 96
        %v1114 = vpop.permute.xlu0 %1113
        %1115 = vrot.lane.b32.xlu0 %v1104, 96
        %v1116 = vpop.permute.xlu0 %1115
        %1117 = vrot.lane.b32.xlu0 %v1106, 96
        %v1118 = vpop.permute.xlu0 %1117
        %v1119 = vsel %vm754, %v1108, %v1110
        %v1120 = vsel %vm754, %v1110, %v1112
        %v1121 = vsel %vm754, %v1114, %v1116
        %v1122 = vsel %vm754, %v1116, %v1118
        %v1129 = vadd.f32 %v894, %v1119
        %v1130 = vadd.f32 %v895, %v1120
        %v1131 = vadd.f32 %v896, %v1112
        %v1132 = vadd.f32 %v897, %v1121
        %v1133 = vadd.f32 %v898, %v1122
        %v1134 = vadd.f32 %v899, %v1118
        %s1135 = scalar_lea.vmem %s2, 32
        %v1136 = vld [vmem:[%s1135] ss:$8 sm:$0x3]
        %v1138 = vlaneseq
        %v1139 = vshrl.u32 %v1138, 7
        %v1140 = vsub.s32 0, %v1139
        %v1141 = vrot.slane %v1136, %v1140
        %v1142 = vlaneseq
        %v1143 = vshrl.u32 %v1142, 7
        %v1144 = vsub.s32 1, %v1143
        %v1145 = vrot.slane %v1136, %v1144
        %1146 = vrot.lane.b32.xlu0 %v1141, 96
        %v1147 = vpop.permute.xlu0 %1146
        %1148 = vrot.lane.b32.xlu0 %v1145, 96
        %v1149 = vpop.permute.xlu0 %1148
        %v1150 = vsel %vm754, %v1147, %v1149
        %v1154 = vmul.f32 %v392, %v1147
        %v1155 = vmul.f32 %v393, %v1150
        %v1156 = vmul.f32 %v394, %v1149
        %v1157 = vmul.f32 %v395, %v1147
        %v1158 = vmul.f32 %v396, %v1150
        %v1159 = vmul.f32 %v397, %v1149
        %vm1166 = vcmask 1041408
        %v1167 = vrot.slane %v1154, 6
        %v1168 = vrot.slane %v1155, 6
        %v1169 = vrot.slane %v1156, 6
        %v1170 = vrot.slane %v1157, 6
        %v1171 = vsel %vm1166, %v1167, %v1170
        %v1172 = vrot.slane %v1158, 6
        %v1173 = vsel %vm1166, %v1168, %v1172
        %v1174 = vrot.slane %v1159, 6
        %v1175 = vsel %vm1166, %v1169, %v1174
        %1176 = vrot.lane.b32.xlu0 %v1167, 64
        %v1177 = vpop.permute.xlu0 %1176
        %1178 = vrot.lane.b32.xlu0 %v1168, 64
        %v1179 = vpop.permute.xlu0 %1178
        %1180 = vrot.lane.b32.xlu0 %v1169, 64
        %v1181 = vpop.permute.xlu0 %1180
        %1182 = vrot.lane.b32.xlu0 %v1171, 64
        %v1183 = vpop.permute.xlu0 %1182
        %1184 = vrot.lane.b32.xlu0 %v1173, 64
        %v1185 = vpop.permute.xlu0 %1184
        %1186 = vrot.lane.b32.xlu0 %v1175, 64
        %v1187 = vpop.permute.xlu0 %1186
        %v1188 = vsel %vm721, %v1177, %v1179
        %v1189 = vsel %vm721, %v1179, %v1181
        %v1190 = vsel %vm721, %v1183, %v1185
        %v1191 = vsel %vm721, %v1185, %v1187
        %v1198 = vadd.f32 %v939, %v1188
        %v1199 = vadd.f32 %v940, %v1189
        %v1200 = vadd.f32 %v941, %v1181
        %v1201 = vadd.f32 %v942, %v1190
        %v1202 = vadd.f32 %v943, %v1191
        %v1203 = vadd.f32 %v944, %v1187
        %s1204 = scalar_lea.vmem %s2, 33
        %v1205 = vld [vmem:[%s1204] ss:$8 sm:$0x3]
        %v1207 = vlaneseq
        %v1208 = vshrl.u32 %v1207, 7
        %v1209 = vsub.s32 0, %v1208
        %v1210 = vrot.slane %v1205, %v1209
        %v1211 = vlaneseq
        %v1212 = vshrl.u32 %v1211, 7
        %v1213 = vsub.s32 1, %v1212
        %v1214 = vrot.slane %v1205, %v1213
        %1215 = vrot.lane.b32.xlu0 %v1210, 96
        %v1216 = vpop.permute.xlu0 %1215
        %1217 = vrot.lane.b32.xlu0 %v1214, 96
        %v1218 = vpop.permute.xlu0 %1217
        %v1219 = vsel %vm754, %v1216, %v1218
        %v1223 = vmul.f32 %v429, %v1216
        %v1224 = vmul.f32 %v430, %v1219
        %v1225 = vmul.f32 %v431, %v1218
        %v1226 = vmul.f32 %v432, %v1216
        %v1227 = vmul.f32 %v433, %v1219
        %v1228 = vmul.f32 %v434, %v1218
        %v1235 = vrot.slane %v1223, 6
        %v1236 = vrot.slane %v1226, 6
        %v1237 = vsel %vm1166, %v1235, %v1236
        %v1238 = vrot.slane %v1224, 6
        %v1239 = vrot.slane %v1227, 6
        %v1240 = vsel %vm1166, %v1238, %v1239
        %v1241 = vrot.slane %v1225, 6
        %v1242 = vrot.slane %v1228, 6
        %v1243 = vsel %vm1166, %v1241, %v1242
        %1244 = vrot.lane.b32.xlu0 %v1237, 64
        %v1245 = vpop.permute.xlu0 %1244
        %1246 = vrot.lane.b32.xlu0 %v1240, 64
        %v1247 = vpop.permute.xlu0 %1246
        %1248 = vrot.lane.b32.xlu0 %v1243, 64
        %v1249 = vpop.permute.xlu0 %1248
        %v1250 = vsel %vm721, %v1245, %v1247
        %v1251 = vsel %vm721, %v1247, %v1249
        %v1255 = vadd.f32 %v996, %v1250
        %v1256 = vadd.f32 %v997, %v1251
        %v1257 = vadd.f32 %v998, %v1249
        %s1258 = scalar_lea.vmem %s2, 34
        %v1259 = vld [vmem:[%s1258] ss:$8 sm:$0x3]
        %v1261 = vlaneseq
        %v1262 = vshrl.u32 %v1261, 7
        %v1263 = vsub.s32 0, %v1262
        %v1264 = vrot.slane %v1259, %v1263
        %v1265 = vlaneseq
        %v1266 = vshrl.u32 %v1265, 7
        %v1267 = vsub.s32 1, %v1266
        %v1268 = vrot.slane %v1259, %v1267
        %1269 = vrot.lane.b32.xlu0 %v1264, 96
        %v1270 = vpop.permute.xlu0 %1269
        %1271 = vrot.lane.b32.xlu0 %v1268, 96
        %v1272 = vpop.permute.xlu0 %1271
        %v1273 = vsel %vm754, %v1270, %v1272
        %v1277 = vmul.f32 %v466, %v1270
        %v1278 = vmul.f32 %v467, %v1273
        %v1279 = vmul.f32 %v468, %v1272
        %v1280 = vmul.f32 %v469, %v1270
        %v1281 = vmul.f32 %v470, %v1273
        %v1282 = vmul.f32 %v471, %v1272
        %vm1289 = vcmask 1045504
        %v1290 = vrot.slane %v1277, 2
        %v1291 = vrot.slane %v1280, 2
        %v1292 = vsel %vm1289, %v1290, %v1291
        %v1293 = vrot.slane %v1278, 2
        %v1294 = vrot.slane %v1281, 2
        %v1295 = vsel %vm1289, %v1293, %v1294
        %v1296 = vrot.slane %v1279, 2
        %v1297 = vrot.slane %v1282, 2
        %v1298 = vsel %vm1289, %v1296, %v1297
        %1299 = vrot.lane.b32.xlu0 %v1292, 64
        %v1300 = vpop.permute.xlu0 %1299
        %1301 = vrot.lane.b32.xlu0 %v1295, 64
        %v1302 = vpop.permute.xlu0 %1301
        %1303 = vrot.lane.b32.xlu0 %v1298, 64
        %v1304 = vpop.permute.xlu0 %1303
        %1305 = vrot.lane.b32.xlu0 %v1291, 64
        %v1306 = vpop.permute.xlu0 %1305
        %1307 = vrot.lane.b32.xlu0 %v1294, 64
        %v1308 = vpop.permute.xlu0 %1307
        %1309 = vrot.lane.b32.xlu0 %v1297, 64
        %v1310 = vpop.permute.xlu0 %1309
        %v1311 = vsel %vm721, %v1300, %v1302
        %v1312 = vsel %vm721, %v1302, %v1304
        %v1313 = vsel %vm721, %v1306, %v1308
        %v1314 = vsel %vm721, %v1308, %v1310
        %v1321 = vadd.f32 %v1061, %v1311
        %v1322 = vadd.f32 %v1062, %v1312
        %v1323 = vadd.f32 %v1063, %v1304
        %v1324 = vadd.f32 %v1064, %v1313
        %v1325 = vadd.f32 %v1065, %v1314
        %v1326 = vadd.f32 %v1066, %v1310
        %s1327 = scalar_lea.vmem %s2, 35
        %v1328 = vld [vmem:[%s1327] ss:$8 sm:$0x3]
        %v1330 = vlaneseq
        %v1331 = vshrl.u32 %v1330, 7
        %v1332 = vsub.s32 0, %v1331
        %v1333 = vrot.slane %v1328, %v1332
        %v1334 = vlaneseq
        %v1335 = vshrl.u32 %v1334, 7
        %v1336 = vsub.s32 1, %v1335
        %v1337 = vrot.slane %v1328, %v1336
        %1338 = vrot.lane.b32.xlu0 %v1333, 96
        %v1339 = vpop.permute.xlu0 %1338
        %1340 = vrot.lane.b32.xlu0 %v1337, 96
        %v1341 = vpop.permute.xlu0 %1340
        %v1342 = vsel %vm754, %v1339, %v1341
        %v1346 = vmul.f32 %v503, %v1339
        %v1347 = vmul.f32 %v504, %v1342
        %v1348 = vmul.f32 %v505, %v1341
        %v1352 = vrot.slane %v1346, 2
        %v1353 = vrot.slane %v1347, 2
        %v1354 = vrot.slane %v1348, 2
        %1355 = vrot.lane.b32.xlu0 %v1352, 64
        %v1356 = vpop.permute.xlu0 %1355
        %1357 = vrot.lane.b32.xlu0 %v1353, 64
        %v1358 = vpop.permute.xlu0 %1357
        %1359 = vrot.lane.b32.xlu0 %v1354, 64
        %v1360 = vpop.permute.xlu0 %1359
        %v1361 = vsel %vm721, %v1356, %v1358
        %v1362 = vsel %vm721, %v1358, %v1360
        %v1366 = vadd.f32 %v1129, %v1361
        %v1367 = vadd.f32 %v1130, %v1362
        %v1368 = vadd.f32 %v1131, %v1360
        %v1369 = vadd.f32 %v1132, %v1361
        %v1370 = vadd.f32 %v1133, %v1362
        %v1371 = vadd.f32 %v1134, %v1360
        %s1372 = scalar_lea.vmem %s2, 36
        %v1373 = vld [vmem:[%s1372] ss:$8 sm:$0x3]
        %v1375 = vlaneseq
        %v1376 = vshrl.u32 %v1375, 7
        %v1377 = vsub.s32 0, %v1376
        %v1378 = vrot.slane %v1373, %v1377
        %v1379 = vlaneseq
        %v1380 = vshrl.u32 %v1379, 7
        %v1381 = vsub.s32 1, %v1380
        %v1382 = vrot.slane %v1373, %v1381
        %1383 = vrot.lane.b32.xlu0 %v1378, 96
        %v1384 = vpop.permute.xlu0 %1383
        %1385 = vrot.lane.b32.xlu0 %v1382, 96
        %v1386 = vpop.permute.xlu0 %1385
        %v1387 = vsel %vm754, %v1384, %v1386
        %v1391 = vmul.f32 %v531, %v1384
        %v1392 = vmul.f32 %v532, %v1387
        %v1393 = vmul.f32 %v533, %v1386
        %v1394 = vmul.f32 %v534, %v1384
        %v1395 = vmul.f32 %v535, %v1387
        %v1396 = vmul.f32 %v536, %v1386
        %v1403 = vrot.slane %v1391, 2
        %v1404 = vrot.slane %v1392, 2
        %v1405 = vrot.slane %v1393, 2
        %v1406 = vrot.slane %v1394, 2
        %v1407 = vsel %vm1289, %v1403, %v1406
        %v1408 = vrot.slane %v1395, 2
        %v1409 = vsel %vm1289, %v1404, %v1408
        %v1410 = vrot.slane %v1396, 2
        %v1411 = vsel %vm1289, %v1405, %v1410
        %1412 = vrot.lane.b32.xlu0 %v1403, 64
        %v1413 = vpop.permute.xlu0 %1412
        %1414 = vrot.lane.b32.xlu0 %v1404, 64
        %v1415 = vpop.permute.xlu0 %1414
        %1416 = vrot.lane.b32.xlu0 %v1405, 64
        %v1417 = vpop.permute.xlu0 %1416
        %1418 = vrot.lane.b32.xlu0 %v1407, 64
        %v1419 = vpop.permute.xlu0 %1418
        %1420 = vrot.lane.b32.xlu0 %v1409, 64
        %v1421 = vpop.permute.xlu0 %1420
        %1422 = vrot.lane.b32.xlu0 %v1411, 64
        %v1423 = vpop.permute.xlu0 %1422
        %v1424 = vsel %vm721, %v1413, %v1415
        %v1425 = vsel %vm721, %v1415, %v1417
        %v1426 = vsel %vm721, %v1419, %v1421
        %v1427 = vsel %vm721, %v1421, %v1423
        %v1434 = vadd.f32 %v1198, %v1424
        %v1435 = vadd.f32 %v1199, %v1425
        %v1436 = vadd.f32 %v1200, %v1417
        %v1437 = vadd.f32 %v1201, %v1426
        %v1438 = vadd.f32 %v1202, %v1427
        %v1439 = vadd.f32 %v1203, %v1423
        %s1440 = scalar_lea.vmem %s2, 37
        %v1441 = vld [vmem:[%s1440] ss:$8 sm:$0x3]
        %v1443 = vlaneseq
        %v1444 = vshrl.u32 %v1443, 7
        %v1445 = vsub.s32 0, %v1444
        %v1446 = vrot.slane %v1441, %v1445
        %v1447 = vlaneseq
        %v1448 = vshrl.u32 %v1447, 7
        %v1449 = vsub.s32 1, %v1448
        %v1450 = vrot.slane %v1441, %v1449
        %1451 = vrot.lane.b32.xlu0 %v1446, 96
        %v1452 = vpop.permute.xlu0 %1451
        %1453 = vrot.lane.b32.xlu0 %v1450, 96
        %v1454 = vpop.permute.xlu0 %1453
        %v1455 = vsel %vm754, %v1452, %v1454
        %v1459 = vmul.f32 %v590, %v1452
        %v1460 = vmul.f32 %v591, %v1455
        %v1461 = vmul.f32 %v592, %v1454
        %v1462 = vmul.f32 %v593, %v1452
        %v1463 = vmul.f32 %v594, %v1455
        %v1464 = vmul.f32 %v595, %v1454
        %v1471 = vrot.slane %v1459, 2
        %v1472 = vrot.slane %v1462, 2
        %v1473 = vsel %vm1289, %v1471, %v1472
        %v1474 = vrot.slane %v1460, 2
        %v1475 = vrot.slane %v1463, 2
        %v1476 = vsel %vm1289, %v1474, %v1475
        %v1477 = vrot.slane %v1461, 2
        %v1478 = vrot.slane %v1464, 2
        %v1479 = vsel %vm1289, %v1477, %v1478
        %1480 = vrot.lane.b32.xlu0 %v1473, 64
        %v1481 = vpop.permute.xlu0 %1480
        %1482 = vrot.lane.b32.xlu0 %v1476, 64
        %v1483 = vpop.permute.xlu0 %1482
        %1484 = vrot.lane.b32.xlu0 %v1479, 64
        %v1485 = vpop.permute.xlu0 %1484
        %v1486 = vsel %vm721, %v1481, %v1483
        %v1487 = vsel %vm721, %v1483, %v1485
        %v1491 = vadd.f32 %v1255, %v1486
        %v1492 = vadd.f32 %v1256, %v1487
        %v1493 = vadd.f32 %v1257, %v1485
        %s1494 = scalar_lea.vmem %s2, 38
        %v1495 = vld [vmem:[%s1494] ss:$8 sm:$0x3]
        %v1497 = vlaneseq
        %v1498 = vshrl.u32 %v1497, 7
        %v1499 = vsub.s32 0, %v1498
        %v1500 = vrot.slane %v1495, %v1499
        %v1501 = vlaneseq
        %v1502 = vshrl.u32 %v1501, 7
        %v1503 = vsub.s32 1, %v1502
        %v1504 = vrot.slane %v1495, %v1503
        %1505 = vrot.lane.b32.xlu0 %v1500, 96
        %v1506 = vpop.permute.xlu0 %1505
        %1507 = vrot.lane.b32.xlu0 %v1504, 96
        %v1508 = vpop.permute.xlu0 %1507
        %v1509 = vsel %vm754, %v1506, %v1508
        %v1513 = vmul.f32 %v648, %v1506
        %v1514 = vmul.f32 %v649, %v1509
        %v1515 = vmul.f32 %v650, %v1508
        %v1516 = vmul.f32 %v651, %v1506
        %v1517 = vmul.f32 %v652, %v1509
        %v1518 = vmul.f32 %v653, %v1508
        %v1525 = vrot.slane %v1513, 6
        %v1526 = vrot.slane %v1514, 6
        %v1527 = vrot.slane %v1515, 6
        %v1528 = vrot.slane %v1516, 6
        %v1529 = vsel %vm1166, %v1525, %v1528
        %v1530 = vrot.slane %v1517, 6
        %v1531 = vsel %vm1166, %v1526, %v1530
        %v1532 = vrot.slane %v1518, 6
        %v1533 = vsel %vm1166, %v1527, %v1532
        %1534 = vrot.lane.b32.xlu0 %v1525, 64
        %v1535 = vpop.permute.xlu0 %1534
        %1536 = vrot.lane.b32.xlu0 %v1526, 64
        %v1537 = vpop.permute.xlu0 %1536
        %1538 = vrot.lane.b32.xlu0 %v1527, 64
        %v1539 = vpop.permute.xlu0 %1538
        %1540 = vrot.lane.b32.xlu0 %v1529, 64
        %v1541 = vpop.permute.xlu0 %1540
        %1542 = vrot.lane.b32.xlu0 %v1531, 64
        %v1543 = vpop.permute.xlu0 %1542
        %1544 = vrot.lane.b32.xlu0 %v1533, 64
        %v1545 = vpop.permute.xlu0 %1544
        %v1546 = vsel %vm721, %v1535, %v1537
        %v1547 = vsel %vm721, %v1537, %v1539
        %v1548 = vsel %vm721, %v1541, %v1543
        %v1549 = vsel %vm721, %v1543, %v1545
        %v1556 = vadd.f32 %v1321, %v1546
        %v1557 = vadd.f32 %v1322, %v1547
        %v1558 = vadd.f32 %v1323, %v1539
        %v1559 = vadd.f32 %v1324, %v1548
        %v1560 = vadd.f32 %v1325, %v1549
        %v1561 = vadd.f32 %v1326, %v1545
        %s1562 = scalar_lea.vmem %s2, 48
        %v1563 = vld [vmem:[%s1562] ss:$8 sm:$0x3]
        %v1565 = vlaneseq
        %v1566 = vshrl.u32 %v1565, 7
        %v1567 = vsub.s32 0, %v1566
        %v1568 = vrot.slane %v1563, %v1567
        %v1569 = vlaneseq
        %v1570 = vshrl.u32 %v1569, 7
        %v1571 = vsub.s32 1, %v1570
        %v1572 = vrot.slane %v1563, %v1571
        %v1575 = vmul.f32 %v393, %v1568
        %v1576 = vmul.f32 %v394, %v1572
        %v1577 = vmul.f32 %v396, %v1568
        %v1578 = vmul.f32 %v397, %v1572
        %vm1583 = vcmask 1040384
        %v1584 = vrot.slane %v1575, 7
        %v1585 = vrot.slane %v1576, 7
        %v1586 = vrot.slane %v1577, 7
        %v1587 = vsel %vm1583, %v1584, %v1586
        %v1588 = vrot.slane %v1578, 7
        %v1589 = vsel %vm1583, %v1585, %v1588
        %1590 = vrot.lane.b32.xlu0 %v1584, 32
        %v1591 = vpop.permute.xlu0 %1590
        %1592 = vrot.lane.b32.xlu0 %v1585, 32
        %v1593 = vpop.permute.xlu0 %1592
        %1594 = vrot.lane.b32.xlu0 %v1587, 32
        %v1595 = vpop.permute.xlu0 %1594
        %1596 = vrot.lane.b32.xlu0 %v1589, 32
        %v1597 = vpop.permute.xlu0 %1596
        %v1598 = vsel %vm412, %v1591, %v1593
        %v1599 = vsel %vm412, %v1595, %v1597
        %v1606 = vadd.f32 %v1366, %v1591
        %v1607 = vadd.f32 %v1367, %v1598
        %v1608 = vadd.f32 %v1368, %v1593
        %v1609 = vadd.f32 %v1369, %v1595
        %v1610 = vadd.f32 %v1370, %v1599
        %v1611 = vadd.f32 %v1371, %v1597
        %s1612 = scalar_lea.vmem %s2, 49
        %v1613 = vld [vmem:[%s1612] ss:$8 sm:$0x3]
        %v1615 = vlaneseq
        %v1616 = vshrl.u32 %v1615, 7
        %v1617 = vsub.s32 0, %v1616
        %v1618 = vrot.slane %v1613, %v1617
        %v1619 = vlaneseq
        %v1620 = vshrl.u32 %v1619, 7
        %v1621 = vsub.s32 1, %v1620
        %v1622 = vrot.slane %v1613, %v1621
        %v1625 = vmul.f32 %v430, %v1618
        %v1626 = vmul.f32 %v431, %v1622
        %v1627 = vmul.f32 %v433, %v1618
        %v1628 = vmul.f32 %v434, %v1622
        %v1633 = vrot.slane %v1625, 7
        %v1634 = vrot.slane %v1626, 7
        %v1635 = vrot.slane %v1627, 7
        %v1636 = vsel %vm1583, %v1633, %v1635
        %v1637 = vrot.slane %v1628, 7
        %v1638 = vsel %vm1583, %v1634, %v1637
        %1639 = vrot.lane.b32.xlu0 %v1633, 32
        %v1640 = vpop.permute.xlu0 %1639
        %1641 = vrot.lane.b32.xlu0 %v1634, 32
        %v1642 = vpop.permute.xlu0 %1641
        %1643 = vrot.lane.b32.xlu0 %v1636, 32
        %v1644 = vpop.permute.xlu0 %1643
        %1645 = vrot.lane.b32.xlu0 %v1638, 32
        %v1646 = vpop.permute.xlu0 %1645
        %v1647 = vsel %vm412, %v1640, %v1642
        %v1648 = vsel %vm412, %v1644, %v1646
        %v1655 = vadd.f32 %v1434, %v1640
        %v1656 = vadd.f32 %v1435, %v1647
        %v1657 = vadd.f32 %v1436, %v1642
        %v1658 = vadd.f32 %v1437, %v1644
        %v1659 = vadd.f32 %v1438, %v1648
        %v1660 = vadd.f32 %v1439, %v1646
        %s1661 = scalar_lea.vmem %s2, 50
        %v1662 = vld [vmem:[%s1661] ss:$8 sm:$0x3]
        %v1664 = vlaneseq
        %v1665 = vshrl.u32 %v1664, 7
        %v1666 = vsub.s32 0, %v1665
        %v1667 = vrot.slane %v1662, %v1666
        %v1668 = vlaneseq
        %v1669 = vshrl.u32 %v1668, 7
        %v1670 = vsub.s32 1, %v1669
        %v1671 = vrot.slane %v1662, %v1670
        %v1674 = vmul.f32 %v467, %v1667
        %v1675 = vmul.f32 %v468, %v1671
        %v1676 = vmul.f32 %v470, %v1667
        %v1677 = vmul.f32 %v471, %v1671
        %v1682 = vrot.slane %v1674, 7
        %v1683 = vrot.slane %v1676, 7
        %v1684 = vsel %vm1583, %v1682, %v1683
        %v1685 = vrot.slane %v1675, 7
        %v1686 = vrot.slane %v1677, 7
        %v1687 = vsel %vm1583, %v1685, %v1686
        %1688 = vrot.lane.b32.xlu0 %v1684, 32
        %v1689 = vpop.permute.xlu0 %1688
        %1690 = vrot.lane.b32.xlu0 %v1687, 32
        %v1691 = vpop.permute.xlu0 %1690
        %v1692 = vsel %vm412, %v1689, %v1691
        %v1696 = vadd.f32 %v1491, %v1689
        %v1697 = vadd.f32 %v1492, %v1692
        %v1698 = vadd.f32 %v1493, %v1691
        %s1699 = scalar_lea.vmem %s2, 51
        %v1700 = vld [vmem:[%s1699] ss:$8 sm:$0x3]
        %v1702 = vlaneseq
        %v1703 = vshrl.u32 %v1702, 7
        %v1704 = vsub.s32 0, %v1703
        %v1705 = vrot.slane %v1700, %v1704
        %v1706 = vlaneseq
        %v1707 = vshrl.u32 %v1706, 7
        %v1708 = vsub.s32 1, %v1707
        %v1709 = vrot.slane %v1700, %v1708
        %v1712 = vmul.f32 %v504, %v1705
        %v1713 = vmul.f32 %v505, %v1709
        %v1716 = vrot.slane %v1712, 3
        %v1717 = vrot.slane %v1713, 3
        %1718 = vrot.lane.b32.xlu0 %v1716, 32
        %v1719 = vpop.permute.xlu0 %1718
        %1720 = vrot.lane.b32.xlu0 %v1717, 32
        %v1721 = vpop.permute.xlu0 %1720
        %v1722 = vsel %vm412, %v1719, %v1721
        %v1726 = vadd.f32 %v1556, %v1719
        %v1727 = vadd.f32 %v1557, %v1722
        %v1728 = vadd.f32 %v1558, %v1721
        %v1729 = vadd.f32 %v1559, %v1719
        %v1730 = vadd.f32 %v1560, %v1722
        %v1731 = vadd.f32 %v1561, %v1721
        %s1732 = scalar_lea.vmem %s2, 52
        %v1733 = vld [vmem:[%s1732] ss:$8 sm:$0x3]
        %v1735 = vlaneseq
        %v1736 = vshrl.u32 %v1735, 7
        %v1737 = vsub.s32 0, %v1736
        %v1738 = vrot.slane %v1733, %v1737
        %v1739 = vlaneseq
        %v1740 = vshrl.u32 %v1739, 7
        %v1741 = vsub.s32 1, %v1740
        %v1742 = vrot.slane %v1733, %v1741
        %v1745 = vmul.f32 %v532, %v1738
        %v1746 = vmul.f32 %v533, %v1742
        %v1747 = vmul.f32 %v535, %v1738
        %v1748 = vmul.f32 %v536, %v1742
        %vm1753 = vcmask 1044480
        %v1754 = vrot.slane %v1745, 3
        %v1755 = vrot.slane %v1746, 3
        %v1756 = vrot.slane %v1747, 3
        %v1757 = vsel %vm1753, %v1754, %v1756
        %v1758 = vrot.slane %v1748, 3
        %v1759 = vsel %vm1753, %v1755, %v1758
        %1760 = vrot.lane.b32.xlu0 %v1754, 32
        %v1761 = vpop.permute.xlu0 %1760
        %1762 = vrot.lane.b32.xlu0 %v1755, 32
        %v1763 = vpop.permute.xlu0 %1762
        %1764 = vrot.lane.b32.xlu0 %v1757, 32
        %v1765 = vpop.permute.xlu0 %1764
        %1766 = vrot.lane.b32.xlu0 %v1759, 32
        %v1767 = vpop.permute.xlu0 %1766
        %v1768 = vsel %vm412, %v1761, %v1763
        %v1769 = vsel %vm412, %v1765, %v1767
        %v1776 = vadd.f32 %v1606, %v1761
        %v1777 = vadd.f32 %v1607, %v1768
        %v1778 = vadd.f32 %v1608, %v1763
        %v1779 = vadd.f32 %v1609, %v1765
        %v1780 = vadd.f32 %v1610, %v1769
        %v1781 = vadd.f32 %v1611, %v1767
        %s1782 = scalar_lea.vmem %s2, 53
        %v1783 = vld [vmem:[%s1782] ss:$8 sm:$0x3]
        %v1785 = vlaneseq
        %v1786 = vshrl.u32 %v1785, 7
        %v1787 = vsub.s32 0, %v1786
        %v1788 = vrot.slane %v1783, %v1787
        %v1789 = vlaneseq
        %v1790 = vshrl.u32 %v1789, 7
        %v1791 = vsub.s32 1, %v1790
        %v1792 = vrot.slane %v1783, %v1791
        %v1795 = vmul.f32 %v591, %v1788
        %v1796 = vmul.f32 %v592, %v1792
        %v1797 = vmul.f32 %v594, %v1788
        %v1798 = vmul.f32 %v595, %v1792
        %v1803 = vrot.slane %v1795, 3
        %v1804 = vrot.slane %v1796, 3
        %v1805 = vrot.slane %v1797, 3
        %v1806 = vsel %vm1753, %v1803, %v1805
        %v1807 = vrot.slane %v1798, 3
        %v1808 = vsel %vm1753, %v1804, %v1807
        %1809 = vrot.lane.b32.xlu0 %v1803, 32
        %v1810 = vpop.permute.xlu0 %1809
        %1811 = vrot.lane.b32.xlu0 %v1804, 32
        %v1812 = vpop.permute.xlu0 %1811
        %1813 = vrot.lane.b32.xlu0 %v1806, 32
        %v1814 = vpop.permute.xlu0 %1813
        %1815 = vrot.lane.b32.xlu0 %v1808, 32
        %v1816 = vpop.permute.xlu0 %1815
        %v1817 = vsel %vm412, %v1810, %v1812
        %v1818 = vsel %vm412, %v1814, %v1816
        %v1825 = vadd.f32 %v1655, %v1810
        %v1826 = vadd.f32 %v1656, %v1817
        %v1827 = vadd.f32 %v1657, %v1812
        %v1828 = vadd.f32 %v1658, %v1814
        %v1829 = vadd.f32 %v1659, %v1818
        %v1830 = vadd.f32 %v1660, %v1816
        %s1831 = scalar_lea.vmem %s2, 54
        %v1832 = vld [vmem:[%s1831] ss:$8 sm:$0x3]
        %v1834 = vlaneseq
        %v1835 = vshrl.u32 %v1834, 7
        %v1836 = vsub.s32 0, %v1835
        %v1837 = vrot.slane %v1832, %v1836
        %v1838 = vlaneseq
        %v1839 = vshrl.u32 %v1838, 7
        %v1840 = vsub.s32 1, %v1839
        %v1841 = vrot.slane %v1832, %v1840
        %v1844 = vmul.f32 %v649, %v1837
        %v1845 = vmul.f32 %v650, %v1841
        %v1846 = vmul.f32 %v652, %v1837
        %v1847 = vmul.f32 %v653, %v1841
        %v1852 = vrot.slane %v1844, 3
        %v1853 = vrot.slane %v1846, 3
        %v1854 = vsel %vm1753, %v1852, %v1853
        %v1855 = vrot.slane %v1845, 3
        %v1856 = vrot.slane %v1847, 3
        %v1857 = vsel %vm1753, %v1855, %v1856
        %1858 = vrot.lane.b32.xlu0 %v1854, 32
        %v1859 = vpop.permute.xlu0 %1858
        %1860 = vrot.lane.b32.xlu0 %v1857, 32
        %v1861 = vpop.permute.xlu0 %1860
        %v1862 = vsel %vm412, %v1859, %v1861
        %v1866 = vadd.f32 %v1696, %v1859
        %v1867 = vadd.f32 %v1697, %v1862
        %v1868 = vadd.f32 %v1698, %v1861
        %v1869 = vld [vmem:[#allocation2 + $0x18] sm:$0xe0]
        %v1870 = vld [vmem:[#allocation2 + $0x38] sm:$0x1f]
        %s1871 = scalar_lea.vmem %s2, 64
        %v1872 = vld [vmem:[%s1871] ss:$8 sm:$0x3]
        %v1874 = vlaneseq
        %v1875 = vshrl.u32 %v1874, 7
        %v1876 = vsub.s32 0, %v1875
        %v1877 = vrot.slane %v1872, %v1876
        %v1878 = vlaneseq
        %v1879 = vshrl.u32 %v1878, 7
        %v1880 = vsub.s32 1, %v1879
        %v1881 = vrot.slane %v1872, %v1880
        %1882 = vrot.lane.b32.xlu0 %v1877, 32
        %v1883 = vpop.permute.xlu0 %1882
        %1884 = vrot.lane.b32.xlu0 %v1881, 32
        %v1885 = vpop.permute.xlu0 %1884
        %v1886 = vsel %vm412, %v1883, %v1885
        %v1890 = vmul.f32 %v393, %v1883
        %v1891 = vmul.f32 %v394, %v1886
        %v1892 = vmul.f32 %v1869, %v1885
        %v1893 = vmul.f32 %v396, %v1883
        %v1894 = vmul.f32 %v397, %v1886
        %v1895 = vmul.f32 %v1870, %v1885
        %v1896 = vadd.f32 %v1726, %v1890
        %v1897 = vadd.f32 %v1727, %v1891
        %v1898 = vadd.f32 %v1728, %v1892
        %v1899 = vadd.f32 %v1729, %v1893
        %v1900 = vadd.f32 %v1730, %v1894
        %v1901 = vadd.f32 %v1731, %v1895
        %v1902 = vld [vmem:[#allocation2 + $0x18] sm:$0xc0]
        %v1903 = vld [vmem:[#allocation2 + $0x38] sm:$0x3f]
        %s1904 = scalar_lea.vmem %s2, 65
        %v1905 = vld [vmem:[%s1904] ss:$8 sm:$0x3]
        %v1907 = vlaneseq
        %v1908 = vshrl.u32 %v1907, 7
        %v1909 = vsub.s32 0, %v1908
        %v1910 = vrot.slane %v1905, %v1909
        %v1911 = vlaneseq
        %v1912 = vshrl.u32 %v1911, 7
        %v1913 = vsub.s32 1, %v1912
        %v1914 = vrot.slane %v1905, %v1913
        %1915 = vrot.lane.b32.xlu0 %v1910, 32
        %v1916 = vpop.permute.xlu0 %1915
        %1917 = vrot.lane.b32.xlu0 %v1914, 32
        %v1918 = vpop.permute.xlu0 %1917
        %v1919 = vsel %vm412, %v1916, %v1918
        %v1923 = vmul.f32 %v430, %v1916
        %v1924 = vmul.f32 %v431, %v1919
        %v1925 = vmul.f32 %v1902, %v1918
        %v1926 = vmul.f32 %v433, %v1916
        %v1927 = vmul.f32 %v434, %v1919
        %v1928 = vmul.f32 %v1903, %v1918
        %v1929 = vadd.f32 %v1776, %v1923
        %v1930 = vadd.f32 %v1777, %v1924
        %v1931 = vadd.f32 %v1778, %v1925
        %v1932 = vadd.f32 %v1779, %v1926
        %v1933 = vadd.f32 %v1780, %v1927
        %v1934 = vadd.f32 %v1781, %v1928
        %v1935 = vld [vmem:[#allocation2 + $0x18] sm:$0x80]
        %v1936 = vld [vmem:[#allocation2 + $0x38] sm:$0x7f]
        %s1937 = scalar_lea.vmem %s2, 66
        %v1938 = vld [vmem:[%s1937] ss:$8 sm:$0x3]
        %v1940 = vlaneseq
        %v1941 = vshrl.u32 %v1940, 7
        %v1942 = vsub.s32 0, %v1941
        %v1943 = vrot.slane %v1938, %v1942
        %v1944 = vlaneseq
        %v1945 = vshrl.u32 %v1944, 7
        %v1946 = vsub.s32 1, %v1945
        %v1947 = vrot.slane %v1938, %v1946
        %1948 = vrot.lane.b32.xlu0 %v1943, 32
        %v1949 = vpop.permute.xlu0 %1948
        %1950 = vrot.lane.b32.xlu0 %v1947, 32
        %v1951 = vpop.permute.xlu0 %1950
        %v1952 = vsel %vm412, %v1949, %v1951
        %v1956 = vmul.f32 %v467, %v1949
        %v1957 = vmul.f32 %v468, %v1952
        %v1958 = vmul.f32 %v1935, %v1951
        %v1959 = vmul.f32 %v470, %v1949
        %v1960 = vmul.f32 %v471, %v1952
        %v1961 = vmul.f32 %v1936, %v1951
        %v1962 = vadd.f32 %v1825, %v1956
        %v1963 = vadd.f32 %v1826, %v1957
        %v1964 = vadd.f32 %v1827, %v1958
        %v1965 = vadd.f32 %v1828, %v1959
        %v1966 = vadd.f32 %v1829, %v1960
        %v1967 = vadd.f32 %v1830, %v1961
        %v1968 = vld [vmem:[#allocation2 + $0x38] sm:$0xff]
        %s1969 = scalar_lea.vmem %s2, 67
        %v1970 = vld [vmem:[%s1969] ss:$8 sm:$0x3]
        %v1972 = vlaneseq
        %v1973 = vshrl.u32 %v1972, 7
        %v1974 = vsub.s32 0, %v1973
        %v1975 = vrot.slane %v1970, %v1974
        %v1976 = vlaneseq
        %v1977 = vshrl.u32 %v1976, 7
        %v1978 = vsub.s32 1, %v1977
        %v1979 = vrot.slane %v1970, %v1978
        %1980 = vrot.lane.b32.xlu0 %v1975, 32
        %v1981 = vpop.permute.xlu0 %1980
        %1982 = vrot.lane.b32.xlu0 %v1979, 32
        %v1983 = vpop.permute.xlu0 %1982
        %v1984 = vsel %vm412, %v1981, %v1983
        %v1988 = vmul.f32 %v504, %v1981
        %v1989 = vmul.f32 %v505, %v1984
        %v1990 = vmul.f32 %v1968, %v1983
        %v1991 = vadd.f32 %v1866, %v1988
        %v1992 = vadd.f32 %v1867, %v1989
        %v1993 = vadd.f32 %v1868, %v1990
        %v1994 = vld [vmem:[#allocation2 + $0x28] sm:$0xfe]
        %v1995 = vld [vmem:[#allocation2 + $0x30] sm:$0xfe]
        %v1996 = vld [vmem:[#allocation2 + $0x38] sm:$0xfe]
        %v1997 = vld [vmem:[#allocation2 + $0x48] sm:$0x1]
        %v1998 = vld [vmem:[#allocation2 + $0x50] sm:$0x1]
        %v1999 = vld [vmem:[#allocation2 + $0x58] sm:$0x1]
        %s2000 = scalar_lea.vmem %s2, 68
        %v2001 = vld [vmem:[%s2000] ss:$8 sm:$0x3]
        %v2003 = vlaneseq
        %v2004 = vshrl.u32 %v2003, 7
        %v2005 = vsub.s32 0, %v2004
        %v2006 = vrot.slane %v2001, %v2005
        %v2007 = vlaneseq
        %v2008 = vshrl.u32 %v2007, 7
        %v2009 = vsub.s32 1, %v2008
        %v2010 = vrot.slane %v2001, %v2009
        %2011 = vrot.lane.b32.xlu0 %v2006, 32
        %v2012 = vpop.permute.xlu0 %2011
        %2013 = vrot.lane.b32.xlu0 %v2010, 32
        %v2014 = vpop.permute.xlu0 %2013
        %v2015 = vsel %vm412, %v2012, %v2014
        %v2019 = vmul.f32 %v1994, %v2012
        %v2020 = vmul.f32 %v1995, %v2015
        %v2021 = vmul.f32 %v1996, %v2014
        %v2022 = vmul.f32 %v1997, %v2012
        %v2023 = vmul.f32 %v1998, %v2015
        %v2024 = vmul.f32 %v1999, %v2014
        %v2031 = vrot.slane %v2019, 4
        %v2032 = vrot.slane %v2020, 4
        %v2033 = vrot.slane %v2021, 4
        %v2034 = vrot.slane %v2022, 4
        %v2035 = vsel %vm568, %v2031, %v2034
        %v2036 = vrot.slane %v2023, 4
        %v2037 = vsel %vm568, %v2032, %v2036
        %v2038 = vrot.slane %v2024, 4
        %v2039 = vsel %vm568, %v2033, %v2038
        %v2046 = vadd.f32 %v1896, %v2031
        %v2047 = vadd.f32 %v1897, %v2032
        %v2048 = vadd.f32 %v1898, %v2033
        %v2049 = vadd.f32 %v1899, %v2035
        %v2050 = vadd.f32 %v1900, %v2037
        %v2051 = vadd.f32 %v1901, %v2039
        %v2052 = vld [vmem:[#allocation2 + $0x28] sm:$0xfc]
        %v2053 = vld [vmem:[#allocation2 + $0x30] sm:$0xfc]
        %v2054 = vld [vmem:[#allocation2 + $0x38] sm:$0xfc]
        %v2055 = vld [vmem:[#allocation2 + $0x48] sm:$0x3]
        %v2056 = vld [vmem:[#allocation2 + $0x50] sm:$0x3]
        %v2057 = vld [vmem:[#allocation2 + $0x58] sm:$0x3]
        %s2058 = scalar_lea.vmem %s2, 69
        %v2059 = vld [vmem:[%s2058] ss:$8 sm:$0x3]
        %v2061 = vlaneseq
        %v2062 = vshrl.u32 %v2061, 7
        %v2063 = vsub.s32 0, %v2062
        %v2064 = vrot.slane %v2059, %v2063
        %v2065 = vlaneseq
        %v2066 = vshrl.u32 %v2065, 7
        %v2067 = vsub.s32 1, %v2066
        %v2068 = vrot.slane %v2059, %v2067
        %2069 = vrot.lane.b32.xlu0 %v2064, 32
        %v2070 = vpop.permute.xlu0 %2069
        %2071 = vrot.lane.b32.xlu0 %v2068, 32
        %v2072 = vpop.permute.xlu0 %2071
        %v2073 = vsel %vm412, %v2070, %v2072
        %v2077 = vmul.f32 %v2052, %v2070
        %v2078 = vmul.f32 %v2053, %v2073
        %v2079 = vmul.f32 %v2054, %v2072
        %v2080 = vmul.f32 %v2055, %v2070
        %v2081 = vmul.f32 %v2056, %v2073
        %v2082 = vmul.f32 %v2057, %v2072
        %v2089 = vrot.slane %v2077, 4
        %v2090 = vrot.slane %v2078, 4
        %v2091 = vrot.slane %v2079, 4
        %v2092 = vrot.slane %v2080, 4
        %v2093 = vsel %vm568, %v2089, %v2092
        %v2094 = vrot.slane %v2081, 4
        %v2095 = vsel %vm568, %v2090, %v2094
        %v2096 = vrot.slane %v2082, 4
        %v2097 = vsel %vm568, %v2091, %v2096
        %v2104 = vadd.f32 %v1929, %v2089
        %v2105 = vadd.f32 %v1930, %v2090
        %v2106 = vadd.f32 %v1931, %v2091
        %v2107 = vadd.f32 %v1932, %v2093
        %v2108 = vadd.f32 %v1933, %v2095
        %v2109 = vadd.f32 %v1934, %v2097
        %v2110 = vld [vmem:[#allocation2 + $0x28] sm:$0xf8]
        %v2111 = vld [vmem:[#allocation2 + $0x30] sm:$0xf8]
        %v2112 = vld [vmem:[#allocation2 + $0x38] sm:$0xf8]
        %v2113 = vld [vmem:[#allocation2 + $0x48] sm:$0x7]
        %v2114 = vld [vmem:[#allocation2 + $0x50] sm:$0x7]
        %v2115 = vld [vmem:[#allocation2 + $0x58] sm:$0x7]
        %s2116 = scalar_lea.vmem %s2, 70
        %v2117 = vld [vmem:[%s2116] ss:$8 sm:$0x3]
        %v2119 = vlaneseq
        %v2120 = vshrl.u32 %v2119, 7
        %v2121 = vsub.s32 0, %v2120
        %v2122 = vrot.slane %v2117, %v2121
        %v2123 = vlaneseq
        %v2124 = vshrl.u32 %v2123, 7
        %v2125 = vsub.s32 1, %v2124
        %v2126 = vrot.slane %v2117, %v2125
        %2127 = vrot.lane.b32.xlu0 %v2122, 32
        %v2128 = vpop.permute.xlu0 %2127
        %2129 = vrot.lane.b32.xlu0 %v2126, 32
        %v2130 = vpop.permute.xlu0 %2129
        %v2131 = vsel %vm412, %v2128, %v2130
        %v2135 = vmul.f32 %v2110, %v2128
        %v2136 = vmul.f32 %v2111, %v2131
        %v2137 = vmul.f32 %v2112, %v2130
        %v2138 = vmul.f32 %v2113, %v2128
        %v2139 = vmul.f32 %v2114, %v2131
        %v2140 = vmul.f32 %v2115, %v2130
        %v2147 = vrot.slane %v2135, 4
        %v2148 = vrot.slane %v2136, 4
        %v2149 = vrot.slane %v2137, 4
        %v2150 = vrot.slane %v2138, 4
        %v2151 = vsel %vm568, %v2147, %v2150
        %v2152 = vrot.slane %v2139, 4
        %v2153 = vsel %vm568, %v2148, %v2152
        %v2154 = vrot.slane %v2140, 4
        %v2155 = vsel %vm568, %v2149, %v2154
        %v2162 = vadd.f32 %v1962, %v2147
        %v2163 = vadd.f32 %v1963, %v2148
        %v2164 = vadd.f32 %v1964, %v2149
        %v2165 = vadd.f32 %v1965, %v2151
        %v2166 = vadd.f32 %v1966, %v2153
        %v2167 = vadd.f32 %v1967, %v2155
        %s2168 = scalar_lea.vmem %s2, 80
        %v2169 = vld [vmem:[%s2168] ss:$8 sm:$0x3]
        %v2171 = vlaneseq
        %v2172 = vshrl.u32 %v2171, 7
        %v2173 = vsub.s32 0, %v2172
        %v2174 = vrot.slane %v2169, %v2173
        %v2175 = vlaneseq
        %v2176 = vshrl.u32 %v2175, 7
        %v2177 = vsub.s32 1, %v2176
        %v2178 = vrot.slane %v2169, %v2177
        %2179 = vrot.lane.b32.xlu0 %v2174, 64
        %v2180 = vpop.permute.xlu0 %2179
        %2181 = vrot.lane.b32.xlu0 %v2178, 64
        %v2182 = vpop.permute.xlu0 %2181
        %v2183 = vsel %vm721, %v2180, %v2182
        %v2187 = vmul.f32 %v393, %v2180
        %v2188 = vmul.f32 %v394, %v2183
        %v2189 = vmul.f32 %v1869, %v2182
        %v2190 = vmul.f32 %v396, %v2180
        %v2191 = vmul.f32 %v397, %v2183
        %v2192 = vmul.f32 %v1870, %v2182
        %v2199 = vrot.slane %v2187, 5
        %v2200 = vrot.slane %v2190, 5
        %v2201 = vsel %vm738, %v2199, %v2200
        %v2202 = vrot.slane %v2188, 5
        %v2203 = vrot.slane %v2191, 5
        %v2204 = vsel %vm738, %v2202, %v2203
        %v2205 = vrot.slane %v2189, 5
        %v2206 = vrot.slane %v2192, 5
        %v2207 = vsel %vm738, %v2205, %v2206
        %2208 = vrot.lane.b32.xlu0 %v2201, 96
        %v2209 = vpop.permute.xlu0 %2208
        %2210 = vrot.lane.b32.xlu0 %v2204, 96
        %v2211 = vpop.permute.xlu0 %2210
        %2212 = vrot.lane.b32.xlu0 %v2207, 96
        %v2213 = vpop.permute.xlu0 %2212
        %v2214 = vsel %vm754, %v2209, %v2211
        %v2215 = vsel %vm754, %v2211, %v2213
        %v2219 = vadd.f32 %v1991, %v2214
        %v2220 = vadd.f32 %v1992, %v2215
        %v2221 = vadd.f32 %v1993, %v2213
        %s2222 = scalar_lea.vmem %s2, 81
        %v2223 = vld [vmem:[%s2222] ss:$8 sm:$0x3]
        %v2225 = vlaneseq
        %v2226 = vshrl.u32 %v2225, 7
        %v2227 = vsub.s32 0, %v2226
        %v2228 = vrot.slane %v2223, %v2227
        %v2229 = vlaneseq
        %v2230 = vshrl.u32 %v2229, 7
        %v2231 = vsub.s32 1, %v2230
        %v2232 = vrot.slane %v2223, %v2231
        %2233 = vrot.lane.b32.xlu0 %v2228, 64
        %v2234 = vpop.permute.xlu0 %2233
        %2235 = vrot.lane.b32.xlu0 %v2232, 64
        %v2236 = vpop.permute.xlu0 %2235
        %v2237 = vsel %vm721, %v2234, %v2236
        %v2241 = vmul.f32 %v430, %v2234
        %v2242 = vmul.f32 %v431, %v2237
        %v2243 = vmul.f32 %v1902, %v2236
        %v2244 = vmul.f32 %v433, %v2234
        %v2245 = vmul.f32 %v434, %v2237
        %v2246 = vmul.f32 %v1903, %v2236
        %v2253 = vrot.slane %v2241, 1
        %v2254 = vrot.slane %v2244, 1
        %v2255 = vsel %vm794, %v2253, %v2254
        %v2256 = vrot.slane %v2242, 1
        %v2257 = vrot.slane %v2245, 1
        %v2258 = vsel %vm794, %v2256, %v2257
        %v2259 = vrot.slane %v2243, 1
        %v2260 = vrot.slane %v2246, 1
        %v2261 = vsel %vm794, %v2259, %v2260
        %2262 = vrot.lane.b32.xlu0 %v2255, 96
        %v2263 = vpop.permute.xlu0 %2262
        %2264 = vrot.lane.b32.xlu0 %v2258, 96
        %v2265 = vpop.permute.xlu0 %2264
        %2266 = vrot.lane.b32.xlu0 %v2261, 96
        %v2267 = vpop.permute.xlu0 %2266
        %2268 = vrot.lane.b32.xlu0 %v2254, 96
        %v2269 = vpop.permute.xlu0 %2268
        %2270 = vrot.lane.b32.xlu0 %v2257, 96
        %v2271 = vpop.permute.xlu0 %2270
        %2272 = vrot.lane.b32.xlu0 %v2260, 96
        %v2273 = vpop.permute.xlu0 %2272
        %v2274 = vsel %vm754, %v2263, %v2265
        %v2275 = vsel %vm754, %v2265, %v2267
        %v2276 = vsel %vm754, %v2269, %v2271
        %v2277 = vsel %vm754, %v2271, %v2273
        %v2284 = vadd.f32 %v2046, %v2274
        %v2285 = vadd.f32 %v2047, %v2275
        %v2286 = vadd.f32 %v2048, %v2267
        %v2287 = vadd.f32 %v2049, %v2276
        %v2288 = vadd.f32 %v2050, %v2277
        %v2289 = vadd.f32 %v2051, %v2273
        %s2290 = scalar_lea.vmem %s2, 82
        %v2291 = vld [vmem:[%s2290] ss:$8 sm:$0x3]
        %v2293 = vlaneseq
        %v2294 = vshrl.u32 %v2293, 7
        %v2295 = vsub.s32 0, %v2294
        %v2296 = vrot.slane %v2291, %v2295
        %v2297 = vlaneseq
        %v2298 = vshrl.u32 %v2297, 7
        %v2299 = vsub.s32 1, %v2298
        %v2300 = vrot.slane %v2291, %v2299
        %2301 = vrot.lane.b32.xlu0 %v2296, 64
        %v2302 = vpop.permute.xlu0 %2301
        %2303 = vrot.lane.b32.xlu0 %v2300, 64
        %v2304 = vpop.permute.xlu0 %2303
        %v2305 = vsel %vm721, %v2302, %v2304
        %v2309 = vmul.f32 %v467, %v2302
        %v2310 = vmul.f32 %v468, %v2305
        %v2311 = vmul.f32 %v1935, %v2304
        %v2312 = vmul.f32 %v470, %v2302
        %v2313 = vmul.f32 %v471, %v2305
        %v2314 = vmul.f32 %v1936, %v2304
        %v2321 = vrot.slane %v2309, 1
        %v2322 = vrot.slane %v2312, 1
        %v2323 = vsel %vm794, %v2321, %v2322
        %v2324 = vrot.slane %v2310, 1
        %v2325 = vrot.slane %v2313, 1
        %v2326 = vsel %vm794, %v2324, %v2325
        %v2327 = vrot.slane %v2311, 1
        %v2328 = vrot.slane %v2314, 1
        %v2329 = vsel %vm794, %v2327, %v2328
        %2330 = vrot.lane.b32.xlu0 %v2323, 96
        %v2331 = vpop.permute.xlu0 %2330
        %2332 = vrot.lane.b32.xlu0 %v2326, 96
        %v2333 = vpop.permute.xlu0 %2332
        %2334 = vrot.lane.b32.xlu0 %v2329, 96
        %v2335 = vpop.permute.xlu0 %2334
        %2336 = vrot.lane.b32.xlu0 %v2322, 96
        %v2337 = vpop.permute.xlu0 %2336
        %2338 = vrot.lane.b32.xlu0 %v2325, 96
        %v2339 = vpop.permute.xlu0 %2338
        %2340 = vrot.lane.b32.xlu0 %v2328, 96
        %v2341 = vpop.permute.xlu0 %2340
        %v2342 = vsel %vm754, %v2331, %v2333
        %v2343 = vsel %vm754, %v2333, %v2335
        %v2344 = vsel %vm754, %v2337, %v2339
        %v2345 = vsel %vm754, %v2339, %v2341
        %v2352 = vadd.f32 %v2104, %v2342
        %v2353 = vadd.f32 %v2105, %v2343
        %v2354 = vadd.f32 %v2106, %v2335
        %v2355 = vadd.f32 %v2107, %v2344
        %v2356 = vadd.f32 %v2108, %v2345
        %v2357 = vadd.f32 %v2109, %v2341
        %s2358 = scalar_lea.vmem %s2, 83
        %v2359 = vld [vmem:[%s2358] ss:$8 sm:$0x3]
        %v2361 = vlaneseq
        %v2362 = vshrl.u32 %v2361, 7
        %v2363 = vsub.s32 0, %v2362
        %v2364 = vrot.slane %v2359, %v2363
        %v2365 = vlaneseq
        %v2366 = vshrl.u32 %v2365, 7
        %v2367 = vsub.s32 1, %v2366
        %v2368 = vrot.slane %v2359, %v2367
        %2369 = vrot.lane.b32.xlu0 %v2364, 64
        %v2370 = vpop.permute.xlu0 %2369
        %2371 = vrot.lane.b32.xlu0 %v2368, 64
        %v2372 = vpop.permute.xlu0 %2371
        %v2373 = vsel %vm721, %v2370, %v2372
        %v2377 = vmul.f32 %v504, %v2370
        %v2378 = vmul.f32 %v505, %v2373
        %v2379 = vmul.f32 %v1968, %v2372
        %v2383 = vrot.slane %v2377, 1
        %v2384 = vrot.slane %v2378, 1
        %v2385 = vrot.slane %v2379, 1
        %2386 = vrot.lane.b32.xlu0 %v2383, 96
        %v2387 = vpop.permute.xlu0 %2386
        %2388 = vrot.lane.b32.xlu0 %v2384, 96
        %v2389 = vpop.permute.xlu0 %2388
        %2390 = vrot.lane.b32.xlu0 %v2385, 96
        %v2391 = vpop.permute.xlu0 %2390
        %v2392 = vsel %vm754, %v2387, %v2389
        %v2393 = vsel %vm754, %v2389, %v2391
        %v2397 = vadd.f32 %v2162, %v2392
        %v2398 = vadd.f32 %v2163, %v2393
        %v2399 = vadd.f32 %v2164, %v2391
        %v2400 = vadd.f32 %v2165, %v2392
        %v2401 = vadd.f32 %v2166, %v2393
        %v2402 = vadd.f32 %v2167, %v2391
        %s2403 = scalar_lea.vmem %s2, 84
        %v2404 = vld [vmem:[%s2403] ss:$8 sm:$0x3]
        %v2406 = vlaneseq
        %v2407 = vshrl.u32 %v2406, 7
        %v2408 = vsub.s32 0, %v2407
        %v2409 = vrot.slane %v2404, %v2408
        %v2410 = vlaneseq
        %v2411 = vshrl.u32 %v2410, 7
        %v2412 = vsub.s32 1, %v2411
        %v2413 = vrot.slane %v2404, %v2412
        %2414 = vrot.lane.b32.xlu0 %v2409, 64
        %v2415 = vpop.permute.xlu0 %2414
        %2416 = vrot.lane.b32.xlu0 %v2413, 64
        %v2417 = vpop.permute.xlu0 %2416
        %v2418 = vsel %vm721, %v2415, %v2417
        %v2422 = vmul.f32 %v1994, %v2415
        %v2423 = vmul.f32 %v1995, %v2418
        %v2424 = vmul.f32 %v1996, %v2417
        %v2425 = vmul.f32 %v1997, %v2415
        %v2426 = vmul.f32 %v1998, %v2418
        %v2427 = vmul.f32 %v1999, %v2417
        %v2434 = vrot.slane %v2422, 1
        %v2435 = vrot.slane %v2425, 1
        %v2436 = vsel %vm794, %v2434, %v2435
        %v2437 = vrot.slane %v2423, 1
        %v2438 = vrot.slane %v2426, 1
        %v2439 = vsel %vm794, %v2437, %v2438
        %v2440 = vrot.slane %v2424, 1
        %v2441 = vrot.slane %v2427, 1
        %v2442 = vsel %vm794, %v2440, %v2441
        %2443 = vrot.lane.b32.xlu0 %v2436, 96
        %v2444 = vpop.permute.xlu0 %2443
        %2445 = vrot.lane.b32.xlu0 %v2439, 96
        %v2446 = vpop.permute.xlu0 %2445
        %2447 = vrot.lane.b32.xlu0 %v2442, 96
        %v2448 = vpop.permute.xlu0 %2447
        %v2449 = vsel %vm754, %v2444, %v2446
        %v2450 = vsel %vm754, %v2446, %v2448
        %v2454 = vadd.f32 %v2219, %v2449
        %v2455 = vadd.f32 %v2220, %v2450
        %v2456 = vadd.f32 %v2221, %v2448
        %s2457 = scalar_lea.vmem %s2, 85
        %v2458 = vld [vmem:[%s2457] ss:$8 sm:$0x3]
        %v2460 = vlaneseq
        %v2461 = vshrl.u32 %v2460, 7
        %v2462 = vsub.s32 0, %v2461
        %v2463 = vrot.slane %v2458, %v2462
        %v2464 = vlaneseq
        %v2465 = vshrl.u32 %v2464, 7
        %v2466 = vsub.s32 1, %v2465
        %v2467 = vrot.slane %v2458, %v2466
        %2468 = vrot.lane.b32.xlu0 %v2463, 64
        %v2469 = vpop.permute.xlu0 %2468
        %2470 = vrot.lane.b32.xlu0 %v2467, 64
        %v2471 = vpop.permute.xlu0 %2470
        %v2472 = vsel %vm721, %v2469, %v2471
        %v2476 = vmul.f32 %v2052, %v2469
        %v2477 = vmul.f32 %v2053, %v2472
        %v2478 = vmul.f32 %v2054, %v2471
        %v2479 = vmul.f32 %v2055, %v2469
        %v2480 = vmul.f32 %v2056, %v2472
        %v2481 = vmul.f32 %v2057, %v2471
        %v2488 = vrot.slane %v2476, 5
        %v2489 = vrot.slane %v2477, 5
        %v2490 = vrot.slane %v2478, 5
        %v2491 = vrot.slane %v2479, 5
        %v2492 = vsel %vm738, %v2488, %v2491
        %v2493 = vrot.slane %v2480, 5
        %v2494 = vsel %vm738, %v2489, %v2493
        %v2495 = vrot.slane %v2481, 5
        %v2496 = vsel %vm738, %v2490, %v2495
        %2497 = vrot.lane.b32.xlu0 %v2488, 96
        %v2498 = vpop.permute.xlu0 %2497
        %2499 = vrot.lane.b32.xlu0 %v2489, 96
        %v2500 = vpop.permute.xlu0 %2499
        %2501 = vrot.lane.b32.xlu0 %v2490, 96
        %v2502 = vpop.permute.xlu0 %2501
        %2503 = vrot.lane.b32.xlu0 %v2492, 96
        %v2504 = vpop.permute.xlu0 %2503
        %2505 = vrot.lane.b32.xlu0 %v2494, 96
        %v2506 = vpop.permute.xlu0 %2505
        %2507 = vrot.lane.b32.xlu0 %v2496, 96
        %v2508 = vpop.permute.xlu0 %2507
        %v2509 = vsel %vm754, %v2498, %v2500
        %v2510 = vsel %vm754, %v2500, %v2502
        %v2511 = vsel %vm754, %v2504, %v2506
        %v2512 = vsel %vm754, %v2506, %v2508
        %v2519 = vadd.f32 %v2284, %v2509
        %v2520 = vadd.f32 %v2285, %v2510
        %v2521 = vadd.f32 %v2286, %v2502
        %v2522 = vadd.f32 %v2287, %v2511
        %v2523 = vadd.f32 %v2288, %v2512
        %v2524 = vadd.f32 %v2289, %v2508
        %s2525 = scalar_lea.vmem %s2, 86
        %v2526 = vld [vmem:[%s2525] ss:$8 sm:$0x3]
        %v2528 = vlaneseq
        %v2529 = vshrl.u32 %v2528, 7
        %v2530 = vsub.s32 0, %v2529
        %v2531 = vrot.slane %v2526, %v2530
        %v2532 = vlaneseq
        %v2533 = vshrl.u32 %v2532, 7
        %v2534 = vsub.s32 1, %v2533
        %v2535 = vrot.slane %v2526, %v2534
        %2536 = vrot.lane.b32.xlu0 %v2531, 64
        %v2537 = vpop.permute.xlu0 %2536
        %2538 = vrot.lane.b32.xlu0 %v2535, 64
        %v2539 = vpop.permute.xlu0 %2538
        %v2540 = vsel %vm721, %v2537, %v2539
        %v2544 = vmul.f32 %v2110, %v2537
        %v2545 = vmul.f32 %v2111, %v2540
        %v2546 = vmul.f32 %v2112, %v2539
        %v2547 = vmul.f32 %v2113, %v2537
        %v2548 = vmul.f32 %v2114, %v2540
        %v2549 = vmul.f32 %v2115, %v2539
        %v2556 = vrot.slane %v2544, 5
        %v2557 = vrot.slane %v2545, 5
        %v2558 = vrot.slane %v2546, 5
        %v2559 = vrot.slane %v2547, 5
        %v2560 = vsel %vm738, %v2556, %v2559
        %v2561 = vrot.slane %v2548, 5
        %v2562 = vsel %vm738, %v2557, %v2561
        %v2563 = vrot.slane %v2549, 5
        %v2564 = vsel %vm738, %v2558, %v2563
        %2565 = vrot.lane.b32.xlu0 %v2556, 96
        %v2566 = vpop.permute.xlu0 %2565
        %2567 = vrot.lane.b32.xlu0 %v2557, 96
        %v2568 = vpop.permute.xlu0 %2567
        %2569 = vrot.lane.b32.xlu0 %v2558, 96
        %v2570 = vpop.permute.xlu0 %2569
        %2571 = vrot.lane.b32.xlu0 %v2560, 96
        %v2572 = vpop.permute.xlu0 %2571
        %2573 = vrot.lane.b32.xlu0 %v2562, 96
        %v2574 = vpop.permute.xlu0 %2573
        %2575 = vrot.lane.b32.xlu0 %v2564, 96
        %v2576 = vpop.permute.xlu0 %2575
        %v2577 = vsel %vm754, %v2566, %v2568
        %v2578 = vsel %vm754, %v2568, %v2570
        %v2579 = vsel %vm754, %v2572, %v2574
        %v2580 = vsel %vm754, %v2574, %v2576
        %v2587 = vadd.f32 %v2352, %v2577
        %v2588 = vadd.f32 %v2353, %v2578
        %v2589 = vadd.f32 %v2354, %v2570
        %v2590 = vadd.f32 %v2355, %v2579
        %v2591 = vadd.f32 %v2356, %v2580
        %v2592 = vadd.f32 %v2357, %v2576
        %s2593 = scalar_lea.vmem %s2, 96
        %v2594 = vld [vmem:[%s2593] ss:$8 sm:$0x3]
        %v2596 = vlaneseq
        %v2597 = vshrl.u32 %v2596, 7
        %v2598 = vsub.s32 0, %v2597
        %v2599 = vrot.slane %v2594, %v2598
        %v2600 = vlaneseq
        %v2601 = vshrl.u32 %v2600, 7
        %v2602 = vsub.s32 1, %v2601
        %v2603 = vrot.slane %v2594, %v2602
        %2604 = vrot.lane.b32.xlu0 %v2599, 96
        %v2605 = vpop.permute.xlu0 %2604
        %2606 = vrot.lane.b32.xlu0 %v2603, 96
        %v2607 = vpop.permute.xlu0 %2606
        %v2608 = vsel %vm754, %v2605, %v2607
        %v2612 = vmul.f32 %v393, %v2605
        %v2613 = vmul.f32 %v394, %v2608
        %v2614 = vmul.f32 %v1869, %v2607
        %v2615 = vmul.f32 %v396, %v2605
        %v2616 = vmul.f32 %v397, %v2608
        %v2617 = vmul.f32 %v1870, %v2607
        %v2624 = vrot.slane %v2612, 6
        %v2625 = vrot.slane %v2613, 6
        %v2626 = vrot.slane %v2614, 6
        %v2627 = vrot.slane %v2615, 6
        %v2628 = vsel %vm1166, %v2624, %v2627
        %v2629 = vrot.slane %v2616, 6
        %v2630 = vsel %vm1166, %v2625, %v2629
        %v2631 = vrot.slane %v2617, 6
        %v2632 = vsel %vm1166, %v2626, %v2631
        %2633 = vrot.lane.b32.xlu0 %v2624, 64
        %v2634 = vpop.permute.xlu0 %2633
        %2635 = vrot.lane.b32.xlu0 %v2625, 64
        %v2636 = vpop.permute.xlu0 %2635
        %2637 = vrot.lane.b32.xlu0 %v2626, 64
        %v2638 = vpop.permute.xlu0 %2637
        %2639 = vrot.lane.b32.xlu0 %v2628, 64
        %v2640 = vpop.permute.xlu0 %2639
        %2641 = vrot.lane.b32.xlu0 %v2630, 64
        %v2642 = vpop.permute.xlu0 %2641
        %2643 = vrot.lane.b32.xlu0 %v2632, 64
        %v2644 = vpop.permute.xlu0 %2643
        %v2645 = vsel %vm721, %v2634, %v2636
        %v2646 = vsel %vm721, %v2636, %v2638
        %v2647 = vsel %vm721, %v2640, %v2642
        %v2648 = vsel %vm721, %v2642, %v2644
        %v2655 = vadd.f32 %v2397, %v2645
        %v2656 = vadd.f32 %v2398, %v2646
        %v2657 = vadd.f32 %v2399, %v2638
        %v2658 = vadd.f32 %v2400, %v2647
        %v2659 = vadd.f32 %v2401, %v2648
        %v2660 = vadd.f32 %v2402, %v2644
        %s2661 = scalar_lea.vmem %s2, 97
        %v2662 = vld [vmem:[%s2661] ss:$8 sm:$0x3]
        %v2664 = vlaneseq
        %v2665 = vshrl.u32 %v2664, 7
        %v2666 = vsub.s32 0, %v2665
        %v2667 = vrot.slane %v2662, %v2666
        %v2668 = vlaneseq
        %v2669 = vshrl.u32 %v2668, 7
        %v2670 = vsub.s32 1, %v2669
        %v2671 = vrot.slane %v2662, %v2670
        %2672 = vrot.lane.b32.xlu0 %v2667, 96
        %v2673 = vpop.permute.xlu0 %2672
        %2674 = vrot.lane.b32.xlu0 %v2671, 96
        %v2675 = vpop.permute.xlu0 %2674
        %v2676 = vsel %vm754, %v2673, %v2675
        %v2680 = vmul.f32 %v430, %v2673
        %v2681 = vmul.f32 %v431, %v2676
        %v2682 = vmul.f32 %v1902, %v2675
        %v2683 = vmul.f32 %v433, %v2673
        %v2684 = vmul.f32 %v434, %v2676
        %v2685 = vmul.f32 %v1903, %v2675
        %v2692 = vrot.slane %v2680, 6
        %v2693 = vrot.slane %v2683, 6
        %v2694 = vsel %vm1166, %v2692, %v2693
        %v2695 = vrot.slane %v2681, 6
        %v2696 = vrot.slane %v2684, 6
        %v2697 = vsel %vm1166, %v2695, %v2696
        %v2698 = vrot.slane %v2682, 6
        %v2699 = vrot.slane %v2685, 6
        %v2700 = vsel %vm1166, %v2698, %v2699
        %2701 = vrot.lane.b32.xlu0 %v2694, 64
        %v2702 = vpop.permute.xlu0 %2701
        %2703 = vrot.lane.b32.xlu0 %v2697, 64
        %v2704 = vpop.permute.xlu0 %2703
        %2705 = vrot.lane.b32.xlu0 %v2700, 64
        %v2706 = vpop.permute.xlu0 %2705
        %v2707 = vsel %vm721, %v2702, %v2704
        %v2708 = vsel %vm721, %v2704, %v2706
        %v2712 = vadd.f32 %v2454, %v2707
        %v2713 = vadd.f32 %v2455, %v2708
        %v2714 = vadd.f32 %v2456, %v2706
        %s2715 = scalar_lea.vmem %s2, 98
        %v2716 = vld [vmem:[%s2715] ss:$8 sm:$0x3]
        %v2718 = vlaneseq
        %v2719 = vshrl.u32 %v2718, 7
        %v2720 = vsub.s32 0, %v2719
        %v2721 = vrot.slane %v2716, %v2720
        %v2722 = vlaneseq
        %v2723 = vshrl.u32 %v2722, 7
        %v2724 = vsub.s32 1, %v2723
        %v2725 = vrot.slane %v2716, %v2724
        %2726 = vrot.lane.b32.xlu0 %v2721, 96
        %v2727 = vpop.permute.xlu0 %2726
        %2728 = vrot.lane.b32.xlu0 %v2725, 96
        %v2729 = vpop.permute.xlu0 %2728
        %v2730 = vsel %vm754, %v2727, %v2729
        %v2734 = vmul.f32 %v467, %v2727
        %v2735 = vmul.f32 %v468, %v2730
        %v2736 = vmul.f32 %v1935, %v2729
        %v2737 = vmul.f32 %v470, %v2727
        %v2738 = vmul.f32 %v471, %v2730
        %v2739 = vmul.f32 %v1936, %v2729
        %v2746 = vrot.slane %v2734, 2
        %v2747 = vrot.slane %v2737, 2
        %v2748 = vsel %vm1289, %v2746, %v2747
        %v2749 = vrot.slane %v2735, 2
        %v2750 = vrot.slane %v2738, 2
        %v2751 = vsel %vm1289, %v2749, %v2750
        %v2752 = vrot.slane %v2736, 2
        %v2753 = vrot.slane %v2739, 2
        %v2754 = vsel %vm1289, %v2752, %v2753
        %2755 = vrot.lane.b32.xlu0 %v2748, 64
        %v2756 = vpop.permute.xlu0 %2755
        %2757 = vrot.lane.b32.xlu0 %v2751, 64
        %v2758 = vpop.permute.xlu0 %2757
        %2759 = vrot.lane.b32.xlu0 %v2754, 64
        %v2760 = vpop.permute.xlu0 %2759
        %2761 = vrot.lane.b32.xlu0 %v2747, 64
        %v2762 = vpop.permute.xlu0 %2761
        %2763 = vrot.lane.b32.xlu0 %v2750, 64
        %v2764 = vpop.permute.xlu0 %2763
        %2765 = vrot.lane.b32.xlu0 %v2753, 64
        %v2766 = vpop.permute.xlu0 %2765
        %v2767 = vsel %vm721, %v2756, %v2758
        %v2768 = vsel %vm721, %v2758, %v2760
        %v2769 = vsel %vm721, %v2762, %v2764
        %v2770 = vsel %vm721, %v2764, %v2766
        %v2777 = vadd.f32 %v2519, %v2767
        %v2778 = vadd.f32 %v2520, %v2768
        %v2779 = vadd.f32 %v2521, %v2760
        %v2780 = vadd.f32 %v2522, %v2769
        %v2781 = vadd.f32 %v2523, %v2770
        %v2782 = vadd.f32 %v2524, %v2766
        %s2783 = scalar_lea.vmem %s2, 99
        %v2784 = vld [vmem:[%s2783] ss:$8 sm:$0x3]
        %v2786 = vlaneseq
        %v2787 = vshrl.u32 %v2786, 7
        %v2788 = vsub.s32 0, %v2787
        %v2789 = vrot.slane %v2784, %v2788
        %v2790 = vlaneseq
        %v2791 = vshrl.u32 %v2790, 7
        %v2792 = vsub.s32 1, %v2791
        %v2793 = vrot.slane %v2784, %v2792
        %2794 = vrot.lane.b32.xlu0 %v2789, 96
        %v2795 = vpop.permute.xlu0 %2794
        %2796 = vrot.lane.b32.xlu0 %v2793, 96
        %v2797 = vpop.permute.xlu0 %2796
        %v2798 = vsel %vm754, %v2795, %v2797
        %v2802 = vmul.f32 %v504, %v2795
        %v2803 = vmul.f32 %v505, %v2798
        %v2804 = vmul.f32 %v1968, %v2797
        %v2808 = vrot.slane %v2802, 2
        %v2809 = vrot.slane %v2803, 2
        %v2810 = vrot.slane %v2804, 2
        %2811 = vrot.lane.b32.xlu0 %v2808, 64
        %v2812 = vpop.permute.xlu0 %2811
        %2813 = vrot.lane.b32.xlu0 %v2809, 64
        %v2814 = vpop.permute.xlu0 %2813
        %2815 = vrot.lane.b32.xlu0 %v2810, 64
        %v2816 = vpop.permute.xlu0 %2815
        %v2817 = vsel %vm721, %v2812, %v2814
        %v2818 = vsel %vm721, %v2814, %v2816
        %v2822 = vadd.f32 %v2587, %v2817
        %v2823 = vadd.f32 %v2588, %v2818
        %v2824 = vadd.f32 %v2589, %v2816
        %v2825 = vadd.f32 %v2590, %v2817
        %v2826 = vadd.f32 %v2591, %v2818
        %v2827 = vadd.f32 %v2592, %v2816
        %s2828 = scalar_lea.vmem %s2, 100
        %v2829 = vld [vmem:[%s2828] ss:$8 sm:$0x3]
        %v2831 = vlaneseq
        %v2832 = vshrl.u32 %v2831, 7
        %v2833 = vsub.s32 0, %v2832
        %v2834 = vrot.slane %v2829, %v2833
        %v2835 = vlaneseq
        %v2836 = vshrl.u32 %v2835, 7
        %v2837 = vsub.s32 1, %v2836
        %v2838 = vrot.slane %v2829, %v2837
        %2839 = vrot.lane.b32.xlu0 %v2834, 96
        %v2840 = vpop.permute.xlu0 %2839
        %2841 = vrot.lane.b32.xlu0 %v2838, 96
        %v2842 = vpop.permute.xlu0 %2841
        %v2843 = vsel %vm754, %v2840, %v2842
        %v2847 = vmul.f32 %v1994, %v2840
        %v2848 = vmul.f32 %v1995, %v2843
        %v2849 = vmul.f32 %v1996, %v2842
        %v2850 = vmul.f32 %v1997, %v2840
        %v2851 = vmul.f32 %v1998, %v2843
        %v2852 = vmul.f32 %v1999, %v2842
        %v2859 = vrot.slane %v2847, 2
        %v2860 = vrot.slane %v2848, 2
        %v2861 = vrot.slane %v2849, 2
        %v2862 = vrot.slane %v2850, 2
        %v2863 = vsel %vm1289, %v2859, %v2862
        %v2864 = vrot.slane %v2851, 2
        %v2865 = vsel %vm1289, %v2860, %v2864
        %v2866 = vrot.slane %v2852, 2
        %v2867 = vsel %vm1289, %v2861, %v2866
        %2868 = vrot.lane.b32.xlu0 %v2859, 64
        %v2869 = vpop.permute.xlu0 %2868
        %2870 = vrot.lane.b32.xlu0 %v2860, 64
        %v2871 = vpop.permute.xlu0 %2870
        %2872 = vrot.lane.b32.xlu0 %v2861, 64
        %v2873 = vpop.permute.xlu0 %2872
        %2874 = vrot.lane.b32.xlu0 %v2863, 64
        %v2875 = vpop.permute.xlu0 %2874
        %2876 = vrot.lane.b32.xlu0 %v2865, 64
        %v2877 = vpop.permute.xlu0 %2876
        %2878 = vrot.lane.b32.xlu0 %v2867, 64
        %v2879 = vpop.permute.xlu0 %2878
        %v2880 = vsel %vm721, %v2869, %v2871
        %v2881 = vsel %vm721, %v2871, %v2873
        %v2882 = vsel %vm721, %v2875, %v2877
        %v2883 = vsel %vm721, %v2877, %v2879
        %v2890 = vadd.f32 %v2655, %v2880
        %v2891 = vadd.f32 %v2656, %v2881
        %v2892 = vadd.f32 %v2657, %v2873
        %v2893 = vadd.f32 %v2658, %v2882
        %v2894 = vadd.f32 %v2659, %v2883
        %v2895 = vadd.f32 %v2660, %v2879
        %s2896 = scalar_lea.vmem %s2, 101
        %v2897 = vld [vmem:[%s2896] ss:$8 sm:$0x3]
        %v2899 = vlaneseq
        %v2900 = vshrl.u32 %v2899, 7
        %v2901 = vsub.s32 0, %v2900
        %v2902 = vrot.slane %v2897, %v2901
        %v2903 = vlaneseq
        %v2904 = vshrl.u32 %v2903, 7
        %v2905 = vsub.s32 1, %v2904
        %v2906 = vrot.slane %v2897, %v2905
        %2907 = vrot.lane.b32.xlu0 %v2902, 96
        %v2908 = vpop.permute.xlu0 %2907
        %2909 = vrot.lane.b32.xlu0 %v2906, 96
        %v2910 = vpop.permute.xlu0 %2909
        %v2911 = vsel %vm754, %v2908, %v2910
        %v2915 = vmul.f32 %v2052, %v2908
        %v2916 = vmul.f32 %v2053, %v2911
        %v2917 = vmul.f32 %v2054, %v2910
        %v2918 = vmul.f32 %v2055, %v2908
        %v2919 = vmul.f32 %v2056, %v2911
        %v2920 = vmul.f32 %v2057, %v2910
        %v2927 = vrot.slane %v2915, 2
        %v2928 = vrot.slane %v2918, 2
        %v2929 = vsel %vm1289, %v2927, %v2928
        %v2930 = vrot.slane %v2916, 2
        %v2931 = vrot.slane %v2919, 2
        %v2932 = vsel %vm1289, %v2930, %v2931
        %v2933 = vrot.slane %v2917, 2
        %v2934 = vrot.slane %v2920, 2
        %v2935 = vsel %vm1289, %v2933, %v2934
        %2936 = vrot.lane.b32.xlu0 %v2929, 64
        %v2937 = vpop.permute.xlu0 %2936
        %2938 = vrot.lane.b32.xlu0 %v2932, 64
        %v2939 = vpop.permute.xlu0 %2938
        %2940 = vrot.lane.b32.xlu0 %v2935, 64
        %v2941 = vpop.permute.xlu0 %2940
        %v2942 = vsel %vm721, %v2937, %v2939
        %v2943 = vsel %vm721, %v2939, %v2941
        %v2947 = vadd.f32 %v2712, %v2942
        %v2948 = vadd.f32 %v2713, %v2943
        %v2949 = vadd.f32 %v2714, %v2941
        %s2950 = scalar_lea.vmem %s2, 102
        %v2951 = vld [vmem:[%s2950] ss:$8 sm:$0x3]
        %v2953 = vlaneseq
        %v2954 = vshrl.u32 %v2953, 7
        %v2955 = vsub.s32 0, %v2954
        %v2956 = vrot.slane %v2951, %v2955
        %v2957 = vlaneseq
        %v2958 = vshrl.u32 %v2957, 7
        %v2959 = vsub.s32 1, %v2958
        %v2960 = vrot.slane %v2951, %v2959
        %2961 = vrot.lane.b32.xlu0 %v2956, 96
        %v2962 = vpop.permute.xlu0 %2961
        %2963 = vrot.lane.b32.xlu0 %v2960, 96
        %v2964 = vpop.permute.xlu0 %2963
        %v2965 = vsel %vm754, %v2962, %v2964
        %v2969 = vmul.f32 %v2110, %v2962
        %v2970 = vmul.f32 %v2111, %v2965
        %v2971 = vmul.f32 %v2112, %v2964
        %v2972 = vmul.f32 %v2113, %v2962
        %v2973 = vmul.f32 %v2114, %v2965
        %v2974 = vmul.f32 %v2115, %v2964
        %v2981 = vrot.slane %v2969, 6
        %v2982 = vrot.slane %v2970, 6
        %v2983 = vrot.slane %v2971, 6
        %v2984 = vrot.slane %v2972, 6
        %v2985 = vsel %vm1166, %v2981, %v2984
        %v2986 = vrot.slane %v2973, 6
        %v2987 = vsel %vm1166, %v2982, %v2986
        %v2988 = vrot.slane %v2974, 6
        %v2989 = vsel %vm1166, %v2983, %v2988
        %2990 = vrot.lane.b32.xlu0 %v2981, 64
        %v2991 = vpop.permute.xlu0 %2990
        %2992 = vrot.lane.b32.xlu0 %v2982, 64
        %v2993 = vpop.permute.xlu0 %2992
        %2994 = vrot.lane.b32.xlu0 %v2983, 64
        %v2995 = vpop.permute.xlu0 %2994
        %2996 = vrot.lane.b32.xlu0 %v2985, 64
        %v2997 = vpop.permute.xlu0 %2996
        %2998 = vrot.lane.b32.xlu0 %v2987, 64
        %v2999 = vpop.permute.xlu0 %2998
        %3000 = vrot.lane.b32.xlu0 %v2989, 64
        %v3001 = vpop.permute.xlu0 %3000
        %v3002 = vsel %vm721, %v2991, %v2993
        %v3003 = vsel %vm721, %v2993, %v2995
        %v3004 = vsel %vm721, %v2997, %v2999
        %v3005 = vsel %vm721, %v2999, %v3001
        %v3012 = vadd.f32 %v2777, %v3002
        %v3013 = vadd.f32 %v2778, %v3003
        %v3014 = vadd.f32 %v2779, %v2995
        %v3015 = vadd.f32 %v2780, %v3004
        %v3016 = vadd.f32 %v2781, %v3005
        %v3017 = vadd.f32 %v2782, %v3001
        %v3024 = vrot.slane %v2822, 1
        %v3025 = vrot.slane %v2825, 1
        %v3026 = vsel %vm794, %v3024, %v3025
        %v3027 = vrot.slane %v2823, 1
        %v3028 = vrot.slane %v2826, 1
        %v3029 = vsel %vm794, %v3027, %v3028
        %v3030 = vrot.slane %v2824, 1
        %v3031 = vrot.slane %v2827, 1
        %v3032 = vsel %vm794, %v3030, %v3031
        %v3039 = vadd.f32 %v3012, %v3026
        %v3040 = vadd.f32 %v3013, %v3029
        %v3041 = vadd.f32 %v3014, %v3032
        %v3042 = vadd.f32 %v3015, %v3025
        %v3043 = vadd.f32 %v3016, %v3028
        %v3044 = vadd.f32 %v3017, %v3031
        %v3048 = vrot.slane %v2947, 1
        %v3049 = vrot.slane %v2948, 1
        %v3050 = vrot.slane %v2949, 1
        %v3054 = vadd.f32 %v2890, %v3048
        %v3055 = vadd.f32 %v2891, %v3049
        %v3056 = vadd.f32 %v2892, %v3050
        %v3057 = vadd.f32 %v2893, %v3048
        %v3058 = vadd.f32 %v2894, %v3049
        %v3059 = vadd.f32 %v2895, %v3050
        %v3066 = vrot.slane %v3054, 2
        %v3067 = vrot.slane %v3057, 2
        %v3068 = vsel %vm1289, %v3066, %v3067
        %v3069 = vrot.slane %v3055, 2
        %v3070 = vrot.slane %v3058, 2
        %v3071 = vsel %vm1289, %v3069, %v3070
        %v3072 = vrot.slane %v3056, 2
        %v3073 = vrot.slane %v3059, 2
        %v3074 = vsel %vm1289, %v3072, %v3073
        %v3081 = vadd.f32 %v3039, %v3068
        %v3082 = vadd.f32 %v3040, %v3071
        %v3083 = vadd.f32 %v3041, %v3074
        %v3084 = vadd.f32 %v3042, %v3067
        %v3085 = vadd.f32 %v3043, %v3070
        %v3086 = vadd.f32 %v3044, %v3073
        %v3087 = vld [vmem:[#allocation6] sm:$0xff]
        %v3088 = vld [vmem:[#allocation6 + $0x8] sm:$0xff]
        %v3089 = vld [vmem:[#allocation6 + $0x10] sm:$0xff]
        %v3090 = vld [vmem:[#allocation6 + $0x18] sm:$0xff]
        %v3091 = vld [vmem:[#allocation6 + $0x20] sm:$0xff]
        %v3092 = vld [vmem:[#allocation6 + $0x28] sm:$0xff]
        %v3093 = vld [vmem:[#allocation6 + $0x30] sm:$0xff]
        %v3094 = vld [vmem:[#allocation6 + $0x38] sm:$0xff]
        %v3095 = vld [vmem:[#allocation6 + $0x40] sm:$0xff]
        %v3096 = vld [vmem:[#allocation6 + $0x48] sm:$0xff]
        %v3097 = vld [vmem:[#allocation6 + $0x50] sm:$0xff]
        %v3098 = vld [vmem:[#allocation6 + $0x58] sm:$0xff]
        %v3099 = vld [vmem:[#allocation6 + $0x60] sm:$0xff]
        %v3100 = vld [vmem:[#allocation6 + $0x68] sm:$0xff]
        %v3101 = vld [vmem:[#allocation6 + $0x70] sm:$0xff]
        %v3102 = vld [vmem:[#allocation6 + $0x78] sm:$0xff]
        %v3103 = vld [vmem:[#allocation6 + $0x80] sm:$0xff]
        %v3104 = vld [vmem:[#allocation6 + $0x88] sm:$0xff]
        %v3105 = vld [vmem:[#allocation6 + $0x90] sm:$0xff]
        %v3106 = vld [vmem:[#allocation6 + $0x98] sm:$0xff]
        %v3107 = vld [vmem:[#allocation6 + $0xa0] sm:$0xff]
        %v3108 = vld [vmem:[#allocation6 + $0xa8] sm:$0xff]
        %v3109 = vld [vmem:[#allocation6 + $0xb0] sm:$0xff]
        %v3110 = vld [vmem:[#allocation6 + $0xb8] sm:$0xff]
        %v3111 = vld [vmem:[#allocation6 + $0xc0] sm:$0xff]
        %v3112 = vld [vmem:[#allocation6 + $0xc8] sm:$0xff]
        %v3113 = vld [vmem:[#allocation6 + $0xd0] sm:$0xff]
        %v3114 = vld [vmem:[#allocation6 + $0xd8] sm:$0xff]
        %v3115 = vld [vmem:[#allocation6 + $0xe0] sm:$0xff]
        %v3116 = vld [vmem:[#allocation6 + $0xe8] sm:$0xff]
        %v3117 = vld [vmem:[#allocation6 + $0xf0] sm:$0xff]
        %v3118 = vld [vmem:[#allocation6 + $0xf8] sm:$0xff]
        %v3125 = vrot.slane %v3081, 5
        %v3126 = vrot.slane %v3084, 5
        %v3127 = vsel %vm738, %v3125, %v3126
        %v3128 = vrot.slane %v3082, 5
        %v3129 = vrot.slane %v3085, 5
        %v3130 = vsel %vm738, %v3128, %v3129
        %v3131 = vrot.slane %v3083, 5
        %v3132 = vrot.slane %v3086, 5
        %v3133 = vsel %vm738, %v3131, %v3132
        %3134 = vrot.lane.b32.xlu0 %v3127, 96
        %v3135 = vpop.permute.xlu0 %3134
        %3136 = vrot.lane.b32.xlu0 %v3130, 96
        %v3137 = vpop.permute.xlu0 %3136
        %3138 = vrot.lane.b32.xlu0 %v3133, 96
        %v3139 = vpop.permute.xlu0 %3138
        %v3140 = vsel %vm754, %v3135, %v3137
        %v3141 = vsel %vm754, %v3137, %v3139
        %3144 = vmatprep.subr.mxu0 0.0
        %3145 = vmatpush1.msra.mxu0 %v3087
        %3146 = vmatprep.subr.mxu0 0.0
        %3147 = vmatpush1.msra.mxu0 %v3088
        %3148 = vmatprep.subr.mxu0 0.0
        %3149 = vmatpush1.msra.mxu0 %v3089
        %3150 = vmatprep.subr.mxu0 0.0
        %3151 = vmatpush1.msra.mxu0 %v3090
        %3152 = vmatprep.subr.mxu0 0.0
        %3153 = vmatpush1.msra.mxu0 %v3091
        %3154 = vmatprep.subr.mxu0 0.0
        %3155 = vmatpush1.msra.mxu0 %v3092
        %3156 = vmatprep.subr.mxu0 0.0
        %3157 = vmatpush1.msra.mxu0 %v3093
        %3158 = vmatprep.subr.mxu0 0.0
        %3159 = vmatpush1.msra.mxu0 %v3094
        %3160 = vmatprep.subr.mxu0 0.0
        %3161 = vmatpush1.msra.mxu0 %v3095
        %3162 = vmatprep.subr.mxu0 0.0
        %3163 = vmatpush1.msra.mxu0 %v3096
        %3164 = vmatprep.subr.mxu0 0.0
        %3165 = vmatpush1.msra.mxu0 %v3097
        %3166 = vmatprep.subr.mxu0 0.0
        %3167 = vmatpush1.msra.mxu0 %v3098
        %3168 = vmatprep.subr.mxu0 0.0
        %3169 = vmatpush1.msra.mxu0 %v3099
        %3170 = vmatprep.subr.mxu0 0.0
        %3171 = vmatpush1.msra.mxu0 %v3100
        %3172 = vmatprep.subr.mxu0 0.0
        %3173 = vmatpush1.msra.mxu0 %v3101
        %3174 = vmatprep.subr.mxu0 0.0
        %3175 = vmatpush1.msra.mxu0 %v3102
        %3176 = vmatprep.subr.mxu0 0.0
        %3177 = vmatpush1.msra.mxu0 %v3103
        %3178 = vmatprep.subr.mxu0 0.0
        %3179 = vmatpush1.msra.mxu0 %v3104
        %3180 = vmatprep.subr.mxu0 0.0
        %3181 = vmatpush1.msra.mxu0 %v3105
        %3182 = vmatprep.subr.mxu0 0.0
        %3183 = vmatpush1.msra.mxu0 %v3106
        %3184 = vmatprep.subr.mxu0 0.0
        %3185 = vmatpush1.msra.mxu0 %v3107
        %3186 = vmatprep.subr.mxu0 0.0
        %3187 = vmatpush1.msra.mxu0 %v3108
        %3188 = vmatprep.subr.mxu0 0.0
        %3189 = vmatpush1.msra.mxu0 %v3109
        %3190 = vmatprep.subr.mxu0 0.0
        %3191 = vmatpush1.msra.mxu0 %v3110
        %3192 = vmatprep.subr.mxu0 0.0
        %3193 = vmatpush1.msra.mxu0 %v3111
        %3194 = vmatprep.subr.mxu0 0.0
        %3195 = vmatpush1.msra.mxu0 %v3112
        %3196 = vmatprep.subr.mxu0 0.0
        %3197 = vmatpush1.msra.mxu0 %v3113
        %3198 = vmatprep.subr.mxu0 0.0
        %3199 = vmatpush1.msra.mxu0 %v3114
        %3200 = vmatprep.subr.mxu0 0.0
        %3201 = vmatpush1.msra.mxu0 %v3115
        %3202 = vmatprep.subr.mxu0 0.0
        %3203 = vmatpush1.msra.mxu0 %v3116
        %3204 = vmatprep.subr.mxu0 0.0
        %3205 = vmatpush1.msra.mxu0 %v3117
        %3206 = vmatprep.subr.mxu0 0.0
        %3207 = vmatpush1.msra.mxu0 %v3118
        %3208 = vmatprep.mubr.f32.mxu0 %v3141
        %3209 = vmatmul.mubr.f32.gmra.mrb[0].mxu0 %v3140
        %v3210 = vpop.f32.mrb[0].mxu0
        %v3211 = vadd.f32 0.0, %v3210
        %v3212 = vpop.f32.mrb[0].mxu0
        %3213 = vdwg.mxu0
        %3214 = vst [vmem:[%s263] sm:$0xff] %v3211
        %p3215 = scmp.lt.s32.totalorder %s19, 1
        %s3216 = scalar_select %p3215, %s19, 1
        %s3217 = smul.addr %s3216, 8
        %s3218 = scalar_lea.vmem %s5, %s3217
        // Predicated region
        $region53: #{sepconv_pallas.1} parent=39 // pred_check
          %p3219 = pneg %p147
        $region54: #{sepconv_pallas.1} parent=39 // pred_check_branch
          %3221 = sbr.rel (%p3219) target = $region56
        $region55: #{sepconv_pallas.1} parent=39 // pred_region
          _
        $region56: #{sepconv_pallas.1} parent=39 // pred_fallthru
          _
      $region40: #{sepconv_pallas.1} parent=5 // pred_fallthru
        _
      %p3222 = scmp.le.s32.totalorder 2, %s14
      // Predicated region
      $region57: #{sepconv_pallas.1} parent=5 // pred_check
        %p3223 = pneg %p3222
      $region58: #{sepconv_pallas.1} parent=5 // pred_check_branch
        %3225 = sbr.rel (%p3223) target = $region60
      $region59: #{sepconv_pallas.1} parent=5 // pred_region
        %s3226 = ssub.s32 %s14, 2
        // Predicated region
        $region61: #{sepconv_pallas.1} parent=59 // pred_check
          %p3227 = pneg %p153
        $region62: #{sepconv_pallas.1} parent=59 // pred_check_branch
          %3229 = sbr.rel (%p3227) target = $region64
        $region63: #{sepconv_pallas.1} parent=59 // pred_region
          %p3230 = scmp.lt.s32.totalorder %s20, 1
          %s3231 = scalar_select %p3230, %s20, 1
          %s3232 = smul.addr %s3231, 8
          %s3233 = scalar_lea.vmem %s5, %s3232
        $region64: #{sepconv_pallas.1} parent=59 // pred_fallthru
          _
      $region60: #{sepconv_pallas.1} parent=5 // pred_fallthru
        _
    $region6: #{sepconv_pallas.1} parent=1 // loop_footer
      %s18 = sadd.s32 1, %s14
    $region7: #{sepconv_pallas.1} parent=1 // loop_footer_branch
      %13 = sbr.rel target = $region3
    $region8: #{sepconv_pallas.1} parent=1 // loop_exit
      _
    %3234 = vsyncpa [#allocation4], 1
    %s3235 = scalar_lea.sflag [#allocation4], 1
    %3236 = vsyncpa %s3235, 1
    %3237 = vsyncpa [#allocation7], 1
    %3238 = vsyncpa [#allocation5], 1
    %s3239 = scalar_lea.sflag [#allocation5], 1
    %3240 = vsyncpa %s3239, 1

</llo_original>
